<compile_context>
chip_gen: v5e
topology: v5e:2x2
jax: 0.10.0
libtpu: 0.0.40
codegen_flags: <defaults>
</compile_context>

<pallas_src>
import jax
import jax.numpy as jnp
from jax.experimental import pallas as pl
from jax.experimental.pallas import tpu as pltpu

BN_EPS = 1e-5
HALO = 4          # four chained 3x3 convs -> 4 halo rows on each side of a tile
LANE = 128


def _round_up(x, m):
    return ((x + m - 1) // m) * m


def _layer_defs(input_dim, output_dim):
    m = input_dim // output_dim
    inter_dim = output_dim if m == 1 else output_dim * (m // 2)
    # (name, K, cin, cout)
    return [
        ("convf1", 1, input_dim, inter_dim),
        ("ref1_1", 3, inter_dim, inter_dim),
        ("ref1_2", 3, inter_dim, inter_dim),
        ("convf2", 1, inter_dim, output_dim),
        ("ref2_1", 3, output_dim, output_dim),
        ("ref2_2", 3, output_dim, output_dim),
    ]


# -----------------------------------------------------------------------------
# Fused kernel: all six conv(+bias)+BN(+ReLU)(+residual) stages on one tile.
# -----------------------------------------------------------------------------
def _build_kernel(H, TH, RH, Wp):
    L = RH * Wp  # flattened tile length (rows-with-halo * padded width)

    def kernel(x_ref, rowidx_ref, colmask_ref,
               w1, b1, w2, b2, w3, b3, w4, b4, w5, b5, w6, b6,
               o_ref):
        t = pl.program_id(1)

        # Valid-image mask for this tile: 1.0 where the tile-local position maps
        # to a real image pixel, 0.0 on out-of-image rows and on pad columns.
        img_row = rowidx_ref[...] + (t * TH - HALO)          # (1, L) int32
        row_ok = (img_row >= 0) & (img_row < H)
        vmask = jnp.where(row_ok, colmask_ref[...], 0.0)     # (1, L) f32

        def conv1x1(feat, w_ref, b_ref, mask=False, residual=None):
            y = jnp.dot(w_ref[...], feat, preferred_element_type=jnp.float32)
            y = y + b_ref[...]                               # conv bias + BN shift
            if residual is not None:
                y = y + residual
            y = jnp.maximum(y, 0.0)                          # ReLU
            return y * vmask if mask else y

        def conv3x3(feat, w_ref, b_ref, mask=False, residual=None):
            # im2col: 9 shifted copies stacked along sublanes -> one MXU dot.
            # feat is zero on pad columns / out-of-image rows (invariant kept by
            # the vmask epilogue), so wrap-around rolls only touch the discard
            # band and SAME zero-padding semantics hold for valid pixels.
            taps = []
            for oy in range(3):
                for ox in range(3):
                    off = (oy - 1) * Wp + (ox - 1)
                    taps.append(feat if off == 0
                                else pltpu.roll(feat, (-off) % L, axis=1))
            stack = jnp.concatenate(taps, axis=0)            # (9*cin, L)
            y = jnp.dot(w_ref[...], stack, preferred_element_type=jnp.float32)
            y = y + b_ref[...]
            if residual is not None:
                y = y + residual
            y = jnp.maximum(y, 0.0)
            return y * vmask if mask else y

        x = x_ref[...]                                       # (Cin, L)
        f1 = conv1x1(x, w1, b1, mask=True)        # convf1: 1x1 conv + BN + ReLU
        h = conv3x3(f1, w2, b2, mask=True)        # ref1.conv1 + bn1 + relu
        f1b = conv3x3(h, w3, b3, residual=f1)     # ref1.conv2 + bn2 + id + relu
        f2 = conv1x1(f1b, w4, b4, mask=True)      # convf2: 1x1 conv + BN + ReLU
        h = conv3x3(f2, w5, b5, mask=True)        # ref2.conv1 + bn1 + relu
        out = conv3x3(h, w6, b6, residual=f2)     # ref2.conv2 + bn2 + id + relu

        # Dense, lane-aligned slab store of the tile's TH valid rows.
        o_ref[...] = out[:, HALO * Wp:(HALO + TH) * Wp]

    return kernel


# -----------------------------------------------------------------------------
# Public forward (NCHW in / NCHW out) — single pallas_call, grid = (B, tiles)
# -----------------------------------------------------------------------------
def context_encoder_forward(params, context_nchw, tile_rows=None):
    B, Cin, H, W = context_nchw.shape
    output_dim = params["convf2"]["w"].shape[-1]
    defs = _layer_defs(Cin, output_dim)

    if tile_rows is None:
        tile_rows = min(64, _round_up(H, 8))
    TH = max(1, int(tile_rows))           # output rows per tile
    T = -(-H // TH)                       # number of row tiles
    RH = TH + 2 * HALO                    # tile rows incl. halo
    Wp = _round_up(W + 2, LANE)           # padded width (>= W+2, lane-aligned)
    L = RH * Wp

    # --- fold BN into conv weights/bias; pack per-stage 2-D VMEM blocks ------
    ws, bs = [], []
    for name, K, cin, cout in defs:
        p = params[name]
        w = (p["w"] * p["scale"]).reshape(K * K * cin, cout)   # ((oy*K+ox)*cin+ci, co)
        ws.append(jnp.transpose(w).astype(jnp.float32))        # (cout, K*K*cin)
        bs.append(p["shift"].reshape(cout, 1).astype(jnp.float32))

    # --- host-side spatial padding + overlapping row-band (halo) extraction --
    Hpad = T * TH
    x_pad = jnp.zeros((B, Cin, Hpad + 2 * HALO, Wp), jnp.float32)
    x_pad = x_pad.at[:, :, HALO:HALO + H, 1:1 + W].set(
        context_nchw.astype(jnp.float32))
    row_idx = (jnp.arange(T)[:, None] * TH + jnp.arange(RH)[None, :]).reshape(-1)
    x_tiles = jnp.take(x_pad, row_idx, axis=2)                 # (B, Cin, T*RH, Wp)
    x_tiles = x_tiles.reshape(B, Cin, T, RH, Wp)
    x_tiles = jnp.transpose(x_tiles, (0, 2, 1, 3, 4)).reshape(B, T, Cin, L)

    # --- tiny per-tile helpers (replace the old 9xHW shipped mask tensor) ----
    rowidx = jnp.repeat(jnp.arange(RH, dtype=jnp.int32), Wp)[None, :]     # (1, L)
    col = jnp.tile(jnp.arange(Wp, dtype=jnp.int32), RH)
    colmask = ((col >= 1) & (col <= W)).astype(jnp.float32)[None, :]      # (1, L)

    kernel = _build_kernel(H, TH, RH, Wp)

    in_specs = [
        pl.BlockSpec((None, None, Cin, L), lambda b, t: (b, t, 0, 0)),
        pl.BlockSpec((1, L), lambda b, t: (0, 0)),
        pl.BlockSpec((1, L), lambda b, t: (0, 0)),
    ]
    args = [x_tiles, rowidx, colmask]
    for w2d, b2d in zip(ws, bs):
        in_specs.append(pl.BlockSpec(w2d.shape, lambda b, t: (0, 0)))
        in_specs.append(pl.BlockSpec(b2d.shape, lambda b, t: (0, 0)))
        args.extend([w2d, b2d])

    max_c = max(max(cout for _, _, _, cout in defs), Cin)
    vmem_est = 4 * L * (2 * Cin + 24 * max_c + 8) + 8 * output_dim * TH * Wp
    vmem_limit = int(min(100 * 2 ** 20, max(16 * 2 ** 20, 2 * vmem_est)))

    flops = 2 * B * T * RH * Wp * sum(K * K * cin * cout
                                      for _, K, cin, cout in defs)
    bytes_accessed = (x_tiles.size + B * T * output_dim * TH * Wp) * 4 \
        + sum(int(w.size + b.size) for w, b in zip(ws, bs)) * 4

    out = pl.pallas_call(
        kernel,
        out_shape=jax.ShapeDtypeStruct((B, T, output_dim, TH * Wp), jnp.float32),
        grid=(B, T),
        in_specs=in_specs,
        out_specs=pl.BlockSpec((None, None, output_dim, TH * Wp),
                               lambda b, t: (b, t, 0, 0)),
        compiler_params=pltpu.CompilerParams(
            dimension_semantics=("parallel", "parallel"),
            vmem_limit_bytes=vmem_limit),
        cost_estimate=pl.CostEstimate(flops=int(flops), transcendentals=0,
                                      bytes_accessed=int(bytes_accessed)),
    )(*args)

    # Un-tile, strip row padding + the 1+ zero pad columns.
    out = out.reshape(B, T, output_dim, TH, Wp)
    out = jnp.transpose(out, (0, 2, 1, 3, 4)).reshape(B, output_dim, T * TH, Wp)
    return out[:, :, :H, 1:1 + W]


# -----------------------------------------------------------------------------
# Deterministic parameter construction (conv weight + bias + BN folded)
# -----------------------------------------------------------------------------
def _make_convbn(key, K, cin, cout, has_bias):
    ks = jax.random.split(key, 5)
    w = jax.random.normal(ks[0], (K, K, cin, cout), jnp.float32) / jnp.sqrt(
        float(K * K * cin))
    b = (jax.random.normal(ks[1], (cout,), jnp.float32) * 0.1
         if has_bias else jnp.zeros((cout,), jnp.float32))
    gamma = 1.0 + 0.1 * jax.random.normal(ks[2], (cout,), jnp.float32)
    beta = 0.1 * jax.random.normal(ks[3], (cout,), jnp.float32)
    running_mean = 0.05 * jax.random.normal(ks[4], (cout,), jnp.float32)
    running_var = jnp.ones((cout,), jnp.float32)
    scale = gamma / jnp.sqrt(running_var + BN_EPS)
    shift = beta + (b - running_mean) * scale
    return {"w": w, "scale": scale, "shift": shift}


def init_context_encoder_params(key, input_dim, output_dim):
    defs = _layer_defs(input_dim, output_dim)
    keys = jax.random.split(key, len(defs))
    params = {}
    for (name, K, cin, cout), k in zip(defs, keys):
        # Basic2d(norm): conv bias=False; BasicBlock Conv3x3: bias=True
        params[name] = _make_convbn(k, K, cin, cout, has_bias=(K == 3))
    return params


# -----------------------------------------------------------------------------
# Pure-JAX reference (lax.conv, highest precision) for validation
# -----------------------------------------------------------------------------
def _ref_conv_bn(x, p, ksize, residual=None):
    out = jax.lax.conv_general_dilated(
        x, p["w"], window_strides=(1, 1),
        padding="SAME" if ksize == 3 else "VALID",
        dimension_numbers=("NHWC", "HWIO", "NHWC"),
        precision=jax.lax.Precision.HIGHEST)
    out = out * p["scale"] + p["shift"]
    if residual is not None:
        out = out + residual
    return jnp.maximum(out, 0.0)


def context_encoder_reference(params, context_nchw):
    x = jnp.transpose(context_nchw, (0, 2, 3, 1))
    f1 = _ref_conv_bn(x, params["convf1"], 1)
    t = _ref_conv_bn(f1, params["ref1_1"], 3)
    f1 = _ref_conv_bn(t, params["ref1_2"], 3, residual=f1)
    f2 = _ref_conv_bn(f1, params["convf2"], 1)
    t = _ref_conv_bn(f2, params["ref2_1"], 3)
    f2 = _ref_conv_bn(t, params["ref2_2"], 3, residual=f2)
    return jnp.transpose(f2, (0, 3, 1, 2))


if __name__ == "__main__":
    B, INPUT_DIM, OUTPUT_DIM, H, W = 2, 8, 4, 16, 16

    key = jax.random.PRNGKey(0)
    k_par, k_in = jax.random.split(key)
    params = init_context_encoder_params(k_par, INPUT_DIM, OUTPUT_DIM)
    context = jax.random.normal(k_in, (B, INPUT_DIM, H, W), jnp.float32)

    # tile_rows=8 -> two row tiles per image: exercises the halo/tiling path.
    out = context_encoder_forward(params, context, tile_rows=8)
    out = jax.block_until_ready(out)

    ref = jax.block_until_ready(context_encoder_reference(params, context))
    assert out.shape == (B, OUTPUT_DIM, H, W), out.shape
    # 1e-2 tolerance leaves headroom for MXU f32 rounding vs the conv reference;
    # halo/mask bugs produce errors orders of magnitude larger.
    max_err = float(jnp.max(jnp.abs(out - ref)))
    assert jnp.allclose(out, ref, rtol=1e-2, atol=1e-2), max_err

    print("KERNEL_OK")
</pallas_src>

<mosaic_0001>
module attributes {stable_mosaic.version = 11 : i64} {
  func.func @kernel(%arg0: i32, %arg1: i32, %arg2: memref<1x1x8x2048xf32, #tpu.memory_space<vmem>>, %arg3: memref<1x2048xi32, #tpu.memory_space<vmem>>, %arg4: memref<1x2048xf32, #tpu.memory_space<vmem>>, %arg5: memref<4x8xf32, #tpu.memory_space<vmem>>, %arg6: memref<4x1xf32, #tpu.memory_space<vmem>>, %arg7: memref<4x36xf32, #tpu.memory_space<vmem>>, %arg8: memref<4x1xf32, #tpu.memory_space<vmem>>, %arg9: memref<4x36xf32, #tpu.memory_space<vmem>>, %arg10: memref<4x1xf32, #tpu.memory_space<vmem>>, %arg11: memref<4x4xf32, #tpu.memory_space<vmem>>, %arg12: memref<4x1xf32, #tpu.memory_space<vmem>>, %arg13: memref<4x36xf32, #tpu.memory_space<vmem>>, %arg14: memref<4x1xf32, #tpu.memory_space<vmem>>, %arg15: memref<4x36xf32, #tpu.memory_space<vmem>>, %arg16: memref<4x1xf32, #tpu.memory_space<vmem>>, %arg17: memref<1x1x4x1024xf32, #tpu.memory_space<vmem>>) attributes {dimension_semantics = [#tpu.dimension_semantics<parallel>, #tpu.dimension_semantics<parallel>], iteration_bounds = array<i64: 2, 2>, scalar_prefetch = 0 : i64, scratch_operands = 0 : i64, tpu.core_type = #tpu.core_type<tc>, window_params = [{transform_indices = @transform_0, window_bounds = array<i64: 1, 1, 8, 2048>}, {pipeline_mode = #tpu.pipeline_mode<synchronous>, transform_indices = @transform_1, window_bounds = array<i64: 1, 2048>}, {pipeline_mode = #tpu.pipeline_mode<synchronous>, transform_indices = @transform_2, window_bounds = array<i64: 1, 2048>}, {pipeline_mode = #tpu.pipeline_mode<synchronous>, transform_indices = @transform_3, window_bounds = array<i64: 4, 8>}, {pipeline_mode = #tpu.pipeline_mode<synchronous>, transform_indices = @transform_4, window_bounds = array<i64: 4, 1>}, {pipeline_mode = #tpu.pipeline_mode<synchronous>, transform_indices = @transform_5, window_bounds = array<i64: 4, 36>}, {pipeline_mode = #tpu.pipeline_mode<synchronous>, transform_indices = @transform_6, window_bounds = array<i64: 4, 1>}, {pipeline_mode = #tpu.pipeline_mode<synchronous>, transform_indices = @transform_7, window_bounds = array<i64: 4, 36>}, {pipeline_mode = #tpu.pipeline_mode<synchronous>, transform_indices = @transform_8, window_bounds = array<i64: 4, 1>}, {pipeline_mode = #tpu.pipeline_mode<synchronous>, transform_indices = @transform_9, window_bounds = array<i64: 4, 4>}, {pipeline_mode = #tpu.pipeline_mode<synchronous>, transform_indices = @transform_10, window_bounds = array<i64: 4, 1>}, {pipeline_mode = #tpu.pipeline_mode<synchronous>, transform_indices = @transform_11, window_bounds = array<i64: 4, 36>}, {pipeline_mode = #tpu.pipeline_mode<synchronous>, transform_indices = @transform_12, window_bounds = array<i64: 4, 1>}, {pipeline_mode = #tpu.pipeline_mode<synchronous>, transform_indices = @transform_13, window_bounds = array<i64: 4, 36>}, {pipeline_mode = #tpu.pipeline_mode<synchronous>, transform_indices = @transform_14, window_bounds = array<i64: 4, 1>}, {transform_indices = @transform_15, window_bounds = array<i64: 1, 1, 4, 1024>}]} {
    %c0 = arith.constant 0 : index
    %c0_0 = arith.constant 0 : index
    %0 = vector.load %arg3[%c0, %c0_0] : memref<1x2048xi32, #tpu.memory_space<vmem>>, vector<1x2048xi32>
    %c8_i32 = arith.constant 8 : i32
    %1 = arith.muli %arg1, %c8_i32 : i32
    %c4_i32 = arith.constant 4 : i32
    %2 = arith.subi %1, %c4_i32 : i32
    %3 = vector.broadcast %2 : i32 to vector<1x2048xi32>
    %4 = arith.addi %0, %3 : vector<1x2048xi32>
    %c0_i32 = arith.constant 0 : i32
    %5 = vector.broadcast %c0_i32 : i32 to vector<1x2048xi32>
    %6 = arith.cmpi sge, %4, %5 : vector<1x2048xi32>
    %c16_i32 = arith.constant 16 : i32
    %7 = vector.broadcast %c16_i32 : i32 to vector<1x2048xi32>
    %8 = arith.cmpi slt, %4, %7 : vector<1x2048xi32>
    %9 = arith.andi %6, %8 : vector<1x2048xi1>
    %c0_1 = arith.constant 0 : index
    %c0_2 = arith.constant 0 : index
    %10 = vector.load %arg4[%c0_1, %c0_2] : memref<1x2048xf32, #tpu.memory_space<vmem>>, vector<1x2048xf32>
    %cst = arith.constant 0.000000e+00 : f32
    %11 = vector.broadcast %cst : f32 to vector<1x2048xf32>
    %12 = arith.select %9, %10, %11 : vector<1x2048xi1>, vector<1x2048xf32>
    %c0_3 = arith.constant 0 : index
    %c0_4 = arith.constant 0 : index
    %c0_5 = arith.constant 0 : index
    %c0_6 = arith.constant 0 : index
    %13 = vector.load %arg2[%c0_3, %c0_4, %c0_5, %c0_6] : memref<1x1x8x2048xf32, #tpu.memory_space<vmem>>, vector<1x1x8x2048xf32>
    %14 = vector.shape_cast %13 : vector<1x1x8x2048xf32> to vector<8x2048xf32>
    %c0_7 = arith.constant 0 : index
    %c0_8 = arith.constant 0 : index
    %15 = vector.load %arg5[%c0_7, %c0_8] : memref<4x8xf32, #tpu.memory_space<vmem>>, vector<4x8xf32>
    %cst_9 = arith.constant dense<0.000000e+00> : vector<4x2048xf32>
    %16 = tpu.matmul %15, %14, %cst_9 {dimension_numbers = #tpu.dot_dimension_numbers<[1], [0], [0], [1], [0, 0, 1, 1], [], []>} : vector<4x8xf32>, vector<8x2048xf32>, vector<4x2048xf32> -> vector<4x2048xf32>
    %c0_10 = arith.constant 0 : index
    %c0_11 = arith.constant 0 : index
    %17 = vector.load %arg6[%c0_10, %c0_11] : memref<4x1xf32, #tpu.memory_space<vmem>>, vector<4x1xf32>
    %18 = vector.broadcast %17 : vector<4x1xf32> to vector<4x2048xf32>
    %19 = arith.addf %16, %18 : vector<4x2048xf32>
    %cst_12 = arith.constant 0.000000e+00 : f32
    %20 = vector.broadcast %cst_12 : f32 to vector<4x2048xf32>
    %21 = arith.maximumf %19, %20 : vector<4x2048xf32>
    %22 = vector.broadcast %12 : vector<1x2048xf32> to vector<4x2048xf32>
    %23 = arith.mulf %21, %22 : vector<4x2048xf32>
    %c129_i32 = arith.constant 129 : i32
    %24 = tpu.dynamic_rotate %23 by %c129_i32 dim 1 : vector<4x2048xf32>, i32 -> vector<4x2048xf32>
    %c128_i32 = arith.constant 128 : i32
    %25 = tpu.dynamic_rotate %23 by %c128_i32 dim 1 : vector<4x2048xf32>, i32 -> vector<4x2048xf32>
    %c127_i32 = arith.constant 127 : i32
    %26 = tpu.dynamic_rotate %23 by %c127_i32 dim 1 : vector<4x2048xf32>, i32 -> vector<4x2048xf32>
    %c1_i32 = arith.constant 1 : i32
    %27 = tpu.dynamic_rotate %23 by %c1_i32 dim 1 : vector<4x2048xf32>, i32 -> vector<4x2048xf32>
    %c2047_i32 = arith.constant 2047 : i32
    %28 = tpu.dynamic_rotate %23 by %c2047_i32 dim 1 : vector<4x2048xf32>, i32 -> vector<4x2048xf32>
    %c1921_i32 = arith.constant 1921 : i32
    %29 = tpu.dynamic_rotate %23 by %c1921_i32 dim 1 : vector<4x2048xf32>, i32 -> vector<4x2048xf32>
    %c1920_i32 = arith.constant 1920 : i32
    %30 = tpu.dynamic_rotate %23 by %c1920_i32 dim 1 : vector<4x2048xf32>, i32 -> vector<4x2048xf32>
    %c1919_i32 = arith.constant 1919 : i32
    %31 = tpu.dynamic_rotate %23 by %c1919_i32 dim 1 : vector<4x2048xf32>, i32 -> vector<4x2048xf32>
    %32 = tpu.concatenate %24, %25, %26, %27, %23, %28, %29, %30, %31 in 0 : vector<4x2048xf32>, vector<4x2048xf32>, vector<4x2048xf32>, vector<4x2048xf32>, vector<4x2048xf32>, vector<4x2048xf32>, vector<4x2048xf32>, vector<4x2048xf32>, vector<4x2048xf32> -> vector<36x2048xf32>
    %c0_13 = arith.constant 0 : index
    %c0_14 = arith.constant 0 : index
    %33 = vector.load %arg7[%c0_13, %c0_14] : memref<4x36xf32, #tpu.memory_space<vmem>>, vector<4x36xf32>
    %cst_15 = arith.constant dense<0.000000e+00> : vector<4x2048xf32>
    %34 = tpu.matmul %33, %32, %cst_15 {dimension_numbers = #tpu.dot_dimension_numbers<[1], [0], [0], [1], [0, 0, 1, 1], [], []>} : vector<4x36xf32>, vector<36x2048xf32>, vector<4x2048xf32> -> vector<4x2048xf32>
    %c0_16 = arith.constant 0 : index
    %c0_17 = arith.constant 0 : index
    %35 = vector.load %arg8[%c0_16, %c0_17] : memref<4x1xf32, #tpu.memory_space<vmem>>, vector<4x1xf32>
    %36 = vector.broadcast %35 : vector<4x1xf32> to vector<4x2048xf32>
    %37 = arith.addf %34, %36 : vector<4x2048xf32>
    %cst_18 = arith.constant 0.000000e+00 : f32
    %38 = vector.broadcast %cst_18 : f32 to vector<4x2048xf32>
    %39 = arith.maximumf %37, %38 : vector<4x2048xf32>
    %40 = vector.broadcast %12 : vector<1x2048xf32> to vector<4x2048xf32>
    %41 = arith.mulf %39, %40 : vector<4x2048xf32>
    %c129_i32_19 = arith.constant 129 : i32
    %42 = tpu.dynamic_rotate %41 by %c129_i32_19 dim 1 : vector<4x2048xf32>, i32 -> vector<4x2048xf32>
    %c128_i32_20 = arith.constant 128 : i32
    %43 = tpu.dynamic_rotate %41 by %c128_i32_20 dim 1 : vector<4x2048xf32>, i32 -> vector<4x2048xf32>
    %c127_i32_21 = arith.constant 127 : i32
    %44 = tpu.dynamic_rotate %41 by %c127_i32_21 dim 1 : vector<4x2048xf32>, i32 -> vector<4x2048xf32>
    %c1_i32_22 = arith.constant 1 : i32
    %45 = tpu.dynamic_rotate %41 by %c1_i32_22 dim 1 : vector<4x2048xf32>, i32 -> vector<4x2048xf32>
    %c2047_i32_23 = arith.constant 2047 : i32
    %46 = tpu.dynamic_rotate %41 by %c2047_i32_23 dim 1 : vector<4x2048xf32>, i32 -> vector<4x2048xf32>
    %c1921_i32_24 = arith.constant 1921 : i32
    %47 = tpu.dynamic_rotate %41 by %c1921_i32_24 dim 1 : vector<4x2048xf32>, i32 -> vector<4x2048xf32>
    %c1920_i32_25 = arith.constant 1920 : i32
    %48 = tpu.dynamic_rotate %41 by %c1920_i32_25 dim 1 : vector<4x2048xf32>, i32 -> vector<4x2048xf32>
    %c1919_i32_26 = arith.constant 1919 : i32
    %49 = tpu.dynamic_rotate %41 by %c1919_i32_26 dim 1 : vector<4x2048xf32>, i32 -> vector<4x2048xf32>
    %50 = tpu.concatenate %42, %43, %44, %45, %41, %46, %47, %48, %49 in 0 : vector<4x2048xf32>, vector<4x2048xf32>, vector<4x2048xf32>, vector<4x2048xf32>, vector<4x2048xf32>, vector<4x2048xf32>, vector<4x2048xf32>, vector<4x2048xf32>, vector<4x2048xf32> -> vector<36x2048xf32>
    %c0_27 = arith.constant 0 : index
    %c0_28 = arith.constant 0 : index
    %51 = vector.load %arg9[%c0_27, %c0_28] : memref<4x36xf32, #tpu.memory_space<vmem>>, vector<4x36xf32>
    %cst_29 = arith.constant dense<0.000000e+00> : vector<4x2048xf32>
    %52 = tpu.matmul %51, %50, %cst_29 {dimension_numbers = #tpu.dot_dimension_numbers<[1], [0], [0], [1], [0, 0, 1, 1], [], []>} : vector<4x36xf32>, vector<36x2048xf32>, vector<4x2048xf32> -> vector<4x2048xf32>
    %c0_30 = arith.constant 0 : index
    %c0_31 = arith.constant 0 : index
    %53 = vector.load %arg10[%c0_30, %c0_31] : memref<4x1xf32, #tpu.memory_space<vmem>>, vector<4x1xf32>
    %54 = vector.broadcast %53 : vector<4x1xf32> to vector<4x2048xf32>
    %55 = arith.addf %52, %54 : vector<4x2048xf32>
    %56 = arith.addf %55, %23 : vector<4x2048xf32>
    %cst_32 = arith.constant 0.000000e+00 : f32
    %57 = vector.broadcast %cst_32 : f32 to vector<4x2048xf32>
    %58 = arith.maximumf %56, %57 : vector<4x2048xf32>
    %c0_33 = arith.constant 0 : index
    %c0_34 = arith.constant 0 : index
    %59 = vector.load %arg11[%c0_33, %c0_34] : memref<4x4xf32, #tpu.memory_space<vmem>>, vector<4x4xf32>
    %cst_35 = arith.constant dense<0.000000e+00> : vector<4x2048xf32>
    %60 = tpu.matmul %59, %58, %cst_35 {dimension_numbers = #tpu.dot_dimension_numbers<[1], [0], [0], [1], [0, 0, 1, 1], [], []>} : vector<4x4xf32>, vector<4x2048xf32>, vector<4x2048xf32> -> vector<4x2048xf32>
    %c0_36 = arith.constant 0 : index
    %c0_37 = arith.constant 0 : index
    %61 = vector.load %arg12[%c0_36, %c0_37] : memref<4x1xf32, #tpu.memory_space<vmem>>, vector<4x1xf32>
    %62 = vector.broadcast %61 : vector<4x1xf32> to vector<4x2048xf32>
    %63 = arith.addf %60, %62 : vector<4x2048xf32>
    %cst_38 = arith.constant 0.000000e+00 : f32
    %64 = vector.broadcast %cst_38 : f32 to vector<4x2048xf32>
    %65 = arith.maximumf %63, %64 : vector<4x2048xf32>
    %66 = vector.broadcast %12 : vector<1x2048xf32> to vector<4x2048xf32>
    %67 = arith.mulf %65, %66 : vector<4x2048xf32>
    %c129_i32_39 = arith.constant 129 : i32
    %68 = tpu.dynamic_rotate %67 by %c129_i32_39 dim 1 : vector<4x2048xf32>, i32 -> vector<4x2048xf32>
    %c128_i32_40 = arith.constant 128 : i32
    %69 = tpu.dynamic_rotate %67 by %c128_i32_40 dim 1 : vector<4x2048xf32>, i32 -> vector<4x2048xf32>
    %c127_i32_41 = arith.constant 127 : i32
    %70 = tpu.dynamic_rotate %67 by %c127_i32_41 dim 1 : vector<4x2048xf32>, i32 -> vector<4x2048xf32>
    %c1_i32_42 = arith.constant 1 : i32
    %71 = tpu.dynamic_rotate %67 by %c1_i32_42 dim 1 : vector<4x2048xf32>, i32 -> vector<4x2048xf32>
    %c2047_i32_43 = arith.constant 2047 : i32
    %72 = tpu.dynamic_rotate %67 by %c2047_i32_43 dim 1 : vector<4x2048xf32>, i32 -> vector<4x2048xf32>
    %c1921_i32_44 = arith.constant 1921 : i32
    %73 = tpu.dynamic_rotate %67 by %c1921_i32_44 dim 1 : vector<4x2048xf32>, i32 -> vector<4x2048xf32>
    %c1920_i32_45 = arith.constant 1920 : i32
    %74 = tpu.dynamic_rotate %67 by %c1920_i32_45 dim 1 : vector<4x2048xf32>, i32 -> vector<4x2048xf32>
    %c1919_i32_46 = arith.constant 1919 : i32
    %75 = tpu.dynamic_rotate %67 by %c1919_i32_46 dim 1 : vector<4x2048xf32>, i32 -> vector<4x2048xf32>
    %76 = tpu.concatenate %68, %69, %70, %71, %67, %72, %73, %74, %75 in 0 : vector<4x2048xf32>, vector<4x2048xf32>, vector<4x2048xf32>, vector<4x2048xf32>, vector<4x2048xf32>, vector<4x2048xf32>, vector<4x2048xf32>, vector<4x2048xf32>, vector<4x2048xf32> -> vector<36x2048xf32>
    %c0_47 = arith.constant 0 : index
    %c0_48 = arith.constant 0 : index
    %77 = vector.load %arg13[%c0_47, %c0_48] : memref<4x36xf32, #tpu.memory_space<vmem>>, vector<4x36xf32>
    %cst_49 = arith.constant dense<0.000000e+00> : vector<4x2048xf32>
    %78 = tpu.matmul %77, %76, %cst_49 {dimension_numbers = #tpu.dot_dimension_numbers<[1], [0], [0], [1], [0, 0, 1, 1], [], []>} : vector<4x36xf32>, vector<36x2048xf32>, vector<4x2048xf32> -> vector<4x2048xf32>
    %c0_50 = arith.constant 0 : index
    %c0_51 = arith.constant 0 : index
    %79 = vector.load %arg14[%c0_50, %c0_51] : memref<4x1xf32, #tpu.memory_space<vmem>>, vector<4x1xf32>
    %80 = vector.broadcast %79 : vector<4x1xf32> to vector<4x2048xf32>
    %81 = arith.addf %78, %80 : vector<4x2048xf32>
    %cst_52 = arith.constant 0.000000e+00 : f32
    %82 = vector.broadcast %cst_52 : f32 to vector<4x2048xf32>
    %83 = arith.maximumf %81, %82 : vector<4x2048xf32>
    %84 = vector.broadcast %12 : vector<1x2048xf32> to vector<4x2048xf32>
    %85 = arith.mulf %83, %84 : vector<4x2048xf32>
    %c129_i32_53 = arith.constant 129 : i32
    %86 = tpu.dynamic_rotate %85 by %c129_i32_53 dim 1 : vector<4x2048xf32>, i32 -> vector<4x2048xf32>
    %c128_i32_54 = arith.constant 128 : i32
    %87 = tpu.dynamic_rotate %85 by %c128_i32_54 dim 1 : vector<4x2048xf32>, i32 -> vector<4x2048xf32>
    %c127_i32_55 = arith.constant 127 : i32
    %88 = tpu.dynamic_rotate %85 by %c127_i32_55 dim 1 : vector<4x2048xf32>, i32 -> vector<4x2048xf32>
    %c1_i32_56 = arith.constant 1 : i32
    %89 = tpu.dynamic_rotate %85 by %c1_i32_56 dim 1 : vector<4x2048xf32>, i32 -> vector<4x2048xf32>
    %c2047_i32_57 = arith.constant 2047 : i32
    %90 = tpu.dynamic_rotate %85 by %c2047_i32_57 dim 1 : vector<4x2048xf32>, i32 -> vector<4x2048xf32>
    %c1921_i32_58 = arith.constant 1921 : i32
    %91 = tpu.dynamic_rotate %85 by %c1921_i32_58 dim 1 : vector<4x2048xf32>, i32 -> vector<4x2048xf32>
    %c1920_i32_59 = arith.constant 1920 : i32
    %92 = tpu.dynamic_rotate %85 by %c1920_i32_59 dim 1 : vector<4x2048xf32>, i32 -> vector<4x2048xf32>
    %c1919_i32_60 = arith.constant 1919 : i32
    %93 = tpu.dynamic_rotate %85 by %c1919_i32_60 dim 1 : vector<4x2048xf32>, i32 -> vector<4x2048xf32>
    %94 = tpu.concatenate %86, %87, %88, %89, %85, %90, %91, %92, %93 in 0 : vector<4x2048xf32>, vector<4x2048xf32>, vector<4x2048xf32>, vector<4x2048xf32>, vector<4x2048xf32>, vector<4x2048xf32>, vector<4x2048xf32>, vector<4x2048xf32>, vector<4x2048xf32> -> vector<36x2048xf32>
    %c0_61 = arith.constant 0 : index
    %c0_62 = arith.constant 0 : index
    %95 = vector.load %arg15[%c0_61, %c0_62] : memref<4x36xf32, #tpu.memory_space<vmem>>, vector<4x36xf32>
    %cst_63 = arith.constant dense<0.000000e+00> : vector<4x2048xf32>
    %96 = tpu.matmul %95, %94, %cst_63 {dimension_numbers = #tpu.dot_dimension_numbers<[1], [0], [0], [1], [0, 0, 1, 1], [], []>} : vector<4x36xf32>, vector<36x2048xf32>, vector<4x2048xf32> -> vector<4x2048xf32>
    %c0_64 = arith.constant 0 : index
    %c0_65 = arith.constant 0 : index
    %97 = vector.load %arg16[%c0_64, %c0_65] : memref<4x1xf32, #tpu.memory_space<vmem>>, vector<4x1xf32>
    %98 = vector.broadcast %97 : vector<4x1xf32> to vector<4x2048xf32>
    %99 = arith.addf %96, %98 : vector<4x2048xf32>
    %100 = arith.addf %99, %67 : vector<4x2048xf32>
    %cst_66 = arith.constant 0.000000e+00 : f32
    %101 = vector.broadcast %cst_66 : f32 to vector<4x2048xf32>
    %102 = arith.maximumf %100, %101 : vector<4x2048xf32>
    %103 = vector.extract_strided_slice %102 {offsets = [0, 512], sizes = [4, 1024], strides = [1, 1]} : vector<4x2048xf32> to vector<4x1024xf32>
    %c0_67 = arith.constant 0 : index
    %c0_68 = arith.constant 0 : index
    %c0_69 = arith.constant 0 : index
    %c0_70 = arith.constant 0 : index
    %104 = vector.load %arg17[%c0_67, %c0_68, %c0_69, %c0_70] : memref<1x1x4x1024xf32, #tpu.memory_space<vmem>>, vector<1x1x4x1024xf32>
    %105 = vector.shape_cast %104 : vector<1x1x4x1024xf32> to vector<4x1024xf32>
    %106 = vector.shape_cast %103 : vector<4x1024xf32> to vector<1x1x4x1024xf32>
    tpu.vector_store %arg17[%c0_67, %c0_68, %c0_69, %c0_70], %106 {strides = array<i32>} : memref<1x1x4x1024xf32, #tpu.memory_space<vmem>>, vector<1x1x4x1024xf32>,
    return
  }
  func.func @transform_0(%arg0: i32, %arg1: i32) -> (i32, i32, i32, i32) {
    %c0_i32 = arith.constant 0 : i32
    %c0_i32_0 = arith.constant 0 : i32
    %c0_i32_1 = arith.constant 0 : i32
    return %arg0, %arg1, %c0_i32, %c0_i32_0 : i32, i32, i32, i32
  }
  func.func @transform_1(%arg0: i32, %arg1: i32) -> (i32, i32) {
    %c0_i32 = arith.constant 0 : i32
    %c0_i32_0 = arith.constant 0 : i32
    %c0_i32_1 = arith.constant 0 : i32
    return %c0_i32, %c0_i32_0 : i32, i32
  }
  func.func @transform_2(%arg0: i32, %arg1: i32) -> (i32, i32) {
    %c0_i32 = arith.constant 0 : i32
    %c0_i32_0 = arith.constant 0 : i32
    %c0_i32_1 = arith.constant 0 : i32
    return %c0_i32, %c0_i32_0 : i32, i32
  }
  func.func @transform_3(%arg0: i32, %arg1: i32) -> (i32, i32) {
    %c0_i32 = arith.constant 0 : i32
    %c0_i32_0 = arith.constant 0 : i32
    %c0_i32_1 = arith.constant 0 : i32
    return %c0_i32, %c0_i32_0 : i32, i32
  }
  func.func @transform_4(%arg0: i32, %arg1: i32) -> (i32, i32) {
    %c0_i32 = arith.constant 0 : i32
    %c0_i32_0 = arith.constant 0 : i32
    %c0_i32_1 = arith.constant 0 : i32
    return %c0_i32, %c0_i32_0 : i32, i32
  }
  func.func @transform_5(%arg0: i32, %arg1: i32) -> (i32, i32) {
    %c0_i32 = arith.constant 0 : i32
    %c0_i32_0 = arith.constant 0 : i32
    %c0_i32_1 = arith.constant 0 : i32
    return %c0_i32, %c0_i32_0 : i32, i32
  }
  func.func @transform_6(%arg0: i32, %arg1: i32) -> (i32, i32) {
    %c0_i32 = arith.constant 0 : i32
    %c0_i32_0 = arith.constant 0 : i32
    %c0_i32_1 = arith.constant 0 : i32
    return %c0_i32, %c0_i32_0 : i32, i32
  }
  func.func @transform_7(%arg0: i32, %arg1: i32) -> (i32, i32) {
    %c0_i32 = arith.constant 0 : i32
    %c0_i32_0 = arith.constant 0 : i32
    %c0_i32_1 = arith.constant 0 : i32
    return %c0_i32, %c0_i32_0 : i32, i32
  }
  func.func @transform_8(%arg0: i32, %arg1: i32) -> (i32, i32) {
    %c0_i32 = arith.constant 0 : i32
    %c0_i32_0 = arith.constant 0 : i32
    %c0_i32_1 = arith.constant 0 : i32
    return %c0_i32, %c0_i32_0 : i32, i32
  }
  func.func @transform_9(%arg0: i32, %arg1: i32) -> (i32, i32) {
    %c0_i32 = arith.constant 0 : i32
    %c0_i32_0 = arith.constant 0 : i32
    %c0_i32_1 = arith.constant 0 : i32
    return %c0_i32, %c0_i32_0 : i32, i32
  }
  func.func @transform_10(%arg0: i32, %arg1: i32) -> (i32, i32) {
    %c0_i32 = arith.constant 0 : i32
    %c0_i32_0 = arith.constant 0 : i32
    %c0_i32_1 = arith.constant 0 : i32
    return %c0_i32, %c0_i32_0 : i32, i32
  }
  func.func @transform_11(%arg0: i32, %arg1: i32) -> (i32, i32) {
    %c0_i32 = arith.constant 0 : i32
    %c0_i32_0 = arith.constant 0 : i32
    %c0_i32_1 = arith.constant 0 : i32
    return %c0_i32, %c0_i32_0 : i32, i32
  }
  func.func @transform_12(%arg0: i32, %arg1: i32) -> (i32, i32) {
    %c0_i32 = arith.constant 0 : i32
    %c0_i32_0 = arith.constant 0 : i32
    %c0_i32_1 = arith.constant 0 : i32
    return %c0_i32, %c0_i32_0 : i32, i32
  }
  func.func @transform_13(%arg0: i32, %arg1: i32) -> (i32, i32) {
    %c0_i32 = arith.constant 0 : i32
    %c0_i32_0 = arith.constant 0 : i32
    %c0_i32_1 = arith.constant 0 : i32
    return %c0_i32, %c0_i32_0 : i32, i32
  }
  func.func @transform_14(%arg0: i32, %arg1: i32) -> (i32, i32) {
    %c0_i32 = arith.constant 0 : i32
    %c0_i32_0 = arith.constant 0 : i32
    %c0_i32_1 = arith.constant 0 : i32
    return %c0_i32, %c0_i32_0 : i32, i32
  }
  func.func @transform_15(%arg0: i32, %arg1: i32) -> (i32, i32, i32, i32) {
    %c0_i32 = arith.constant 0 : i32
    %c0_i32_0 = arith.constant 0 : i32
    %c0_i32_1 = arith.constant 0 : i32
    return %arg0, %arg1, %c0_i32, %c0_i32_0 : i32, i32, i32, i32
  }
}

</mosaic_0001>

<llo_original>
// kernel: tpu_custom_call.1
$region0: #{tpu_custom_call.1}
  #allocation0 [shape = 'u32[]', space=smem, size = 0x4, offset = 0x4, fixed_abs, tag = 'smem constant byte address 0x4 - core index']
  #allocation1 [shape = 'u32[72,128]{1,0:T(1,128)}', space=vmem, size = 0x9000, scoped, tag = 'internal scratch']
  %s0 = inlined_call_operand.hbm [shape: f32[2,2,8,2048], index: 0, kind: input, shape index: {}]
  %s1 = inlined_call_operand.vmem [shape: s32[1,2048], index: 1, kind: input, shape index: {}]
  %s2 = inlined_call_operand.hbm [shape: f32[1,2048], index: 2, kind: input, shape index: {}]
  %s3 = inlined_call_operand.vmem [shape: f32[4,8], index: 3, kind: input, shape index: {}]
  %s4 = inlined_call_operand.vmem [shape: f32[4,1], index: 4, kind: input, shape index: {}]
  %s5 = inlined_call_operand.vmem [shape: f32[4,36], index: 5, kind: input, shape index: {}]
  %s6 = inlined_call_operand.vmem [shape: f32[4,1], index: 6, kind: input, shape index: {}]
  %s7 = inlined_call_operand.vmem [shape: f32[4,36], index: 7, kind: input, shape index: {}]
  %s8 = inlined_call_operand.vmem [shape: f32[4,1], index: 8, kind: input, shape index: {}]
  %s9 = inlined_call_operand.vmem [shape: f32[4,4], index: 9, kind: input, shape index: {}]
  %s10 = inlined_call_operand.vmem [shape: f32[4,1], index: 10, kind: input, shape index: {}]
  %s11 = inlined_call_operand.vmem [shape: f32[4,36], index: 11, kind: input, shape index: {}]
  %s12 = inlined_call_operand.vmem [shape: f32[4,1], index: 12, kind: input, shape index: {}]
  %s13 = inlined_call_operand.vmem [shape: f32[4,36], index: 13, kind: input, shape index: {}]
  %s14 = inlined_call_operand.vmem [shape: f32[4,1], index: 14, kind: input, shape index: {}]
  %s15 = inlined_call_operand.hbm [shape: f32[2,2,4,1024], index: 15, kind: output, shape index: {}]
  %s16 = sld [smem:[#allocation0]]
  $region101: #{tpu_custom_call.1} parent=0
    _
  %s18 = ssub.s32 1, %s16
  %s19 = scalar_select 0, %s18, %s16
  $region1: #{tpu_custom_call.1} parent=0
    #allocation2 [shape = 'u8[131072]{0}', space=vmem, size = 0x20000, scoped, tag = 'input window, operand 0']
    #allocation3 [shape = 's32[2]{0}', space=sflag, size = 0x8, scoped, tag = 'scoped memory for tpu_custom_call.1']
    #allocation4 [shape = 's32[2]{0}', space=sflag, size = 0x8, scoped, tag = 'scoped memory for tpu_custom_call.1']
    #allocation5 [shape = 'u8[8192]{0}', space=vmem, size = 0x2000, scoped, tag = 'input window, operand 2, single buffered']
    #allocation6 [shape = 's32[1]{0}', space=sflag, size = 0x4, scoped, tag = 'scoped memory for tpu_custom_call.1']
    #allocation7 [shape = 'u8[32768]{0}', space=vmem, size = 0x8000, scoped, tag = 'output window, operand 0']
    %20 = vsyncpa [#allocation3], 0
    %s21 = scalar_lea.sflag [#allocation3], 1
    %22 = vsyncpa %s21, 0
    %23 = vsyncpa [#allocation6], 0
    %24 = vsyncpa [#allocation4], 0
    %s25 = scalar_lea.sflag [#allocation4], 1
    %26 = vsyncpa %s25, 0
    loop: start=0, step=1, limit=6
    $region2: #{tpu_custom_call.1} parent=1 // loop_pre_header
      _
    $region3: #{tpu_custom_call.1} parent=1 // loop_header
      %s28 = sphi 0, %s32
      %p29 = scmp.ge.s32.totalorder %s28, 6
      %s35 = sphi 0, %s47
      %s36 = sphi 0, %s43
      %s37 = sphi 0, %s35
      %s38 = sphi 0, %s36
      %s39 = sphi 0, %s37
      %s40 = sphi 0, %s38
      %s52 = sphi 0, %s54
      %s55 = sphi 0, %s52
      %s56 = sphi 0, %s55
      %s72 = sphi 0, %s56
      %s76 = sphi 0, %s76
      %s78 = sphi 0, %s76
      %s79 = sphi 0, %s78
      %s93 = sphi 0, %s79
      %s97 = sphi 0, %s97
      %s99 = sphi 0, %s97
      %s100 = sphi 0, %s99
      %s114 = sphi 0, %s100
      %s118 = sphi 0, %s118
      %s120 = sphi 0, %s118
      %s121 = sphi 0, %s120
      %s135 = sphi 0, %s121
      %s139 = sphi 0, %s139
      %s141 = sphi 0, %s139
      %s142 = sphi 0, %s141
      %s156 = sphi 0, %s142
      %s160 = sphi 0, %s160
      %s162 = sphi 0, %s160
      %s163 = sphi 0, %s162
      %s177 = sphi 0, %s163
      %s181 = sphi 0, %s181
      %s183 = sphi 0, %s181
      %s184 = sphi 0, %s183
      %s198 = sphi 0, %s184
      %s202 = sphi 0, %s202
      %s204 = sphi 0, %s202
      %s205 = sphi 0, %s204
      %s219 = sphi 0, %s205
      %s223 = sphi 0, %s223
      %s225 = sphi 0, %s223
      %s226 = sphi 0, %s225
      %s240 = sphi 0, %s226
      %s244 = sphi 0, %s244
      %s246 = sphi 0, %s244
      %s247 = sphi 0, %s246
      %s261 = sphi 0, %s247
      %s265 = sphi 0, %s265
      %s267 = sphi 0, %s265
      %s268 = sphi 0, %s267
      %s282 = sphi 0, %s268
      %s286 = sphi 0, %s286
      %s288 = sphi 0, %s286
      %s289 = sphi 0, %s288
      %s303 = sphi 0, %s289
      %s307 = sphi 0, %s307
      %s309 = sphi 0, %s307
      %s310 = sphi 0, %s309
      %s324 = sphi 0, %s310
      %s328 = sphi 0, %s328
      %s330 = sphi 0, %s328
      %s331 = sphi 0, %s330
      %s345 = sphi 0, %s331
      %s349 = sphi 0, %s349
      %s351 = sphi 0, %s349
      %s352 = sphi 0, %s351
      %s366 = sphi 0, %s352
      %s374 = sphi 0, %s376
      %s377 = sphi 0, %s374
      %s378 = sphi 0, %s377
      %s394 = sphi 0, %s378
    $region4: #{tpu_custom_call.1} parent=1 // loop_header_branch
      %31 = sbr.rel (%p29) target = $region8
    $region5: #{tpu_custom_call.1} parent=1 // loop_body
      %s33 = ssub.s32 %s28, 1
      %s34 = ssub.s32 %s28, 2
      %s41 = sadd.s32 1, %s36
      %p42 = scmp.ge.s32.totalorder %s41, 2
      %s43 = scalar_select %p42, 0, %s41
      %s44 = sadd.s32 1, %s35
      %s45 = scalar_select %p42, %s44, %s35
      %p46 = scmp.ge.s32.totalorder %s45, 2
      %s47 = scalar_select %p46, 0, %s45
      %s48 = ssub.s32 %s35, %s47
      %s49 = ssub.s32 %s36, %s43
      %s50 = sor.u32 %s48, %s49
      %p51 = scmp.eq.s32.totalorder %s50, 0
      %s53 = sadd.s32 %s52, 1
      %s54 = scalar_select %p51, %s52, %s53
      %p57 = pneg %p51
      %p58 = scmp.eq.s32.totalorder %s28, 3
      %p59 = por %p57, %p58
      %p60 = scmp.ne.s32.totalorder %s52, %s55
      %p61 = scmp.eq.s32.totalorder %s28, 0
      %p62 = por %p60, %p61
      %p63 = scmp.ne.s32.totalorder %s52, %s55
      %p64 = scmp.eq.s32.totalorder %s33, 3
      %p65 = por %p63, %p64
      %p66 = scmp.ne.s32.totalorder %s55, %s56
      %p67 = scmp.eq.s32.totalorder %s33, 0
      %p68 = por %p66, %p67
      %p69 = scmp.ne.s32.totalorder %s55, %s56
      %p70 = scmp.eq.s32.totalorder %s34, 3
      %p71 = por %p69, %p70
      %p73 = scmp.ne.s32.totalorder %s56, %s72
      %p74 = scmp.eq.s32.totalorder %s34, 0
      %p75 = por %p73, %p74
      %s77 = sadd.s32 %s76, 1
      %p80 = scmp.eq.s32.totalorder %s28, 3
      %p81 = scmp.ne.s32.totalorder %s76, %s78
      %p82 = scmp.eq.s32.totalorder %s28, 0
      %p83 = por %p81, %p82
      %p84 = scmp.ne.s32.totalorder %s76, %s78
      %p85 = scmp.eq.s32.totalorder %s33, 3
      %p86 = por %p84, %p85
      %p87 = scmp.ne.s32.totalorder %s78, %s79
      %p88 = scmp.eq.s32.totalorder %s33, 0
      %p89 = por %p87, %p88
      %p90 = scmp.ne.s32.totalorder %s78, %s79
      %p91 = scmp.eq.s32.totalorder %s34, 3
      %p92 = por %p90, %p91
      %p94 = scmp.ne.s32.totalorder %s79, %s93
      %p95 = scmp.eq.s32.totalorder %s34, 0
      %p96 = por %p94, %p95
      %s98 = sadd.s32 %s97, 1
      %p101 = scmp.eq.s32.totalorder %s28, 3
      %p102 = scmp.ne.s32.totalorder %s97, %s99
      %p103 = scmp.eq.s32.totalorder %s28, 0
      %p104 = por %p102, %p103
      %p105 = scmp.ne.s32.totalorder %s97, %s99
      %p106 = scmp.eq.s32.totalorder %s33, 3
      %p107 = por %p105, %p106
      %p108 = scmp.ne.s32.totalorder %s99, %s100
      %p109 = scmp.eq.s32.totalorder %s33, 0
      %p110 = por %p108, %p109
      %p111 = scmp.ne.s32.totalorder %s99, %s100
      %p112 = scmp.eq.s32.totalorder %s34, 3
      %p113 = por %p111, %p112
      %p115 = scmp.ne.s32.totalorder %s100, %s114
      %p116 = scmp.eq.s32.totalorder %s34, 0
      %p117 = por %p115, %p116
      %s119 = sadd.s32 %s118, 1
      %p122 = scmp.eq.s32.totalorder %s28, 3
      %p123 = scmp.ne.s32.totalorder %s118, %s120
      %p124 = scmp.eq.s32.totalorder %s28, 0
      %p125 = por %p123, %p124
      %p126 = scmp.ne.s32.totalorder %s118, %s120
      %p127 = scmp.eq.s32.totalorder %s33, 3
      %p128 = por %p126, %p127
      %p129 = scmp.ne.s32.totalorder %s120, %s121
      %p130 = scmp.eq.s32.totalorder %s33, 0
      %p131 = por %p129, %p130
      %p132 = scmp.ne.s32.totalorder %s120, %s121
      %p133 = scmp.eq.s32.totalorder %s34, 3
      %p134 = por %p132, %p133
      %p136 = scmp.ne.s32.totalorder %s121, %s135
      %p137 = scmp.eq.s32.totalorder %s34, 0
      %p138 = por %p136, %p137
      %s140 = sadd.s32 %s139, 1
      %p143 = scmp.eq.s32.totalorder %s28, 3
      %p144 = scmp.ne.s32.totalorder %s139, %s141
      %p145 = scmp.eq.s32.totalorder %s28, 0
      %p146 = por %p144, %p145
      %p147 = scmp.ne.s32.totalorder %s139, %s141
      %p148 = scmp.eq.s32.totalorder %s33, 3
      %p149 = por %p147, %p148
      %p150 = scmp.ne.s32.totalorder %s141, %s142
      %p151 = scmp.eq.s32.totalorder %s33, 0
      %p152 = por %p150, %p151
      %p153 = scmp.ne.s32.totalorder %s141, %s142
      %p154 = scmp.eq.s32.totalorder %s34, 3
      %p155 = por %p153, %p154
      %p157 = scmp.ne.s32.totalorder %s142, %s156
      %p158 = scmp.eq.s32.totalorder %s34, 0
      %p159 = por %p157, %p158
      %s161 = sadd.s32 %s160, 1
      %p164 = scmp.eq.s32.totalorder %s28, 3
      %p165 = scmp.ne.s32.totalorder %s160, %s162
      %p166 = scmp.eq.s32.totalorder %s28, 0
      %p167 = por %p165, %p166
      %p168 = scmp.ne.s32.totalorder %s160, %s162
      %p169 = scmp.eq.s32.totalorder %s33, 3
      %p170 = por %p168, %p169
      %p171 = scmp.ne.s32.totalorder %s162, %s163
      %p172 = scmp.eq.s32.totalorder %s33, 0
      %p173 = por %p171, %p172
      %p174 = scmp.ne.s32.totalorder %s162, %s163
      %p175 = scmp.eq.s32.totalorder %s34, 3
      %p176 = por %p174, %p175
      %p178 = scmp.ne.s32.totalorder %s163, %s177
      %p179 = scmp.eq.s32.totalorder %s34, 0
      %p180 = por %p178, %p179
      %s182 = sadd.s32 %s181, 1
      %p185 = scmp.eq.s32.totalorder %s28, 3
      %p186 = scmp.ne.s32.totalorder %s181, %s183
      %p187 = scmp.eq.s32.totalorder %s28, 0
      %p188 = por %p186, %p187
      %p189 = scmp.ne.s32.totalorder %s181, %s183
      %p190 = scmp.eq.s32.totalorder %s33, 3
      %p191 = por %p189, %p190
      %p192 = scmp.ne.s32.totalorder %s183, %s184
      %p193 = scmp.eq.s32.totalorder %s33, 0
      %p194 = por %p192, %p193
      %p195 = scmp.ne.s32.totalorder %s183, %s184
      %p196 = scmp.eq.s32.totalorder %s34, 3
      %p197 = por %p195, %p196
      %p199 = scmp.ne.s32.totalorder %s184, %s198
      %p200 = scmp.eq.s32.totalorder %s34, 0
      %p201 = por %p199, %p200
      %s203 = sadd.s32 %s202, 1
      %p206 = scmp.eq.s32.totalorder %s28, 3
      %p207 = scmp.ne.s32.totalorder %s202, %s204
      %p208 = scmp.eq.s32.totalorder %s28, 0
      %p209 = por %p207, %p208
      %p210 = scmp.ne.s32.totalorder %s202, %s204
      %p211 = scmp.eq.s32.totalorder %s33, 3
      %p212 = por %p210, %p211
      %p213 = scmp.ne.s32.totalorder %s204, %s205
      %p214 = scmp.eq.s32.totalorder %s33, 0
      %p215 = por %p213, %p214
      %p216 = scmp.ne.s32.totalorder %s204, %s205
      %p217 = scmp.eq.s32.totalorder %s34, 3
      %p218 = por %p216, %p217
      %p220 = scmp.ne.s32.totalorder %s205, %s219
      %p221 = scmp.eq.s32.totalorder %s34, 0
      %p222 = por %p220, %p221
      %s224 = sadd.s32 %s223, 1
      %p227 = scmp.eq.s32.totalorder %s28, 3
      %p228 = scmp.ne.s32.totalorder %s223, %s225
      %p229 = scmp.eq.s32.totalorder %s28, 0
      %p230 = por %p228, %p229
      %p231 = scmp.ne.s32.totalorder %s223, %s225
      %p232 = scmp.eq.s32.totalorder %s33, 3
      %p233 = por %p231, %p232
      %p234 = scmp.ne.s32.totalorder %s225, %s226
      %p235 = scmp.eq.s32.totalorder %s33, 0
      %p236 = por %p234, %p235
      %p237 = scmp.ne.s32.totalorder %s225, %s226
      %p238 = scmp.eq.s32.totalorder %s34, 3
      %p239 = por %p237, %p238
      %p241 = scmp.ne.s32.totalorder %s226, %s240
      %p242 = scmp.eq.s32.totalorder %s34, 0
      %p243 = por %p241, %p242
      %s245 = sadd.s32 %s244, 1
      %p248 = scmp.eq.s32.totalorder %s28, 3
      %p249 = scmp.ne.s32.totalorder %s244, %s246
      %p250 = scmp.eq.s32.totalorder %s28, 0
      %p251 = por %p249, %p250
      %p252 = scmp.ne.s32.totalorder %s244, %s246
      %p253 = scmp.eq.s32.totalorder %s33, 3
      %p254 = por %p252, %p253
      %p255 = scmp.ne.s32.totalorder %s246, %s247
      %p256 = scmp.eq.s32.totalorder %s33, 0
      %p257 = por %p255, %p256
      %p258 = scmp.ne.s32.totalorder %s246, %s247
      %p259 = scmp.eq.s32.totalorder %s34, 3
      %p260 = por %p258, %p259
      %p262 = scmp.ne.s32.totalorder %s247, %s261
      %p263 = scmp.eq.s32.totalorder %s34, 0
      %p264 = por %p262, %p263
      %s266 = sadd.s32 %s265, 1
      %p269 = scmp.eq.s32.totalorder %s28, 3
      %p270 = scmp.ne.s32.totalorder %s265, %s267
      %p271 = scmp.eq.s32.totalorder %s28, 0
      %p272 = por %p270, %p271
      %p273 = scmp.ne.s32.totalorder %s265, %s267
      %p274 = scmp.eq.s32.totalorder %s33, 3
      %p275 = por %p273, %p274
      %p276 = scmp.ne.s32.totalorder %s267, %s268
      %p277 = scmp.eq.s32.totalorder %s33, 0
      %p278 = por %p276, %p277
      %p279 = scmp.ne.s32.totalorder %s267, %s268
      %p280 = scmp.eq.s32.totalorder %s34, 3
      %p281 = por %p279, %p280
      %p283 = scmp.ne.s32.totalorder %s268, %s282
      %p284 = scmp.eq.s32.totalorder %s34, 0
      %p285 = por %p283, %p284
      %s287 = sadd.s32 %s286, 1
      %p290 = scmp.eq.s32.totalorder %s28, 3
      %p291 = scmp.ne.s32.totalorder %s286, %s288
      %p292 = scmp.eq.s32.totalorder %s28, 0
      %p293 = por %p291, %p292
      %p294 = scmp.ne.s32.totalorder %s286, %s288
      %p295 = scmp.eq.s32.totalorder %s33, 3
      %p296 = por %p294, %p295
      %p297 = scmp.ne.s32.totalorder %s288, %s289
      %p298 = scmp.eq.s32.totalorder %s33, 0
      %p299 = por %p297, %p298
      %p300 = scmp.ne.s32.totalorder %s288, %s289
      %p301 = scmp.eq.s32.totalorder %s34, 3
      %p302 = por %p300, %p301
      %p304 = scmp.ne.s32.totalorder %s289, %s303
      %p305 = scmp.eq.s32.totalorder %s34, 0
      %p306 = por %p304, %p305
      %s308 = sadd.s32 %s307, 1
      %p311 = scmp.eq.s32.totalorder %s28, 3
      %p312 = scmp.ne.s32.totalorder %s307, %s309
      %p313 = scmp.eq.s32.totalorder %s28, 0
      %p314 = por %p312, %p313
      %p315 = scmp.ne.s32.totalorder %s307, %s309
      %p316 = scmp.eq.s32.totalorder %s33, 3
      %p317 = por %p315, %p316
      %p318 = scmp.ne.s32.totalorder %s309, %s310
      %p319 = scmp.eq.s32.totalorder %s33, 0
      %p320 = por %p318, %p319
      %p321 = scmp.ne.s32.totalorder %s309, %s310
      %p322 = scmp.eq.s32.totalorder %s34, 3
      %p323 = por %p321, %p322
      %p325 = scmp.ne.s32.totalorder %s310, %s324
      %p326 = scmp.eq.s32.totalorder %s34, 0
      %p327 = por %p325, %p326
      %s329 = sadd.s32 %s328, 1
      %p332 = scmp.eq.s32.totalorder %s28, 3
      %p333 = scmp.ne.s32.totalorder %s328, %s330
      %p334 = scmp.eq.s32.totalorder %s28, 0
      %p335 = por %p333, %p334
      %p336 = scmp.ne.s32.totalorder %s328, %s330
      %p337 = scmp.eq.s32.totalorder %s33, 3
      %p338 = por %p336, %p337
      %p339 = scmp.ne.s32.totalorder %s330, %s331
      %p340 = scmp.eq.s32.totalorder %s33, 0
      %p341 = por %p339, %p340
      %p342 = scmp.ne.s32.totalorder %s330, %s331
      %p343 = scmp.eq.s32.totalorder %s34, 3
      %p344 = por %p342, %p343
      %p346 = scmp.ne.s32.totalorder %s331, %s345
      %p347 = scmp.eq.s32.totalorder %s34, 0
      %p348 = por %p346, %p347
      %s350 = sadd.s32 %s349, 1
      %p353 = scmp.eq.s32.totalorder %s28, 3
      %p354 = scmp.ne.s32.totalorder %s349, %s351
      %p355 = scmp.eq.s32.totalorder %s28, 0
      %p356 = por %p354, %p355
      %p357 = scmp.ne.s32.totalorder %s349, %s351
      %p358 = scmp.eq.s32.totalorder %s33, 3
      %p359 = por %p357, %p358
      %p360 = scmp.ne.s32.totalorder %s351, %s352
      %p361 = scmp.eq.s32.totalorder %s33, 0
      %p362 = por %p360, %p361
      %p363 = scmp.ne.s32.totalorder %s351, %s352
      %p364 = scmp.eq.s32.totalorder %s34, 3
      %p365 = por %p363, %p364
      %p367 = scmp.ne.s32.totalorder %s352, %s366
      %p368 = scmp.eq.s32.totalorder %s34, 0
      %p369 = por %p367, %p368
      %s370 = ssub.s32 %s35, %s47
      %s371 = ssub.s32 %s36, %s43
      %s372 = sor.u32 %s370, %s371
      %p373 = scmp.eq.s32.totalorder %s372, 0
      %s375 = sadd.s32 %s374, 1
      %s376 = scalar_select %p373, %s374, %s375
      %p379 = pneg %p373
      %p380 = scmp.eq.s32.totalorder %s28, 3
      %p381 = por %p379, %p380
      %p382 = scmp.ne.s32.totalorder %s374, %s377
      %p383 = scmp.eq.s32.totalorder %s28, 0
      %p384 = por %p382, %p383
      %p385 = scmp.ne.s32.totalorder %s374, %s377
      %p386 = scmp.eq.s32.totalorder %s33, 3
      %p387 = por %p385, %p386
      %p388 = scmp.ne.s32.totalorder %s377, %s378
      %p389 = scmp.eq.s32.totalorder %s33, 0
      %p390 = por %p388, %p389
      %p391 = scmp.ne.s32.totalorder %s377, %s378
      %p392 = scmp.eq.s32.totalorder %s34, 3
      %p393 = por %p391, %p392
      %p395 = scmp.ne.s32.totalorder %s378, %s394
      %p396 = scmp.eq.s32.totalorder %s34, 0
      %p397 = por %p395, %p396
      %p398 = scmp.le.s32.totalorder 1, %s28
      %p399 = scmp.lt.s32.totalorder %s28, 5
      %p400 = pnand %p398, %p399
      %p401 = pneg %p400
      // Predicated region
      $region9: #{tpu_custom_call.1} parent=5 // pred_check
        _
      $region10: #{tpu_custom_call.1} parent=5 // pred_check_branch
        %403 = sbr.rel (%p400) target = $region12
      $region11: #{tpu_custom_call.1} parent=5 // pred_region
        %s404 = ssub.s32 %s28, 1
        // Predicated region
        $region13: #{tpu_custom_call.1} parent=11 // pred_check
          %p405 = pneg %p89
        $region14: #{tpu_custom_call.1} parent=11 // pred_check_branch
          %407 = sbr.rel (%p405) target = $region16
        $region15: #{tpu_custom_call.1} parent=11 // pred_region
          _
        $region16: #{tpu_custom_call.1} parent=11 // pred_fallthru
          _
        // Predicated region
        $region17: #{tpu_custom_call.1} parent=11 // pred_check
          %p408 = pneg %p110
        $region18: #{tpu_custom_call.1} parent=11 // pred_check_branch
          %410 = sbr.rel (%p408) target = $region20
        $region19: #{tpu_custom_call.1} parent=11 // pred_region
          %412 = vsyncadd [#allocation6], 0
          %s414 = sshll.u32 %s2, 4
          %s415 = int_to_ptr.hbm [resolvable:$true] %s414
          %s416 = sshll.u32 [#allocation5], 4
          %s417 = int_to_ptr.vmem [resolvable:$true] %s416
          %419 = dma.hbm_to_vmem [thread:$0]  %s415, 256, %s417, [#allocation6]
        $region20: #{tpu_custom_call.1} parent=11 // pred_fallthru
          _
        // Predicated region
        $region21: #{tpu_custom_call.1} parent=11 // pred_check
          %p420 = pneg %p131
        $region22: #{tpu_custom_call.1} parent=11 // pred_check_branch
          %422 = sbr.rel (%p420) target = $region24
        $region23: #{tpu_custom_call.1} parent=11 // pred_region
          _
        $region24: #{tpu_custom_call.1} parent=11 // pred_fallthru
          _
        // Predicated region
        $region25: #{tpu_custom_call.1} parent=11 // pred_check
          %p423 = pneg %p152
        $region26: #{tpu_custom_call.1} parent=11 // pred_check_branch
          %425 = sbr.rel (%p423) target = $region28
        $region27: #{tpu_custom_call.1} parent=11 // pred_region
          _
        $region28: #{tpu_custom_call.1} parent=11 // pred_fallthru
          _
        // Predicated region
        $region29: #{tpu_custom_call.1} parent=11 // pred_check
          %p426 = pneg %p173
        $region30: #{tpu_custom_call.1} parent=11 // pred_check_branch
          %428 = sbr.rel (%p426) target = $region32
        $region31: #{tpu_custom_call.1} parent=11 // pred_region
          _
        $region32: #{tpu_custom_call.1} parent=11 // pred_fallthru
          _
        // Predicated region
        $region33: #{tpu_custom_call.1} parent=11 // pred_check
          %p429 = pneg %p194
        $region34: #{tpu_custom_call.1} parent=11 // pred_check_branch
          %431 = sbr.rel (%p429) target = $region36
        $region35: #{tpu_custom_call.1} parent=11 // pred_region
          _
        $region36: #{tpu_custom_call.1} parent=11 // pred_fallthru
          _
        // Predicated region
        $region37: #{tpu_custom_call.1} parent=11 // pred_check
          %p432 = pneg %p215
        $region38: #{tpu_custom_call.1} parent=11 // pred_check_branch
          %434 = sbr.rel (%p432) target = $region40
        $region39: #{tpu_custom_call.1} parent=11 // pred_region
          _
        $region40: #{tpu_custom_call.1} parent=11 // pred_fallthru
          _
        // Predicated region
        $region41: #{tpu_custom_call.1} parent=11 // pred_check
          %p435 = pneg %p236
        $region42: #{tpu_custom_call.1} parent=11 // pred_check_branch
          %437 = sbr.rel (%p435) target = $region44
        $region43: #{tpu_custom_call.1} parent=11 // pred_region
          _
        $region44: #{tpu_custom_call.1} parent=11 // pred_fallthru
          _
        // Predicated region
        $region45: #{tpu_custom_call.1} parent=11 // pred_check
          %p438 = pneg %p257
        $region46: #{tpu_custom_call.1} parent=11 // pred_check_branch
          %440 = sbr.rel (%p438) target = $region48
        $region47: #{tpu_custom_call.1} parent=11 // pred_region
          _
        $region48: #{tpu_custom_call.1} parent=11 // pred_fallthru
          _
        // Predicated region
        $region49: #{tpu_custom_call.1} parent=11 // pred_check
          %p441 = pneg %p278
        $region50: #{tpu_custom_call.1} parent=11 // pred_check_branch
          %443 = sbr.rel (%p441) target = $region52
        $region51: #{tpu_custom_call.1} parent=11 // pred_region
          _
        $region52: #{tpu_custom_call.1} parent=11 // pred_fallthru
          _
        // Predicated region
        $region53: #{tpu_custom_call.1} parent=11 // pred_check
          %p444 = pneg %p299
        $region54: #{tpu_custom_call.1} parent=11 // pred_check_branch
          %446 = sbr.rel (%p444) target = $region56
        $region55: #{tpu_custom_call.1} parent=11 // pred_region
          _
        $region56: #{tpu_custom_call.1} parent=11 // pred_fallthru
          _
        // Predicated region
        $region57: #{tpu_custom_call.1} parent=11 // pred_check
          %p447 = pneg %p320
        $region58: #{tpu_custom_call.1} parent=11 // pred_check_branch
          %449 = sbr.rel (%p447) target = $region60
        $region59: #{tpu_custom_call.1} parent=11 // pred_region
          _
        $region60: #{tpu_custom_call.1} parent=11 // pred_fallthru
          _
        // Predicated region
        $region61: #{tpu_custom_call.1} parent=11 // pred_check
          %p450 = pneg %p341
        $region62: #{tpu_custom_call.1} parent=11 // pred_check_branch
          %452 = sbr.rel (%p450) target = $region64
        $region63: #{tpu_custom_call.1} parent=11 // pred_region
          _
        $region64: #{tpu_custom_call.1} parent=11 // pred_fallthru
          _
        // Predicated region
        $region65: #{tpu_custom_call.1} parent=11 // pred_check
          %p453 = pneg %p362
        $region66: #{tpu_custom_call.1} parent=11 // pred_check_branch
          %455 = sbr.rel (%p453) target = $region68
        $region67: #{tpu_custom_call.1} parent=11 // pred_region
          _
        $region68: #{tpu_custom_call.1} parent=11 // pred_fallthru
          _
      $region12: #{tpu_custom_call.1} parent=5 // pred_fallthru
        _
      %p456 = scmp.lt.s32.totalorder %s28, 4
      // Predicated region
      $region69: #{tpu_custom_call.1} parent=5 // pred_check
        %p457 = pneg %p456
      $region70: #{tpu_custom_call.1} parent=5 // pred_check_branch
        %459 = sbr.rel (%p457) target = $region72
      $region71: #{tpu_custom_call.1} parent=5 // pred_region
        // Predicated region
        $region73: #{tpu_custom_call.1} parent=71 // pred_check
          %p460 = pneg %p62
        $region74: #{tpu_custom_call.1} parent=71 // pred_check_branch
          %462 = sbr.rel (%p460) target = $region76
        $region75: #{tpu_custom_call.1} parent=71 // pred_region
          %s463 = sand.u32 %s52, 1
          %s464 = scalar_lea.sflag [#allocation3], %s463
          %s465 = sand.u32 %s52, 1
          %s466 = smul.addr %s465, 128
          %s467 = scalar_lea.vmem [#allocation2], %s466
          %469 = vsyncadd %s464, 0
          %s470 = smul.addr %s36, 16
          %s471 = smul.addr %s35, 32
          %s472 = sadd.s32 %s470, %s471
          %s473 = smul.addr %s472, 8
          %s474 = scalar_lea.hbm %s0, %s473
          %s476 = sshll.u32 %s474, 4
          %s477 = int_to_ptr.hbm [resolvable:$true] %s476
          %s478 = sshll.u32 %s467, 4
          %s479 = int_to_ptr.vmem [resolvable:$true] %s478
          %481 = dma.hbm_to_vmem [thread:$0]  %s477, 2048, %s479, %s464
        $region76: #{tpu_custom_call.1} parent=71 // pred_fallthru
          _
      $region72: #{tpu_custom_call.1} parent=5 // pred_fallthru
        _
      %p482 = scmp.le.s32.totalorder 1, %s28
      %p483 = scmp.lt.s32.totalorder %s28, 5
      %p484 = pnand %p482, %p483
      %p485 = pneg %p484
      // Predicated region
      $region77: #{tpu_custom_call.1} parent=5 // pred_check
        _
      $region78: #{tpu_custom_call.1} parent=5 // pred_check_branch
        %487 = sbr.rel (%p484) target = $region80
      $region79: #{tpu_custom_call.1} parent=5 // pred_region
        %s488 = ssub.s32 %s28, 1
        %s489 = sand.u32 %s55, 1
        %s490 = scalar_lea.sflag [#allocation3], %s489
        %s491 = sand.u32 %s55, 1
        %s492 = smul.addr %s491, 128
        %s493 = scalar_lea.vmem [#allocation2], %s492
        // Predicated region
        $region81: #{tpu_custom_call.1} parent=79 // pred_check
          %p494 = pneg %p68
        $region82: #{tpu_custom_call.1} parent=79 // pred_check_branch
          %496 = sbr.rel (%p494) target = $region84
        $region83: #{tpu_custom_call.1} parent=79 // pred_region
          %498 = dma.done %s490, 2048
        $region84: #{tpu_custom_call.1} parent=79 // pred_fallthru
          _
        // Predicated region
        $region85: #{tpu_custom_call.1} parent=79 // pred_check
          %p499 = pneg %p110
        $region86: #{tpu_custom_call.1} parent=79 // pred_check_branch
          %501 = sbr.rel (%p499) target = $region88
        $region87: #{tpu_custom_call.1} parent=79 // pred_region
          %503 = dma.done [#allocation6], 256
        $region88: #{tpu_custom_call.1} parent=79 // pred_fallthru
          _
        %s504 = sand.u32 %s55, 1
        %s505 = scalar_lea.sflag [#allocation3], %s504
        %s506 = sand.u32 %s55, 1
        %s507 = smul.addr %s506, 128
        %s508 = scalar_lea.vmem [#allocation2], %s507
        %p509 = pneg %p68
        %p510 = pneg %p65
        %p511 = pneg %p89
        %p512 = pneg %p86
        %p513 = pneg %p110
        %p514 = pneg %p107
        %p515 = pneg %p131
        %p516 = pneg %p128
        %p517 = pneg %p152
        %p518 = pneg %p149
        %p519 = pneg %p173
        %p520 = pneg %p170
        %p521 = pneg %p194
        %p522 = pneg %p191
        %p523 = pneg %p215
        %p524 = pneg %p212
        %p525 = pneg %p236
        %p526 = pneg %p233
        %p527 = pneg %p257
        %p528 = pneg %p254
        %p529 = pneg %p278
        %p530 = pneg %p275
        %p531 = pneg %p299
        %p532 = pneg %p296
        %p533 = pneg %p320
        %p534 = pneg %p317
        %p535 = pneg %p341
        %p536 = pneg %p338
        %p537 = pneg %p362
        %p538 = pneg %p359
        %p539 = pneg %p390
        %p540 = pneg %p387
        %s541 = sand.u32 %s377, 1
        %s542 = scalar_lea.sflag [#allocation4], %s541
        %s543 = sand.u32 %s377, 1
        %s544 = smul.addr %s543, 32
        %s545 = scalar_lea.vmem [#allocation7], %s544
        %v546 = vld [vmem:[%s1] sm:$0xff]
        %v547 = vld [vmem:[%s1 + $0x8] sm:$0xff]
        %s548 = smul.u32 %s38, 8
        %s549 = ssub.s32 %s548, 4
        %v550 = vstv %s549
        %v551 = vadd.s32 %v546, %v550
        %v552 = vadd.s32 %v547, %v550
        %vm553 = vcmp.ge.s32.totalorder %v551, 0
        %vm554 = vcmp.ge.s32.totalorder %v552, 0
        %vm555 = vcmp.lt.s32.totalorder %v551, 16
        %vm556 = vcmp.lt.s32.totalorder %v552, 16
        %vm557 = vmand %vm553, %vm555
        %vm558 = vmand %vm554, %vm556
        %v559 = vld [vmem:[#allocation5] sm:$0xff]
        %v560 = vld [vmem:[#allocation5 + $0x8] sm:$0xff]
        %v561 = vsel %vm557, %v559, 0.0
        %v562 = vsel %vm558, %v560, 0.0
        %v563 = vld [vmem:[%s493] sm:$0xff]
        %v564 = vld [vmem:[%s493 + $0x8] sm:$0xff]
        %v565 = vld [vmem:[%s493 + $0x10] sm:$0xff]
        %v566 = vld [vmem:[%s493 + $0x18] sm:$0xff]
        %v567 = vld [vmem:[%s493 + $0x20] sm:$0xff]
        %v568 = vld [vmem:[%s493 + $0x28] sm:$0xff]
        %v569 = vld [vmem:[%s493 + $0x30] sm:$0xff]
        %v570 = vld [vmem:[%s493 + $0x38] sm:$0xff]
        %v571 = vld [vmem:[%s493 + $0x40] sm:$0xff]
        %v572 = vld [vmem:[%s493 + $0x48] sm:$0xff]
        %v573 = vld [vmem:[%s493 + $0x50] sm:$0xff]
        %v574 = vld [vmem:[%s493 + $0x58] sm:$0xff]
        %v575 = vld [vmem:[%s493 + $0x60] sm:$0xff]
        %v576 = vld [vmem:[%s493 + $0x68] sm:$0xff]
        %v577 = vld [vmem:[%s493 + $0x70] sm:$0xff]
        %v578 = vld [vmem:[%s493 + $0x78] sm:$0xff]
        %v579 = vld [vmem:[%s3] sm:$0xf]
        %v580 = vld [vmem:[%s4] sm:$0xf]
        %582 = vset.pattern.permute.xlu0 0
        %583 = vperm.xlu0 %582, %v580
        %v584 = vpop.permute.xlu0 %583
        %vm586 = vcmask 64512
        %v588 = vsel %vm586, %v579, 0
        %590 = vmatpush.msra.mxu0 0.0
        %591 = vmatpush.msra.mxu0 0.0
        %592 = vmatpush.msra.mxu0 0.0
        %593 = vmatpush.msra.mxu0 0.0
        %594 = vmatpush.msra.mxu0 0.0
        %595 = vmatpush.msra.mxu0 0.0
        %596 = vmatpush.msra.mxu0 0.0
        %597 = vmatpush.msra.mxu0 0.0
        %598 = vmatpush.msra.mxu0 0.0
        %599 = vmatpush.msra.mxu0 0.0
        %600 = vmatpush.msra.mxu0 0.0
        %601 = vmatpush.msra.mxu0 0.0
        %602 = vmatpush.msra.mxu0 0.0
        %603 = vmatpush.msra.mxu0 0.0
        %604 = vmatpush.msra.mxu0 0.0
        %605 = vmatpush.msra.mxu0 %v563
        %606 = vmatmul.f32.gmra.mxu0 %v588
        %v607 = vpop.f32.mrf.mxu0
        %v608 = vadd.f32 %v584, %v607
        %609 = vdwg.mxu0
        %610 = vmatpush.msra.mxu0 0.0
        %611 = vmatpush.msra.mxu0 0.0
        %612 = vmatpush.msra.mxu0 0.0
        %613 = vmatpush.msra.mxu0 0.0
        %614 = vmatpush.msra.mxu0 0.0
        %615 = vmatpush.msra.mxu0 0.0
        %616 = vmatpush.msra.mxu0 0.0
        %617 = vmatpush.msra.mxu0 0.0
        %618 = vmatpush.msra.mxu0 0.0
        %619 = vmatpush.msra.mxu0 0.0
        %620 = vmatpush.msra.mxu0 0.0
        %621 = vmatpush.msra.mxu0 0.0
        %622 = vmatpush.msra.mxu0 0.0
        %623 = vmatpush.msra.mxu0 0.0
        %624 = vmatpush.msra.mxu0 0.0
        %625 = vmatpush.msra.mxu0 %v564
        %626 = vmatmul.f32.gmra.mxu0 %v588
        %v627 = vpop.f32.mrf.mxu0
        %v628 = vadd.f32 %v584, %v627
        %629 = vdwg.mxu0
        %630 = vmatpush.msra.mxu0 0.0
        %631 = vmatpush.msra.mxu0 0.0
        %632 = vmatpush.msra.mxu0 0.0
        %633 = vmatpush.msra.mxu0 0.0
        %634 = vmatpush.msra.mxu0 0.0
        %635 = vmatpush.msra.mxu0 0.0
        %636 = vmatpush.msra.mxu0 0.0
        %637 = vmatpush.msra.mxu0 0.0
        %638 = vmatpush.msra.mxu0 0.0
        %639 = vmatpush.msra.mxu0 0.0
        %640 = vmatpush.msra.mxu0 0.0
        %641 = vmatpush.msra.mxu0 0.0
        %642 = vmatpush.msra.mxu0 0.0
        %643 = vmatpush.msra.mxu0 0.0
        %644 = vmatpush.msra.mxu0 0.0
        %645 = vmatpush.msra.mxu0 %v565
        %646 = vmatmul.f32.gmra.mxu0 %v588
        %v647 = vpop.f32.mrf.mxu0
        %v648 = vadd.f32 %v584, %v647
        %649 = vdwg.mxu0
        %650 = vmatpush.msra.mxu0 0.0
        %651 = vmatpush.msra.mxu0 0.0
        %652 = vmatpush.msra.mxu0 0.0
        %653 = vmatpush.msra.mxu0 0.0
        %654 = vmatpush.msra.mxu0 0.0
        %655 = vmatpush.msra.mxu0 0.0
        %656 = vmatpush.msra.mxu0 0.0
        %657 = vmatpush.msra.mxu0 0.0
        %658 = vmatpush.msra.mxu0 0.0
        %659 = vmatpush.msra.mxu0 0.0
        %660 = vmatpush.msra.mxu0 0.0
        %661 = vmatpush.msra.mxu0 0.0
        %662 = vmatpush.msra.mxu0 0.0
        %663 = vmatpush.msra.mxu0 0.0
        %664 = vmatpush.msra.mxu0 0.0
        %665 = vmatpush.msra.mxu0 %v566
        %666 = vmatmul.f32.gmra.mxu0 %v588
        %v667 = vpop.f32.mrf.mxu0
        %v668 = vadd.f32 %v584, %v667
        %669 = vdwg.mxu0
        %670 = vmatpush.msra.mxu0 0.0
        %671 = vmatpush.msra.mxu0 0.0
        %672 = vmatpush.msra.mxu0 0.0
        %673 = vmatpush.msra.mxu0 0.0
        %674 = vmatpush.msra.mxu0 0.0
        %675 = vmatpush.msra.mxu0 0.0
        %676 = vmatpush.msra.mxu0 0.0
        %677 = vmatpush.msra.mxu0 0.0
        %678 = vmatpush.msra.mxu0 0.0
        %679 = vmatpush.msra.mxu0 0.0
        %680 = vmatpush.msra.mxu0 0.0
        %681 = vmatpush.msra.mxu0 0.0
        %682 = vmatpush.msra.mxu0 0.0
        %683 = vmatpush.msra.mxu0 0.0
        %684 = vmatpush.msra.mxu0 0.0
        %685 = vmatpush.msra.mxu0 %v567
        %686 = vmatmul.f32.gmra.mxu0 %v588
        %v687 = vpop.f32.mrf.mxu0
        %v688 = vadd.f32 %v584, %v687
        %689 = vdwg.mxu0
        %690 = vmatpush.msra.mxu0 0.0
        %691 = vmatpush.msra.mxu0 0.0
        %692 = vmatpush.msra.mxu0 0.0
        %693 = vmatpush.msra.mxu0 0.0
        %694 = vmatpush.msra.mxu0 0.0
        %695 = vmatpush.msra.mxu0 0.0
        %696 = vmatpush.msra.mxu0 0.0
        %697 = vmatpush.msra.mxu0 0.0
        %698 = vmatpush.msra.mxu0 0.0
        %699 = vmatpush.msra.mxu0 0.0
        %700 = vmatpush.msra.mxu0 0.0
        %701 = vmatpush.msra.mxu0 0.0
        %702 = vmatpush.msra.mxu0 0.0
        %703 = vmatpush.msra.mxu0 0.0
        %704 = vmatpush.msra.mxu0 0.0
        %705 = vmatpush.msra.mxu0 %v568
        %706 = vmatmul.f32.gmra.mxu0 %v588
        %v707 = vpop.f32.mrf.mxu0
        %v708 = vadd.f32 %v584, %v707
        %709 = vdwg.mxu0
        %710 = vmatpush.msra.mxu0 0.0
        %711 = vmatpush.msra.mxu0 0.0
        %712 = vmatpush.msra.mxu0 0.0
        %713 = vmatpush.msra.mxu0 0.0
        %714 = vmatpush.msra.mxu0 0.0
        %715 = vmatpush.msra.mxu0 0.0
        %716 = vmatpush.msra.mxu0 0.0
        %717 = vmatpush.msra.mxu0 0.0
        %718 = vmatpush.msra.mxu0 0.0
        %719 = vmatpush.msra.mxu0 0.0
        %720 = vmatpush.msra.mxu0 0.0
        %721 = vmatpush.msra.mxu0 0.0
        %722 = vmatpush.msra.mxu0 0.0
        %723 = vmatpush.msra.mxu0 0.0
        %724 = vmatpush.msra.mxu0 0.0
        %725 = vmatpush.msra.mxu0 %v569
        %726 = vmatmul.f32.gmra.mxu0 %v588
        %v727 = vpop.f32.mrf.mxu0
        %v728 = vadd.f32 %v584, %v727
        %729 = vdwg.mxu0
        %730 = vmatpush.msra.mxu0 0.0
        %731 = vmatpush.msra.mxu0 0.0
        %732 = vmatpush.msra.mxu0 0.0
        %733 = vmatpush.msra.mxu0 0.0
        %734 = vmatpush.msra.mxu0 0.0
        %735 = vmatpush.msra.mxu0 0.0
        %736 = vmatpush.msra.mxu0 0.0
        %737 = vmatpush.msra.mxu0 0.0
        %738 = vmatpush.msra.mxu0 0.0
        %739 = vmatpush.msra.mxu0 0.0
        %740 = vmatpush.msra.mxu0 0.0
        %741 = vmatpush.msra.mxu0 0.0
        %742 = vmatpush.msra.mxu0 0.0
        %743 = vmatpush.msra.mxu0 0.0
        %744 = vmatpush.msra.mxu0 0.0
        %745 = vmatpush.msra.mxu0 %v570
        %746 = vmatmul.f32.gmra.mxu0 %v588
        %v747 = vpop.f32.mrf.mxu0
        %v748 = vadd.f32 %v584, %v747
        %749 = vdwg.mxu0
        %750 = vmatpush.msra.mxu0 0.0
        %751 = vmatpush.msra.mxu0 0.0
        %752 = vmatpush.msra.mxu0 0.0
        %753 = vmatpush.msra.mxu0 0.0
        %754 = vmatpush.msra.mxu0 0.0
        %755 = vmatpush.msra.mxu0 0.0
        %756 = vmatpush.msra.mxu0 0.0
        %757 = vmatpush.msra.mxu0 0.0
        %758 = vmatpush.msra.mxu0 0.0
        %759 = vmatpush.msra.mxu0 0.0
        %760 = vmatpush.msra.mxu0 0.0
        %761 = vmatpush.msra.mxu0 0.0
        %762 = vmatpush.msra.mxu0 0.0
        %763 = vmatpush.msra.mxu0 0.0
        %764 = vmatpush.msra.mxu0 0.0
        %765 = vmatpush.msra.mxu0 %v571
        %766 = vmatmul.f32.gmra.mxu0 %v588
        %v767 = vpop.f32.mrf.mxu0
        %v768 = vadd.f32 %v584, %v767
        %769 = vdwg.mxu0
        %770 = vmatpush.msra.mxu0 0.0
        %771 = vmatpush.msra.mxu0 0.0
        %772 = vmatpush.msra.mxu0 0.0
        %773 = vmatpush.msra.mxu0 0.0
        %774 = vmatpush.msra.mxu0 0.0
        %775 = vmatpush.msra.mxu0 0.0
        %776 = vmatpush.msra.mxu0 0.0
        %777 = vmatpush.msra.mxu0 0.0
        %778 = vmatpush.msra.mxu0 0.0
        %779 = vmatpush.msra.mxu0 0.0
        %780 = vmatpush.msra.mxu0 0.0
        %781 = vmatpush.msra.mxu0 0.0
        %782 = vmatpush.msra.mxu0 0.0
        %783 = vmatpush.msra.mxu0 0.0
        %784 = vmatpush.msra.mxu0 0.0
        %785 = vmatpush.msra.mxu0 %v572
        %786 = vmatmul.f32.gmra.mxu0 %v588
        %v787 = vpop.f32.mrf.mxu0
        %v788 = vadd.f32 %v584, %v787
        %789 = vdwg.mxu0
        %790 = vmatpush.msra.mxu0 0.0
        %791 = vmatpush.msra.mxu0 0.0
        %792 = vmatpush.msra.mxu0 0.0
        %793 = vmatpush.msra.mxu0 0.0
        %794 = vmatpush.msra.mxu0 0.0
        %795 = vmatpush.msra.mxu0 0.0
        %796 = vmatpush.msra.mxu0 0.0
        %797 = vmatpush.msra.mxu0 0.0
        %798 = vmatpush.msra.mxu0 0.0
        %799 = vmatpush.msra.mxu0 0.0
        %800 = vmatpush.msra.mxu0 0.0
        %801 = vmatpush.msra.mxu0 0.0
        %802 = vmatpush.msra.mxu0 0.0
        %803 = vmatpush.msra.mxu0 0.0
        %804 = vmatpush.msra.mxu0 0.0
        %805 = vmatpush.msra.mxu0 %v573
        %806 = vmatmul.f32.gmra.mxu0 %v588
        %v807 = vpop.f32.mrf.mxu0
        %v808 = vadd.f32 %v584, %v807
        %809 = vdwg.mxu0
        %810 = vmatpush.msra.mxu0 0.0
        %811 = vmatpush.msra.mxu0 0.0
        %812 = vmatpush.msra.mxu0 0.0
        %813 = vmatpush.msra.mxu0 0.0
        %814 = vmatpush.msra.mxu0 0.0
        %815 = vmatpush.msra.mxu0 0.0
        %816 = vmatpush.msra.mxu0 0.0
        %817 = vmatpush.msra.mxu0 0.0
        %818 = vmatpush.msra.mxu0 0.0
        %819 = vmatpush.msra.mxu0 0.0
        %820 = vmatpush.msra.mxu0 0.0
        %821 = vmatpush.msra.mxu0 0.0
        %822 = vmatpush.msra.mxu0 0.0
        %823 = vmatpush.msra.mxu0 0.0
        %824 = vmatpush.msra.mxu0 0.0
        %825 = vmatpush.msra.mxu0 %v574
        %826 = vmatmul.f32.gmra.mxu0 %v588
        %v827 = vpop.f32.mrf.mxu0
        %v828 = vadd.f32 %v584, %v827
        %829 = vdwg.mxu0
        %830 = vmatpush.msra.mxu0 0.0
        %831 = vmatpush.msra.mxu0 0.0
        %832 = vmatpush.msra.mxu0 0.0
        %833 = vmatpush.msra.mxu0 0.0
        %834 = vmatpush.msra.mxu0 0.0
        %835 = vmatpush.msra.mxu0 0.0
        %836 = vmatpush.msra.mxu0 0.0
        %837 = vmatpush.msra.mxu0 0.0
        %838 = vmatpush.msra.mxu0 0.0
        %839 = vmatpush.msra.mxu0 0.0
        %840 = vmatpush.msra.mxu0 0.0
        %841 = vmatpush.msra.mxu0 0.0
        %842 = vmatpush.msra.mxu0 0.0
        %843 = vmatpush.msra.mxu0 0.0
        %844 = vmatpush.msra.mxu0 0.0
        %845 = vmatpush.msra.mxu0 %v575
        %846 = vmatmul.f32.gmra.mxu0 %v588
        %v847 = vpop.f32.mrf.mxu0
        %v848 = vadd.f32 %v584, %v847
        %849 = vdwg.mxu0
        %850 = vmatpush.msra.mxu0 0.0
        %851 = vmatpush.msra.mxu0 0.0
        %852 = vmatpush.msra.mxu0 0.0
        %853 = vmatpush.msra.mxu0 0.0
        %854 = vmatpush.msra.mxu0 0.0
        %855 = vmatpush.msra.mxu0 0.0
        %856 = vmatpush.msra.mxu0 0.0
        %857 = vmatpush.msra.mxu0 0.0
        %858 = vmatpush.msra.mxu0 0.0
        %859 = vmatpush.msra.mxu0 0.0
        %860 = vmatpush.msra.mxu0 0.0
        %861 = vmatpush.msra.mxu0 0.0
        %862 = vmatpush.msra.mxu0 0.0
        %863 = vmatpush.msra.mxu0 0.0
        %864 = vmatpush.msra.mxu0 0.0
        %865 = vmatpush.msra.mxu0 %v576
        %866 = vmatmul.f32.gmra.mxu0 %v588
        %v867 = vpop.f32.mrf.mxu0
        %v868 = vadd.f32 %v584, %v867
        %869 = vdwg.mxu0
        %870 = vmatpush.msra.mxu0 0.0
        %871 = vmatpush.msra.mxu0 0.0
        %872 = vmatpush.msra.mxu0 0.0
        %873 = vmatpush.msra.mxu0 0.0
        %874 = vmatpush.msra.mxu0 0.0
        %875 = vmatpush.msra.mxu0 0.0
        %876 = vmatpush.msra.mxu0 0.0
        %877 = vmatpush.msra.mxu0 0.0
        %878 = vmatpush.msra.mxu0 0.0
        %879 = vmatpush.msra.mxu0 0.0
        %880 = vmatpush.msra.mxu0 0.0
        %881 = vmatpush.msra.mxu0 0.0
        %882 = vmatpush.msra.mxu0 0.0
        %883 = vmatpush.msra.mxu0 0.0
        %884 = vmatpush.msra.mxu0 0.0
        %885 = vmatpush.msra.mxu0 %v577
        %886 = vmatmul.f32.gmra.mxu0 %v588
        %v887 = vpop.f32.mrf.mxu0
        %v888 = vadd.f32 %v584, %v887
        %889 = vdwg.mxu0
        %890 = vmatpush.msra.mxu0 0.0
        %891 = vmatpush.msra.mxu0 0.0
        %892 = vmatpush.msra.mxu0 0.0
        %893 = vmatpush.msra.mxu0 0.0
        %894 = vmatpush.msra.mxu0 0.0
        %895 = vmatpush.msra.mxu0 0.0
        %896 = vmatpush.msra.mxu0 0.0
        %897 = vmatpush.msra.mxu0 0.0
        %898 = vmatpush.msra.mxu0 0.0
        %899 = vmatpush.msra.mxu0 0.0
        %900 = vmatpush.msra.mxu0 0.0
        %901 = vmatpush.msra.mxu0 0.0
        %902 = vmatpush.msra.mxu0 0.0
        %903 = vmatpush.msra.mxu0 0.0
        %904 = vmatpush.msra.mxu0 0.0
        %905 = vmatpush.msra.mxu0 %v578
        %906 = vmatmul.f32.gmra.mxu0 %v588
        %v907 = vpop.f32.mrf.mxu0
        %v908 = vadd.f32 %v584, %v907
        %909 = vdwg.mxu0
        %v910 = vmax.f32 %v608, 0.0
        %v911 = vmax.f32 %v628, 0.0
        %v912 = vmax.f32 %v648, 0.0
        %v913 = vmax.f32 %v668, 0.0
        %v914 = vmax.f32 %v688, 0.0
        %v915 = vmax.f32 %v708, 0.0
        %v916 = vmax.f32 %v728, 0.0
        %v917 = vmax.f32 %v748, 0.0
        %v918 = vmax.f32 %v768, 0.0
        %v919 = vmax.f32 %v788, 0.0
        %v920 = vmax.f32 %v808, 0.0
        %v921 = vmax.f32 %v828, 0.0
        %v922 = vmax.f32 %v848, 0.0
        %v923 = vmax.f32 %v868, 0.0
        %v924 = vmax.f32 %v888, 0.0
        %v925 = vmax.f32 %v908, 0.0
        %v928 = vperm.slane %v561, 0
        %v929 = vperm.slane %v561, 1
        %v930 = vperm.slane %v561, 2
        %v931 = vperm.slane %v561, 3
        %v932 = vperm.slane %v561, 4
        %v933 = vperm.slane %v561, 5
        %v934 = vperm.slane %v561, 6
        %v935 = vperm.slane %v561, 7
        %v936 = vperm.slane %v562, 0
        %v937 = vperm.slane %v562, 1
        %v938 = vperm.slane %v562, 2
        %v939 = vperm.slane %v562, 3
        %v940 = vperm.slane %v562, 4
        %v941 = vperm.slane %v562, 5
        %v942 = vperm.slane %v562, 6
        %v943 = vperm.slane %v562, 7
        %v960 = vmul.f32 %v910, %v928
        %v961 = vmul.f32 %v911, %v929
        %v962 = vmul.f32 %v912, %v930
        %v963 = vmul.f32 %v913, %v931
        %v964 = vmul.f32 %v914, %v932
        %v965 = vmul.f32 %v915, %v933
        %v966 = vmul.f32 %v916, %v934
        %v967 = vmul.f32 %v917, %v935
        %v968 = vmul.f32 %v918, %v936
        %v969 = vmul.f32 %v919, %v937
        %v970 = vmul.f32 %v920, %v938
        %v971 = vmul.f32 %v921, %v939
        %v972 = vmul.f32 %v922, %v940
        %v973 = vmul.f32 %v923, %v941
        %v974 = vmul.f32 %v924, %v942
        %v975 = vmul.f32 %v925, %v943
        %976 = vrot.lane.b32.xlu0 %v960, 1
        %v977 = vpop.permute.xlu0 %976
        %978 = vrot.lane.b32.xlu0 %v961, 1
        %v979 = vpop.permute.xlu0 %978
        %980 = vrot.lane.b32.xlu0 %v962, 1
        %v981 = vpop.permute.xlu0 %980
        %982 = vrot.lane.b32.xlu0 %v963, 1
        %v983 = vpop.permute.xlu0 %982
        %984 = vrot.lane.b32.xlu0 %v964, 1
        %v985 = vpop.permute.xlu0 %984
        %986 = vrot.lane.b32.xlu0 %v965, 1
        %v987 = vpop.permute.xlu0 %986
        %988 = vrot.lane.b32.xlu0 %v966, 1
        %v989 = vpop.permute.xlu0 %988
        %990 = vrot.lane.b32.xlu0 %v967, 1
        %v991 = vpop.permute.xlu0 %990
        %992 = vrot.lane.b32.xlu0 %v968, 1
        %v993 = vpop.permute.xlu0 %992
        %994 = vrot.lane.b32.xlu0 %v969, 1
        %v995 = vpop.permute.xlu0 %994
        %996 = vrot.lane.b32.xlu0 %v970, 1
        %v997 = vpop.permute.xlu0 %996
        %998 = vrot.lane.b32.xlu0 %v971, 1
        %v999 = vpop.permute.xlu0 %998
        %1000 = vrot.lane.b32.xlu0 %v972, 1
        %v1001 = vpop.permute.xlu0 %1000
        %1002 = vrot.lane.b32.xlu0 %v973, 1
        %v1003 = vpop.permute.xlu0 %1002
        %1004 = vrot.lane.b32.xlu0 %v974, 1
        %v1005 = vpop.permute.xlu0 %1004
        %1006 = vrot.lane.b32.xlu0 %v975, 1
        %v1007 = vpop.permute.xlu0 %1006
        %v1008 = vlaneseq
        %v1009 = vand.u32 %v1008, 127
        %vm1010 = vcmp.lt.s32.totalorder %v1009, 1
        %v1011 = vsel %vm1010, %v1005, %v1007
        %v1012 = vsel %vm1010, %v1003, %v1005
        %v1013 = vsel %vm1010, %v1001, %v1003
        %v1014 = vsel %vm1010, %v999, %v1001
        %v1015 = vsel %vm1010, %v997, %v999
        %v1016 = vsel %vm1010, %v995, %v997
        %v1017 = vsel %vm1010, %v993, %v995
        %v1018 = vsel %vm1010, %v991, %v993
        %v1019 = vsel %vm1010, %v989, %v991
        %v1020 = vsel %vm1010, %v987, %v989
        %v1021 = vsel %vm1010, %v985, %v987
        %v1022 = vsel %vm1010, %v983, %v985
        %v1023 = vsel %vm1010, %v981, %v983
        %v1024 = vsel %vm1010, %v979, %v981
        %v1025 = vsel %vm1010, %v977, %v979
        %v1026 = vsel %vm1010, %v1007, %v977
        %1027 = vrot.lane.b32.xlu0 %v960, 127
        %v1028 = vpop.permute.xlu0 %1027
        %1029 = vrot.lane.b32.xlu0 %v961, 127
        %v1030 = vpop.permute.xlu0 %1029
        %1031 = vrot.lane.b32.xlu0 %v962, 127
        %v1032 = vpop.permute.xlu0 %1031
        %1033 = vrot.lane.b32.xlu0 %v963, 127
        %v1034 = vpop.permute.xlu0 %1033
        %1035 = vrot.lane.b32.xlu0 %v964, 127
        %v1036 = vpop.permute.xlu0 %1035
        %1037 = vrot.lane.b32.xlu0 %v965, 127
        %v1038 = vpop.permute.xlu0 %1037
        %1039 = vrot.lane.b32.xlu0 %v966, 127
        %v1040 = vpop.permute.xlu0 %1039
        %1041 = vrot.lane.b32.xlu0 %v967, 127
        %v1042 = vpop.permute.xlu0 %1041
        %1043 = vrot.lane.b32.xlu0 %v968, 127
        %v1044 = vpop.permute.xlu0 %1043
        %1045 = vrot.lane.b32.xlu0 %v969, 127
        %v1046 = vpop.permute.xlu0 %1045
        %1047 = vrot.lane.b32.xlu0 %v970, 127
        %v1048 = vpop.permute.xlu0 %1047
        %1049 = vrot.lane.b32.xlu0 %v971, 127
        %v1050 = vpop.permute.xlu0 %1049
        %1051 = vrot.lane.b32.xlu0 %v972, 127
        %v1052 = vpop.permute.xlu0 %1051
        %1053 = vrot.lane.b32.xlu0 %v973, 127
        %v1054 = vpop.permute.xlu0 %1053
        %1055 = vrot.lane.b32.xlu0 %v974, 127
        %v1056 = vpop.permute.xlu0 %1055
        %1057 = vrot.lane.b32.xlu0 %v975, 127
        %v1058 = vpop.permute.xlu0 %1057
        %vm1059 = vcmp.lt.s32.totalorder %v1009, 127
        %v1060 = vsel %vm1059, %v1056, %v1058
        %v1061 = vsel %vm1059, %v1054, %v1056
        %v1062 = vsel %vm1059, %v1052, %v1054
        %v1063 = vsel %vm1059, %v1050, %v1052
        %v1064 = vsel %vm1059, %v1048, %v1050
        %v1065 = vsel %vm1059, %v1046, %v1048
        %v1066 = vsel %vm1059, %v1044, %v1046
        %v1067 = vsel %vm1059, %v1042, %v1044
        %v1068 = vsel %vm1059, %v1040, %v1042
        %v1069 = vsel %vm1059, %v1038, %v1040
        %v1070 = vsel %vm1059, %v1036, %v1038
        %v1071 = vsel %vm1059, %v1034, %v1036
        %v1072 = vsel %vm1059, %v1032, %v1034
        %v1073 = vsel %vm1059, %v1030, %v1032
        %v1074 = vsel %vm1059, %v1028, %v1030
        %v1075 = vsel %vm1059, %v1058, %v1028
        %v1092 = vrot.slane %v975, 4
        %v1093 = vrot.slane %v960, 4
        %v1094 = vrot.slane %v961, 4
        %v1095 = vrot.slane %v962, 4
        %v1096 = vrot.slane %v963, 4
        %v1097 = vrot.slane %v964, 4
        %v1098 = vrot.slane %v965, 4
        %v1099 = vrot.slane %v966, 4
        %v1100 = vrot.slane %v967, 4
        %v1101 = vrot.slane %v968, 4
        %v1102 = vrot.slane %v969, 4
        %v1103 = vrot.slane %v970, 4
        %v1104 = vrot.slane %v971, 4
        %v1105 = vrot.slane %v972, 4
        %v1106 = vrot.slane %v973, 4
        %v1107 = vrot.slane %v974, 4
        %v1140 = vrot.slane %v1026, 4
        %v1141 = vrot.slane %v1025, 4
        %v1142 = vrot.slane %v1024, 4
        %v1143 = vrot.slane %v1023, 4
        %v1144 = vrot.slane %v1022, 4
        %v1145 = vrot.slane %v1021, 4
        %v1146 = vrot.slane %v1020, 4
        %v1147 = vrot.slane %v1019, 4
        %v1148 = vrot.slane %v1018, 4
        %v1149 = vrot.slane %v1017, 4
        %v1150 = vrot.slane %v1016, 4
        %v1151 = vrot.slane %v1015, 4
        %v1152 = vrot.slane %v1014, 4
        %v1153 = vrot.slane %v1013, 4
        %v1154 = vrot.slane %v1012, 4
        %v1155 = vrot.slane %v1011, 4
        %v1188 = vrot.slane %v1074, 4
        %v1189 = vrot.slane %v1073, 4
        %v1190 = vrot.slane %v1072, 4
        %v1191 = vrot.slane %v1071, 4
        %v1192 = vrot.slane %v1070, 4
        %v1193 = vrot.slane %v1069, 4
        %v1194 = vrot.slane %v1068, 4
        %v1195 = vrot.slane %v1067, 4
        %v1196 = vrot.slane %v1066, 4
        %v1197 = vrot.slane %v1065, 4
        %v1198 = vrot.slane %v1064, 4
        %v1199 = vrot.slane %v1063, 4
        %v1200 = vrot.slane %v1062, 4
        %v1201 = vrot.slane %v1061, 4
        %v1202 = vrot.slane %v1060, 4
        %v1203 = vrot.slane %v1075, 4
        %vm1220 = vcmask 1043456
        %v1221 = vsel %vm1220, %v1011, %v1092
        %v1222 = vsel %vm1220, %v1026, %v1093
        %v1223 = vsel %vm1220, %v1025, %v1094
        %v1224 = vsel %vm1220, %v1024, %v1095
        %v1225 = vsel %vm1220, %v1023, %v1096
        %v1226 = vsel %vm1220, %v1022, %v1097
        %v1227 = vsel %vm1220, %v1021, %v1098
        %v1228 = vsel %vm1220, %v1020, %v1099
        %v1229 = vsel %vm1220, %v1019, %v1100
        %v1230 = vsel %vm1220, %v1018, %v1101
        %v1231 = vsel %vm1220, %v1017, %v1102
        %v1232 = vsel %vm1220, %v1016, %v1103
        %v1233 = vsel %vm1220, %v1015, %v1104
        %v1234 = vsel %vm1220, %v1014, %v1105
        %v1235 = vsel %vm1220, %v1013, %v1106
        %v1236 = vsel %vm1220, %v1012, %v1107
        %v1237 = vsel %vm1220, %v1075, %v1140
        %v1238 = vsel %vm1220, %v1074, %v1141
        %v1239 = vsel %vm1220, %v1073, %v1142
        %v1240 = vsel %vm1220, %v1072, %v1143
        %v1241 = vsel %vm1220, %v1071, %v1144
        %v1242 = vsel %vm1220, %v1070, %v1145
        %v1243 = vsel %vm1220, %v1069, %v1146
        %v1244 = vsel %vm1220, %v1068, %v1147
        %v1245 = vsel %vm1220, %v1067, %v1148
        %v1246 = vsel %vm1220, %v1066, %v1149
        %v1247 = vsel %vm1220, %v1065, %v1150
        %v1248 = vsel %vm1220, %v1064, %v1151
        %v1249 = vsel %vm1220, %v1063, %v1152
        %v1250 = vsel %vm1220, %v1062, %v1153
        %v1251 = vsel %vm1220, %v1061, %v1154
        %v1252 = vsel %vm1220, %v1060, %v1155
        %v1253 = vsel %vm1220, %v960, %v1188
        %v1254 = vsel %vm1220, %v961, %v1189
        %v1255 = vsel %vm1220, %v962, %v1190
        %v1256 = vsel %vm1220, %v963, %v1191
        %v1257 = vsel %vm1220, %v964, %v1192
        %v1258 = vsel %vm1220, %v965, %v1193
        %v1259 = vsel %vm1220, %v966, %v1194
        %v1260 = vsel %vm1220, %v967, %v1195
        %v1261 = vsel %vm1220, %v968, %v1196
        %v1262 = vsel %vm1220, %v969, %v1197
        %v1263 = vsel %vm1220, %v970, %v1198
        %v1264 = vsel %vm1220, %v971, %v1199
        %v1265 = vsel %vm1220, %v972, %v1200
        %v1266 = vsel %vm1220, %v973, %v1201
        %v1267 = vsel %vm1220, %v974, %v1202
        %v1268 = vsel %vm1220, %v975, %v1203
        %v1269 = vld [vmem:[%s5] sm:$0xf]
        %v1270 = vld [vmem:[%s6] sm:$0xf]
        %1272 = vset.pattern.permute.xlu0 0
        %1273 = vperm.xlu0 %1272, %v1270
        %v1274 = vpop.permute.xlu0 %1273
        %vm1276 = vcmask 293888
        %v1278 = vsel %vm1276, %v1269, 0
        %v1280 = vsel %vm1220, %v1073, 0
        %v1282 = vsel %vm1220, %v1072, 0
        %v1284 = vsel %vm1220, %v1071, 0
        %v1286 = vsel %vm1220, %v1070, 0
        %v1288 = vsel %vm1220, %v1069, 0
        %v1290 = vsel %vm1220, %v1068, 0
        %v1292 = vsel %vm1220, %v1067, 0
        %v1294 = vsel %vm1220, %v1066, 0
        %v1296 = vsel %vm1220, %v1065, 0
        %v1298 = vsel %vm1220, %v1064, 0
        %v1300 = vsel %vm1220, %v1063, 0
        %v1302 = vsel %vm1220, %v1062, 0
        %v1304 = vsel %vm1220, %v1061, 0
        %v1306 = vsel %vm1220, %v1060, 0
        %v1308 = vsel %vm1220, %v1075, 0
        %v1310 = vsel %vm1220, %v1074, 0
        %1312 = vmatpush.msra.mxu0 0.0
        %1313 = vmatpush.msra.mxu0 0.0
        %1314 = vmatpush.msra.mxu0 0.0
        %1315 = vmatpush.msra.mxu0 0.0
        %1316 = vmatpush.msra.mxu0 0.0
        %1317 = vmatpush.msra.mxu0 0.0
        %1318 = vmatpush.msra.mxu0 0.0
        %1319 = vmatpush.msra.mxu0 0.0
        %1320 = vmatpush.msra.mxu0 0.0
        %1321 = vmatpush.msra.mxu0 0.0
        %1322 = vmatpush.msra.mxu0 0.0
        %1323 = vmatpush.msra.mxu0 %v1280
        %1324 = vmatpush.msra.mxu0 %v1223
        %1325 = vmatpush.msra.mxu0 %v1253
        %1326 = vmatpush.msra.mxu0 %v1237
        %1327 = vmatpush.msra.mxu0 %v1221
        %1328 = vmatmul.f32.gmra.mxu0 %v1278
        %v1329 = vpop.f32.mrf.mxu0
        %v1330 = vadd.f32 %v1274, %v1329
        %1331 = vdwg.mxu0
        %1332 = vmatpush.msra.mxu0 0.0
        %1333 = vmatpush.msra.mxu0 0.0
        %1334 = vmatpush.msra.mxu0 0.0
        %1335 = vmatpush.msra.mxu0 0.0
        %1336 = vmatpush.msra.mxu0 0.0
        %1337 = vmatpush.msra.mxu0 0.0
        %1338 = vmatpush.msra.mxu0 0.0
        %1339 = vmatpush.msra.mxu0 0.0
        %1340 = vmatpush.msra.mxu0 0.0
        %1341 = vmatpush.msra.mxu0 0.0
        %1342 = vmatpush.msra.mxu0 0.0
        %1343 = vmatpush.msra.mxu0 %v1282
        %1344 = vmatpush.msra.mxu0 %v1224
        %1345 = vmatpush.msra.mxu0 %v1254
        %1346 = vmatpush.msra.mxu0 %v1238
        %1347 = vmatpush.msra.mxu0 %v1222
        %1348 = vmatmul.f32.gmra.mxu0 %v1278
        %v1349 = vpop.f32.mrf.mxu0
        %v1350 = vadd.f32 %v1274, %v1349
        %1351 = vdwg.mxu0
        %1352 = vmatpush.msra.mxu0 0.0
        %1353 = vmatpush.msra.mxu0 0.0
        %1354 = vmatpush.msra.mxu0 0.0
        %1355 = vmatpush.msra.mxu0 0.0
        %1356 = vmatpush.msra.mxu0 0.0
        %1357 = vmatpush.msra.mxu0 0.0
        %1358 = vmatpush.msra.mxu0 0.0
        %1359 = vmatpush.msra.mxu0 0.0
        %1360 = vmatpush.msra.mxu0 0.0
        %1361 = vmatpush.msra.mxu0 0.0
        %1362 = vmatpush.msra.mxu0 0.0
        %1363 = vmatpush.msra.mxu0 %v1284
        %1364 = vmatpush.msra.mxu0 %v1225
        %1365 = vmatpush.msra.mxu0 %v1255
        %1366 = vmatpush.msra.mxu0 %v1239
        %1367 = vmatpush.msra.mxu0 %v1223
        %1368 = vmatmul.f32.gmra.mxu0 %v1278
        %v1369 = vpop.f32.mrf.mxu0
        %v1370 = vadd.f32 %v1274, %v1369
        %1371 = vdwg.mxu0
        %1372 = vmatpush.msra.mxu0 0.0
        %1373 = vmatpush.msra.mxu0 0.0
        %1374 = vmatpush.msra.mxu0 0.0
        %1375 = vmatpush.msra.mxu0 0.0
        %1376 = vmatpush.msra.mxu0 0.0
        %1377 = vmatpush.msra.mxu0 0.0
        %1378 = vmatpush.msra.mxu0 0.0
        %1379 = vmatpush.msra.mxu0 0.0
        %1380 = vmatpush.msra.mxu0 0.0
        %1381 = vmatpush.msra.mxu0 0.0
        %1382 = vmatpush.msra.mxu0 0.0
        %1383 = vmatpush.msra.mxu0 %v1286
        %1384 = vmatpush.msra.mxu0 %v1226
        %1385 = vmatpush.msra.mxu0 %v1256
        %1386 = vmatpush.msra.mxu0 %v1240
        %1387 = vmatpush.msra.mxu0 %v1224
        %1388 = vmatmul.f32.gmra.mxu0 %v1278
        %v1389 = vpop.f32.mrf.mxu0
        %v1390 = vadd.f32 %v1274, %v1389
        %1391 = vdwg.mxu0
        %1392 = vmatpush.msra.mxu0 0.0
        %1393 = vmatpush.msra.mxu0 0.0
        %1394 = vmatpush.msra.mxu0 0.0
        %1395 = vmatpush.msra.mxu0 0.0
        %1396 = vmatpush.msra.mxu0 0.0
        %1397 = vmatpush.msra.mxu0 0.0
        %1398 = vmatpush.msra.mxu0 0.0
        %1399 = vmatpush.msra.mxu0 0.0
        %1400 = vmatpush.msra.mxu0 0.0
        %1401 = vmatpush.msra.mxu0 0.0
        %1402 = vmatpush.msra.mxu0 0.0
        %1403 = vmatpush.msra.mxu0 %v1288
        %1404 = vmatpush.msra.mxu0 %v1227
        %1405 = vmatpush.msra.mxu0 %v1257
        %1406 = vmatpush.msra.mxu0 %v1241
        %1407 = vmatpush.msra.mxu0 %v1225
        %1408 = vmatmul.f32.gmra.mxu0 %v1278
        %v1409 = vpop.f32.mrf.mxu0
        %v1410 = vadd.f32 %v1274, %v1409
        %1411 = vdwg.mxu0
        %1412 = vmatpush.msra.mxu0 0.0
        %1413 = vmatpush.msra.mxu0 0.0
        %1414 = vmatpush.msra.mxu0 0.0
        %1415 = vmatpush.msra.mxu0 0.0
        %1416 = vmatpush.msra.mxu0 0.0
        %1417 = vmatpush.msra.mxu0 0.0
        %1418 = vmatpush.msra.mxu0 0.0
        %1419 = vmatpush.msra.mxu0 0.0
        %1420 = vmatpush.msra.mxu0 0.0
        %1421 = vmatpush.msra.mxu0 0.0
        %1422 = vmatpush.msra.mxu0 0.0
        %1423 = vmatpush.msra.mxu0 %v1290
        %1424 = vmatpush.msra.mxu0 %v1228
        %1425 = vmatpush.msra.mxu0 %v1258
        %1426 = vmatpush.msra.mxu0 %v1242
        %1427 = vmatpush.msra.mxu0 %v1226
        %1428 = vmatmul.f32.gmra.mxu0 %v1278
        %v1429 = vpop.f32.mrf.mxu0
        %v1430 = vadd.f32 %v1274, %v1429
        %1431 = vdwg.mxu0
        %1432 = vmatpush.msra.mxu0 0.0
        %1433 = vmatpush.msra.mxu0 0.0
        %1434 = vmatpush.msra.mxu0 0.0
        %1435 = vmatpush.msra.mxu0 0.0
        %1436 = vmatpush.msra.mxu0 0.0
        %1437 = vmatpush.msra.mxu0 0.0
        %1438 = vmatpush.msra.mxu0 0.0
        %1439 = vmatpush.msra.mxu0 0.0
        %1440 = vmatpush.msra.mxu0 0.0
        %1441 = vmatpush.msra.mxu0 0.0
        %1442 = vmatpush.msra.mxu0 0.0
        %1443 = vmatpush.msra.mxu0 %v1292
        %1444 = vmatpush.msra.mxu0 %v1229
        %1445 = vmatpush.msra.mxu0 %v1259
        %1446 = vmatpush.msra.mxu0 %v1243
        %1447 = vmatpush.msra.mxu0 %v1227
        %1448 = vmatmul.f32.gmra.mxu0 %v1278
        %v1449 = vpop.f32.mrf.mxu0
        %v1450 = vadd.f32 %v1274, %v1449
        %1451 = vdwg.mxu0
        %1452 = vmatpush.msra.mxu0 0.0
        %1453 = vmatpush.msra.mxu0 0.0
        %1454 = vmatpush.msra.mxu0 0.0
        %1455 = vmatpush.msra.mxu0 0.0
        %1456 = vmatpush.msra.mxu0 0.0
        %1457 = vmatpush.msra.mxu0 0.0
        %1458 = vmatpush.msra.mxu0 0.0
        %1459 = vmatpush.msra.mxu0 0.0
        %1460 = vmatpush.msra.mxu0 0.0
        %1461 = vmatpush.msra.mxu0 0.0
        %1462 = vmatpush.msra.mxu0 0.0
        %1463 = vmatpush.msra.mxu0 %v1294
        %1464 = vmatpush.msra.mxu0 %v1230
        %1465 = vmatpush.msra.mxu0 %v1260
        %1466 = vmatpush.msra.mxu0 %v1244
        %1467 = vmatpush.msra.mxu0 %v1228
        %1468 = vmatmul.f32.gmra.mxu0 %v1278
        %v1469 = vpop.f32.mrf.mxu0
        %v1470 = vadd.f32 %v1274, %v1469
        %1471 = vdwg.mxu0
        %1472 = vmatpush.msra.mxu0 0.0
        %1473 = vmatpush.msra.mxu0 0.0
        %1474 = vmatpush.msra.mxu0 0.0
        %1475 = vmatpush.msra.mxu0 0.0
        %1476 = vmatpush.msra.mxu0 0.0
        %1477 = vmatpush.msra.mxu0 0.0
        %1478 = vmatpush.msra.mxu0 0.0
        %1479 = vmatpush.msra.mxu0 0.0
        %1480 = vmatpush.msra.mxu0 0.0
        %1481 = vmatpush.msra.mxu0 0.0
        %1482 = vmatpush.msra.mxu0 0.0
        %1483 = vmatpush.msra.mxu0 %v1296
        %1484 = vmatpush.msra.mxu0 %v1231
        %1485 = vmatpush.msra.mxu0 %v1261
        %1486 = vmatpush.msra.mxu0 %v1245
        %1487 = vmatpush.msra.mxu0 %v1229
        %1488 = vmatmul.f32.gmra.mxu0 %v1278
        %v1489 = vpop.f32.mrf.mxu0
        %v1490 = vadd.f32 %v1274, %v1489
        %1491 = vdwg.mxu0
        %1492 = vmatpush.msra.mxu0 0.0
        %1493 = vmatpush.msra.mxu0 0.0
        %1494 = vmatpush.msra.mxu0 0.0
        %1495 = vmatpush.msra.mxu0 0.0
        %1496 = vmatpush.msra.mxu0 0.0
        %1497 = vmatpush.msra.mxu0 0.0
        %1498 = vmatpush.msra.mxu0 0.0
        %1499 = vmatpush.msra.mxu0 0.0
        %1500 = vmatpush.msra.mxu0 0.0
        %1501 = vmatpush.msra.mxu0 0.0
        %1502 = vmatpush.msra.mxu0 0.0
        %1503 = vmatpush.msra.mxu0 %v1298
        %1504 = vmatpush.msra.mxu0 %v1232
        %1505 = vmatpush.msra.mxu0 %v1262
        %1506 = vmatpush.msra.mxu0 %v1246
        %1507 = vmatpush.msra.mxu0 %v1230
        %1508 = vmatmul.f32.gmra.mxu0 %v1278
        %v1509 = vpop.f32.mrf.mxu0
        %v1510 = vadd.f32 %v1274, %v1509
        %1511 = vdwg.mxu0
        %1512 = vmatpush.msra.mxu0 0.0
        %1513 = vmatpush.msra.mxu0 0.0
        %1514 = vmatpush.msra.mxu0 0.0
        %1515 = vmatpush.msra.mxu0 0.0
        %1516 = vmatpush.msra.mxu0 0.0
        %1517 = vmatpush.msra.mxu0 0.0
        %1518 = vmatpush.msra.mxu0 0.0
        %1519 = vmatpush.msra.mxu0 0.0
        %1520 = vmatpush.msra.mxu0 0.0
        %1521 = vmatpush.msra.mxu0 0.0
        %1522 = vmatpush.msra.mxu0 0.0
        %1523 = vmatpush.msra.mxu0 %v1300
        %1524 = vmatpush.msra.mxu0 %v1233
        %1525 = vmatpush.msra.mxu0 %v1263
        %1526 = vmatpush.msra.mxu0 %v1247
        %1527 = vmatpush.msra.mxu0 %v1231
        %1528 = vmatmul.f32.gmra.mxu0 %v1278
        %v1529 = vpop.f32.mrf.mxu0
        %v1530 = vadd.f32 %v1274, %v1529
        %1531 = vdwg.mxu0
        %1532 = vmatpush.msra.mxu0 0.0
        %1533 = vmatpush.msra.mxu0 0.0
        %1534 = vmatpush.msra.mxu0 0.0
        %1535 = vmatpush.msra.mxu0 0.0
        %1536 = vmatpush.msra.mxu0 0.0
        %1537 = vmatpush.msra.mxu0 0.0
        %1538 = vmatpush.msra.mxu0 0.0
        %1539 = vmatpush.msra.mxu0 0.0
        %1540 = vmatpush.msra.mxu0 0.0
        %1541 = vmatpush.msra.mxu0 0.0
        %1542 = vmatpush.msra.mxu0 0.0
        %1543 = vmatpush.msra.mxu0 %v1302
        %1544 = vmatpush.msra.mxu0 %v1234
        %1545 = vmatpush.msra.mxu0 %v1264
        %1546 = vmatpush.msra.mxu0 %v1248
        %1547 = vmatpush.msra.mxu0 %v1232
        %1548 = vmatmul.f32.gmra.mxu0 %v1278
        %v1549 = vpop.f32.mrf.mxu0
        %v1550 = vadd.f32 %v1274, %v1549
        %1551 = vdwg.mxu0
        %1552 = vmatpush.msra.mxu0 0.0
        %1553 = vmatpush.msra.mxu0 0.0
        %1554 = vmatpush.msra.mxu0 0.0
        %1555 = vmatpush.msra.mxu0 0.0
        %1556 = vmatpush.msra.mxu0 0.0
        %1557 = vmatpush.msra.mxu0 0.0
        %1558 = vmatpush.msra.mxu0 0.0
        %1559 = vmatpush.msra.mxu0 0.0
        %1560 = vmatpush.msra.mxu0 0.0
        %1561 = vmatpush.msra.mxu0 0.0
        %1562 = vmatpush.msra.mxu0 0.0
        %1563 = vmatpush.msra.mxu0 %v1304
        %1564 = vmatpush.msra.mxu0 %v1235
        %1565 = vmatpush.msra.mxu0 %v1265
        %1566 = vmatpush.msra.mxu0 %v1249
        %1567 = vmatpush.msra.mxu0 %v1233
        %1568 = vmatmul.f32.gmra.mxu0 %v1278
        %v1569 = vpop.f32.mrf.mxu0
        %v1570 = vadd.f32 %v1274, %v1569
        %1571 = vdwg.mxu0
        %1572 = vmatpush.msra.mxu0 0.0
        %1573 = vmatpush.msra.mxu0 0.0
        %1574 = vmatpush.msra.mxu0 0.0
        %1575 = vmatpush.msra.mxu0 0.0
        %1576 = vmatpush.msra.mxu0 0.0
        %1577 = vmatpush.msra.mxu0 0.0
        %1578 = vmatpush.msra.mxu0 0.0
        %1579 = vmatpush.msra.mxu0 0.0
        %1580 = vmatpush.msra.mxu0 0.0
        %1581 = vmatpush.msra.mxu0 0.0
        %1582 = vmatpush.msra.mxu0 0.0
        %1583 = vmatpush.msra.mxu0 %v1306
        %1584 = vmatpush.msra.mxu0 %v1236
        %1585 = vmatpush.msra.mxu0 %v1266
        %1586 = vmatpush.msra.mxu0 %v1250
        %1587 = vmatpush.msra.mxu0 %v1234
        %1588 = vmatmul.f32.gmra.mxu0 %v1278
        %v1589 = vpop.f32.mrf.mxu0
        %v1590 = vadd.f32 %v1274, %v1589
        %1591 = vdwg.mxu0
        %1592 = vmatpush.msra.mxu0 0.0
        %1593 = vmatpush.msra.mxu0 0.0
        %1594 = vmatpush.msra.mxu0 0.0
        %1595 = vmatpush.msra.mxu0 0.0
        %1596 = vmatpush.msra.mxu0 0.0
        %1597 = vmatpush.msra.mxu0 0.0
        %1598 = vmatpush.msra.mxu0 0.0
        %1599 = vmatpush.msra.mxu0 0.0
        %1600 = vmatpush.msra.mxu0 0.0
        %1601 = vmatpush.msra.mxu0 0.0
        %1602 = vmatpush.msra.mxu0 0.0
        %1603 = vmatpush.msra.mxu0 %v1308
        %1604 = vmatpush.msra.mxu0 %v1221
        %1605 = vmatpush.msra.mxu0 %v1267
        %1606 = vmatpush.msra.mxu0 %v1251
        %1607 = vmatpush.msra.mxu0 %v1235
        %1608 = vmatmul.f32.gmra.mxu0 %v1278
        %v1609 = vpop.f32.mrf.mxu0
        %v1610 = vadd.f32 %v1274, %v1609
        %1611 = vdwg.mxu0
        %1612 = vmatpush.msra.mxu0 0.0
        %1613 = vmatpush.msra.mxu0 0.0
        %1614 = vmatpush.msra.mxu0 0.0
        %1615 = vmatpush.msra.mxu0 0.0
        %1616 = vmatpush.msra.mxu0 0.0
        %1617 = vmatpush.msra.mxu0 0.0
        %1618 = vmatpush.msra.mxu0 0.0
        %1619 = vmatpush.msra.mxu0 0.0
        %1620 = vmatpush.msra.mxu0 0.0
        %1621 = vmatpush.msra.mxu0 0.0
        %1622 = vmatpush.msra.mxu0 0.0
        %1623 = vmatpush.msra.mxu0 %v1310
        %1624 = vmatpush.msra.mxu0 %v1222
        %1625 = vmatpush.msra.mxu0 %v1268
        %1626 = vmatpush.msra.mxu0 %v1252
        %1627 = vmatpush.msra.mxu0 %v1236
        %1628 = vmatmul.f32.gmra.mxu0 %v1278
        %v1629 = vpop.f32.mrf.mxu0
        %v1630 = vadd.f32 %v1274, %v1629
        %1631 = vdwg.mxu0
        %v1632 = vmax.f32 %v1330, 0.0
        %v1633 = vmax.f32 %v1350, 0.0
        %v1634 = vmax.f32 %v1370, 0.0
        %v1635 = vmax.f32 %v1390, 0.0
        %v1636 = vmax.f32 %v1410, 0.0
        %v1637 = vmax.f32 %v1430, 0.0
        %v1638 = vmax.f32 %v1450, 0.0
        %v1639 = vmax.f32 %v1470, 0.0
        %v1640 = vmax.f32 %v1490, 0.0
        %v1641 = vmax.f32 %v1510, 0.0
        %v1642 = vmax.f32 %v1530, 0.0
        %v1643 = vmax.f32 %v1550, 0.0
        %v1644 = vmax.f32 %v1570, 0.0
        %v1645 = vmax.f32 %v1590, 0.0
        %v1646 = vmax.f32 %v1610, 0.0
        %v1647 = vmax.f32 %v1630, 0.0
        %v1648 = vmul.f32 %v1632, %v928
        %v1649 = vmul.f32 %v1633, %v929
        %v1650 = vmul.f32 %v1634, %v930
        %v1651 = vmul.f32 %v1635, %v931
        %v1652 = vmul.f32 %v1636, %v932
        %v1653 = vmul.f32 %v1637, %v933
        %v1654 = vmul.f32 %v1638, %v934
        %v1655 = vmul.f32 %v1639, %v935
        %v1656 = vmul.f32 %v1640, %v936
        %v1657 = vmul.f32 %v1641, %v937
        %v1658 = vmul.f32 %v1642, %v938
        %v1659 = vmul.f32 %v1643, %v939
        %v1660 = vmul.f32 %v1644, %v940
        %v1661 = vmul.f32 %v1645, %v941
        %v1662 = vmul.f32 %v1646, %v942
        %v1663 = vmul.f32 %v1647, %v943
        %1664 = vrot.lane.b32.xlu0 %v1648, 1
        %v1665 = vpop.permute.xlu0 %1664
        %1666 = vrot.lane.b32.xlu0 %v1649, 1
        %v1667 = vpop.permute.xlu0 %1666
        %1668 = vrot.lane.b32.xlu0 %v1650, 1
        %v1669 = vpop.permute.xlu0 %1668
        %1670 = vrot.lane.b32.xlu0 %v1651, 1
        %v1671 = vpop.permute.xlu0 %1670
        %1672 = vrot.lane.b32.xlu0 %v1652, 1
        %v1673 = vpop.permute.xlu0 %1672
        %1674 = vrot.lane.b32.xlu0 %v1653, 1
        %v1675 = vpop.permute.xlu0 %1674
        %1676 = vrot.lane.b32.xlu0 %v1654, 1
        %v1677 = vpop.permute.xlu0 %1676
        %1678 = vrot.lane.b32.xlu0 %v1655, 1
        %v1679 = vpop.permute.xlu0 %1678
        %1680 = vrot.lane.b32.xlu0 %v1656, 1
        %v1681 = vpop.permute.xlu0 %1680
        %1682 = vrot.lane.b32.xlu0 %v1657, 1
        %v1683 = vpop.permute.xlu0 %1682
        %1684 = vrot.lane.b32.xlu0 %v1658, 1
        %v1685 = vpop.permute.xlu0 %1684
        %1686 = vrot.lane.b32.xlu0 %v1659, 1
        %v1687 = vpop.permute.xlu0 %1686
        %1688 = vrot.lane.b32.xlu0 %v1660, 1
        %v1689 = vpop.permute.xlu0 %1688
        %1690 = vrot.lane.b32.xlu0 %v1661, 1
        %v1691 = vpop.permute.xlu0 %1690
        %1692 = vrot.lane.b32.xlu0 %v1662, 1
        %v1693 = vpop.permute.xlu0 %1692
        %1694 = vrot.lane.b32.xlu0 %v1663, 1
        %v1695 = vpop.permute.xlu0 %1694
        %v1696 = vsel %vm1010, %v1693, %v1695
        %v1697 = vsel %vm1010, %v1691, %v1693
        %v1698 = vsel %vm1010, %v1689, %v1691
        %v1699 = vsel %vm1010, %v1687, %v1689
        %v1700 = vsel %vm1010, %v1685, %v1687
        %v1701 = vsel %vm1010, %v1683, %v1685
        %v1702 = vsel %vm1010, %v1681, %v1683
        %v1703 = vsel %vm1010, %v1679, %v1681
        %v1704 = vsel %vm1010, %v1677, %v1679
        %v1705 = vsel %vm1010, %v1675, %v1677
        %v1706 = vsel %vm1010, %v1673, %v1675
        %v1707 = vsel %vm1010, %v1671, %v1673
        %v1708 = vsel %vm1010, %v1669, %v1671
        %v1709 = vsel %vm1010, %v1667, %v1669
        %v1710 = vsel %vm1010, %v1665, %v1667
        %v1711 = vsel %vm1010, %v1695, %v1665
        %1712 = vrot.lane.b32.xlu0 %v1648, 127
        %v1713 = vpop.permute.xlu0 %1712
        %1714 = vrot.lane.b32.xlu0 %v1649, 127
        %v1715 = vpop.permute.xlu0 %1714
        %1716 = vrot.lane.b32.xlu0 %v1650, 127
        %v1717 = vpop.permute.xlu0 %1716
        %1718 = vrot.lane.b32.xlu0 %v1651, 127
        %v1719 = vpop.permute.xlu0 %1718
        %1720 = vrot.lane.b32.xlu0 %v1652, 127
        %v1721 = vpop.permute.xlu0 %1720
        %1722 = vrot.lane.b32.xlu0 %v1653, 127
        %v1723 = vpop.permute.xlu0 %1722
        %1724 = vrot.lane.b32.xlu0 %v1654, 127
        %v1725 = vpop.permute.xlu0 %1724
        %1726 = vrot.lane.b32.xlu0 %v1655, 127
        %v1727 = vpop.permute.xlu0 %1726
        %1728 = vrot.lane.b32.xlu0 %v1656, 127
        %v1729 = vpop.permute.xlu0 %1728
        %1730 = vrot.lane.b32.xlu0 %v1657, 127
        %v1731 = vpop.permute.xlu0 %1730
        %1732 = vrot.lane.b32.xlu0 %v1658, 127
        %v1733 = vpop.permute.xlu0 %1732
        %1734 = vrot.lane.b32.xlu0 %v1659, 127
        %v1735 = vpop.permute.xlu0 %1734
        %1736 = vrot.lane.b32.xlu0 %v1660, 127
        %v1737 = vpop.permute.xlu0 %1736
        %1738 = vrot.lane.b32.xlu0 %v1661, 127
        %v1739 = vpop.permute.xlu0 %1738
        %1740 = vrot.lane.b32.xlu0 %v1662, 127
        %v1741 = vpop.permute.xlu0 %1740
        %1742 = vrot.lane.b32.xlu0 %v1663, 127
        %v1743 = vpop.permute.xlu0 %1742
        %v1744 = vsel %vm1059, %v1741, %v1743
        %v1745 = vsel %vm1059, %v1739, %v1741
        %v1746 = vsel %vm1059, %v1737, %v1739
        %v1747 = vsel %vm1059, %v1735, %v1737
        %v1748 = vsel %vm1059, %v1733, %v1735
        %v1749 = vsel %vm1059, %v1731, %v1733
        %v1750 = vsel %vm1059, %v1729, %v1731
        %v1751 = vsel %vm1059, %v1727, %v1729
        %v1752 = vsel %vm1059, %v1725, %v1727
        %v1753 = vsel %vm1059, %v1723, %v1725
        %v1754 = vsel %vm1059, %v1721, %v1723
        %v1755 = vsel %vm1059, %v1719, %v1721
        %v1756 = vsel %vm1059, %v1717, %v1719
        %v1757 = vsel %vm1059, %v1715, %v1717
        %v1758 = vsel %vm1059, %v1713, %v1715
        %v1759 = vsel %vm1059, %v1743, %v1713
        %v1776 = vrot.slane %v1663, 4
        %v1777 = vrot.slane %v1648, 4
        %v1778 = vrot.slane %v1649, 4
        %v1779 = vrot.slane %v1650, 4
        %v1780 = vrot.slane %v1651, 4
        %v1781 = vrot.slane %v1652, 4
        %v1782 = vrot.slane %v1653, 4
        %v1783 = vrot.slane %v1654, 4
        %v1784 = vrot.slane %v1655, 4
        %v1785 = vrot.slane %v1656, 4
        %v1786 = vrot.slane %v1657, 4
        %v1787 = vrot.slane %v1658, 4
        %v1788 = vrot.slane %v1659, 4
        %v1789 = vrot.slane %v1660, 4
        %v1790 = vrot.slane %v1661, 4
        %v1791 = vrot.slane %v1662, 4
        %v1824 = vrot.slane %v1711, 4
        %v1825 = vrot.slane %v1710, 4
        %v1826 = vrot.slane %v1709, 4
        %v1827 = vrot.slane %v1708, 4
        %v1828 = vrot.slane %v1707, 4
        %v1829 = vrot.slane %v1706, 4
        %v1830 = vrot.slane %v1705, 4
        %v1831 = vrot.slane %v1704, 4
        %v1832 = vrot.slane %v1703, 4
        %v1833 = vrot.slane %v1702, 4
        %v1834 = vrot.slane %v1701, 4
        %v1835 = vrot.slane %v1700, 4
        %v1836 = vrot.slane %v1699, 4
        %v1837 = vrot.slane %v1698, 4
        %v1838 = vrot.slane %v1697, 4
        %v1839 = vrot.slane %v1696, 4
        %v1872 = vrot.slane %v1758, 4
        %v1873 = vrot.slane %v1757, 4
        %v1874 = vrot.slane %v1756, 4
        %v1875 = vrot.slane %v1755, 4
        %v1876 = vrot.slane %v1754, 4
        %v1877 = vrot.slane %v1753, 4
        %v1878 = vrot.slane %v1752, 4
        %v1879 = vrot.slane %v1751, 4
        %v1880 = vrot.slane %v1750, 4
        %v1881 = vrot.slane %v1749, 4
        %v1882 = vrot.slane %v1748, 4
        %v1883 = vrot.slane %v1747, 4
        %v1884 = vrot.slane %v1746, 4
        %v1885 = vrot.slane %v1745, 4
        %v1886 = vrot.slane %v1744, 4
        %v1887 = vrot.slane %v1759, 4
        %v1904 = vsel %vm1220, %v1696, %v1776
        %v1905 = vsel %vm1220, %v1711, %v1777
        %v1906 = vsel %vm1220, %v1710, %v1778
        %v1907 = vsel %vm1220, %v1709, %v1779
        %v1908 = vsel %vm1220, %v1708, %v1780
        %v1909 = vsel %vm1220, %v1707, %v1781
        %v1910 = vsel %vm1220, %v1706, %v1782
        %v1911 = vsel %vm1220, %v1705, %v1783
        %v1912 = vsel %vm1220, %v1704, %v1784
        %v1913 = vsel %vm1220, %v1703, %v1785
        %v1914 = vsel %vm1220, %v1702, %v1786
        %v1915 = vsel %vm1220, %v1701, %v1787
        %v1916 = vsel %vm1220, %v1700, %v1788
        %v1917 = vsel %vm1220, %v1699, %v1789
        %v1918 = vsel %vm1220, %v1698, %v1790
        %v1919 = vsel %vm1220, %v1697, %v1791
        %v1920 = vsel %vm1220, %v1759, %v1824
        %v1921 = vsel %vm1220, %v1758, %v1825
        %v1922 = vsel %vm1220, %v1757, %v1826
        %v1923 = vsel %vm1220, %v1756, %v1827
        %v1924 = vsel %vm1220, %v1755, %v1828
        %v1925 = vsel %vm1220, %v1754, %v1829
        %v1926 = vsel %vm1220, %v1753, %v1830
        %v1927 = vsel %vm1220, %v1752, %v1831
        %v1928 = vsel %vm1220, %v1751, %v1832
        %v1929 = vsel %vm1220, %v1750, %v1833
        %v1930 = vsel %vm1220, %v1749, %v1834
        %v1931 = vsel %vm1220, %v1748, %v1835
        %v1932 = vsel %vm1220, %v1747, %v1836
        %v1933 = vsel %vm1220, %v1746, %v1837
        %v1934 = vsel %vm1220, %v1745, %v1838
        %v1935 = vsel %vm1220, %v1744, %v1839
        %v1936 = vsel %vm1220, %v1648, %v1872
        %v1937 = vsel %vm1220, %v1649, %v1873
        %v1938 = vsel %vm1220, %v1650, %v1874
        %v1939 = vsel %vm1220, %v1651, %v1875
        %v1940 = vsel %vm1220, %v1652, %v1876
        %v1941 = vsel %vm1220, %v1653, %v1877
        %v1942 = vsel %vm1220, %v1654, %v1878
        %v1943 = vsel %vm1220, %v1655, %v1879
        %v1944 = vsel %vm1220, %v1656, %v1880
        %v1945 = vsel %vm1220, %v1657, %v1881
        %v1946 = vsel %vm1220, %v1658, %v1882
        %v1947 = vsel %vm1220, %v1659, %v1883
        %v1948 = vsel %vm1220, %v1660, %v1884
        %v1949 = vsel %vm1220, %v1661, %v1885
        %v1950 = vsel %vm1220, %v1662, %v1886
        %v1951 = vsel %vm1220, %v1663, %v1887
        %v1952 = vld [vmem:[%s7] sm:$0xf]
        %v1953 = vld [vmem:[%s8] sm:$0xf]
        %1955 = vset.pattern.permute.xlu0 0
        %1956 = vperm.xlu0 %1955, %v1953
        %v1957 = vpop.permute.xlu0 %1956
        %v1960 = vsel %vm1276, %v1952, 0
        %v1962 = vsel %vm1220, %v1757, 0
        %v1964 = vsel %vm1220, %v1756, 0
        %v1966 = vsel %vm1220, %v1755, 0
        %v1968 = vsel %vm1220, %v1754, 0
        %v1970 = vsel %vm1220, %v1753, 0
        %v1972 = vsel %vm1220, %v1752, 0
        %v1974 = vsel %vm1220, %v1751, 0
        %v1976 = vsel %vm1220, %v1750, 0
        %v1978 = vsel %vm1220, %v1749, 0
        %v1980 = vsel %vm1220, %v1748, 0
        %v1982 = vsel %vm1220, %v1747, 0
        %v1984 = vsel %vm1220, %v1746, 0
        %v1986 = vsel %vm1220, %v1745, 0
        %v1988 = vsel %vm1220, %v1744, 0
        %v1990 = vsel %vm1220, %v1759, 0
        %v1992 = vsel %vm1220, %v1758, 0
        %1994 = vmatpush.msra.mxu0 0.0
        %1995 = vmatpush.msra.mxu0 0.0
        %1996 = vmatpush.msra.mxu0 0.0
        %1997 = vmatpush.msra.mxu0 0.0
        %1998 = vmatpush.msra.mxu0 0.0
        %1999 = vmatpush.msra.mxu0 0.0
        %2000 = vmatpush.msra.mxu0 0.0
        %2001 = vmatpush.msra.mxu0 0.0
        %2002 = vmatpush.msra.mxu0 0.0
        %2003 = vmatpush.msra.mxu0 0.0
        %2004 = vmatpush.msra.mxu0 0.0
        %2005 = vmatpush.msra.mxu0 %v1962
        %2006 = vmatpush.msra.mxu0 %v1906
        %2007 = vmatpush.msra.mxu0 %v1936
        %2008 = vmatpush.msra.mxu0 %v1920
        %2009 = vmatpush.msra.mxu0 %v1904
        %2010 = vmatmul.f32.gmra.mxu0 %v1960
        %v2011 = vpop.f32.mrf.mxu0
        %v2012 = vadd.f32 %v1957, %v2011
        %2013 = vdwg.mxu0
        %2014 = vmatpush.msra.mxu0 0.0
        %2015 = vmatpush.msra.mxu0 0.0
        %2016 = vmatpush.msra.mxu0 0.0
        %2017 = vmatpush.msra.mxu0 0.0
        %2018 = vmatpush.msra.mxu0 0.0
        %2019 = vmatpush.msra.mxu0 0.0
        %2020 = vmatpush.msra.mxu0 0.0
        %2021 = vmatpush.msra.mxu0 0.0
        %2022 = vmatpush.msra.mxu0 0.0
        %2023 = vmatpush.msra.mxu0 0.0
        %2024 = vmatpush.msra.mxu0 0.0
        %2025 = vmatpush.msra.mxu0 %v1964
        %2026 = vmatpush.msra.mxu0 %v1907
        %2027 = vmatpush.msra.mxu0 %v1937
        %2028 = vmatpush.msra.mxu0 %v1921
        %2029 = vmatpush.msra.mxu0 %v1905
        %2030 = vmatmul.f32.gmra.mxu0 %v1960
        %v2031 = vpop.f32.mrf.mxu0
        %v2032 = vadd.f32 %v1957, %v2031
        %2033 = vdwg.mxu0
        %2034 = vmatpush.msra.mxu0 0.0
        %2035 = vmatpush.msra.mxu0 0.0
        %2036 = vmatpush.msra.mxu0 0.0
        %2037 = vmatpush.msra.mxu0 0.0
        %2038 = vmatpush.msra.mxu0 0.0
        %2039 = vmatpush.msra.mxu0 0.0
        %2040 = vmatpush.msra.mxu0 0.0
        %2041 = vmatpush.msra.mxu0 0.0
        %2042 = vmatpush.msra.mxu0 0.0
        %2043 = vmatpush.msra.mxu0 0.0
        %2044 = vmatpush.msra.mxu0 0.0
        %2045 = vmatpush.msra.mxu0 %v1966
        %2046 = vmatpush.msra.mxu0 %v1908
        %2047 = vmatpush.msra.mxu0 %v1938
        %2048 = vmatpush.msra.mxu0 %v1922
        %2049 = vmatpush.msra.mxu0 %v1906
        %2050 = vmatmul.f32.gmra.mxu0 %v1960
        %v2051 = vpop.f32.mrf.mxu0
        %v2052 = vadd.f32 %v1957, %v2051
        %2053 = vdwg.mxu0
        %2054 = vmatpush.msra.mxu0 0.0
        %2055 = vmatpush.msra.mxu0 0.0
        %2056 = vmatpush.msra.mxu0 0.0
        %2057 = vmatpush.msra.mxu0 0.0
        %2058 = vmatpush.msra.mxu0 0.0
        %2059 = vmatpush.msra.mxu0 0.0
        %2060 = vmatpush.msra.mxu0 0.0
        %2061 = vmatpush.msra.mxu0 0.0
        %2062 = vmatpush.msra.mxu0 0.0
        %2063 = vmatpush.msra.mxu0 0.0
        %2064 = vmatpush.msra.mxu0 0.0
        %2065 = vmatpush.msra.mxu0 %v1968
        %2066 = vmatpush.msra.mxu0 %v1909
        %2067 = vmatpush.msra.mxu0 %v1939
        %2068 = vmatpush.msra.mxu0 %v1923
        %2069 = vmatpush.msra.mxu0 %v1907
        %2070 = vmatmul.f32.gmra.mxu0 %v1960
        %v2071 = vpop.f32.mrf.mxu0
        %v2072 = vadd.f32 %v1957, %v2071
        %2073 = vdwg.mxu0
        %2074 = vmatpush.msra.mxu0 0.0
        %2075 = vmatpush.msra.mxu0 0.0
        %2076 = vmatpush.msra.mxu0 0.0
        %2077 = vmatpush.msra.mxu0 0.0
        %2078 = vmatpush.msra.mxu0 0.0
        %2079 = vmatpush.msra.mxu0 0.0
        %2080 = vmatpush.msra.mxu0 0.0
        %2081 = vmatpush.msra.mxu0 0.0
        %2082 = vmatpush.msra.mxu0 0.0
        %2083 = vmatpush.msra.mxu0 0.0
        %2084 = vmatpush.msra.mxu0 0.0
        %2085 = vmatpush.msra.mxu0 %v1970
        %2086 = vmatpush.msra.mxu0 %v1910
        %2087 = vmatpush.msra.mxu0 %v1940
        %2088 = vmatpush.msra.mxu0 %v1924
        %2089 = vmatpush.msra.mxu0 %v1908
        %2090 = vmatmul.f32.gmra.mxu0 %v1960
        %v2091 = vpop.f32.mrf.mxu0
        %v2092 = vadd.f32 %v1957, %v2091
        %2093 = vdwg.mxu0
        %2094 = vmatpush.msra.mxu0 0.0
        %2095 = vmatpush.msra.mxu0 0.0
        %2096 = vmatpush.msra.mxu0 0.0
        %2097 = vmatpush.msra.mxu0 0.0
        %2098 = vmatpush.msra.mxu0 0.0
        %2099 = vmatpush.msra.mxu0 0.0
        %2100 = vmatpush.msra.mxu0 0.0
        %2101 = vmatpush.msra.mxu0 0.0
        %2102 = vmatpush.msra.mxu0 0.0
        %2103 = vmatpush.msra.mxu0 0.0
        %2104 = vmatpush.msra.mxu0 0.0
        %2105 = vmatpush.msra.mxu0 %v1972
        %2106 = vmatpush.msra.mxu0 %v1911
        %2107 = vmatpush.msra.mxu0 %v1941
        %2108 = vmatpush.msra.mxu0 %v1925
        %2109 = vmatpush.msra.mxu0 %v1909
        %2110 = vmatmul.f32.gmra.mxu0 %v1960
        %v2111 = vpop.f32.mrf.mxu0
        %v2112 = vadd.f32 %v1957, %v2111
        %2113 = vdwg.mxu0
        %2114 = vmatpush.msra.mxu0 0.0
        %2115 = vmatpush.msra.mxu0 0.0
        %2116 = vmatpush.msra.mxu0 0.0
        %2117 = vmatpush.msra.mxu0 0.0
        %2118 = vmatpush.msra.mxu0 0.0
        %2119 = vmatpush.msra.mxu0 0.0
        %2120 = vmatpush.msra.mxu0 0.0
        %2121 = vmatpush.msra.mxu0 0.0
        %2122 = vmatpush.msra.mxu0 0.0
        %2123 = vmatpush.msra.mxu0 0.0
        %2124 = vmatpush.msra.mxu0 0.0
        %2125 = vmatpush.msra.mxu0 %v1974
        %2126 = vmatpush.msra.mxu0 %v1912
        %2127 = vmatpush.msra.mxu0 %v1942
        %2128 = vmatpush.msra.mxu0 %v1926
        %2129 = vmatpush.msra.mxu0 %v1910
        %2130 = vmatmul.f32.gmra.mxu0 %v1960
        %v2131 = vpop.f32.mrf.mxu0
        %v2132 = vadd.f32 %v1957, %v2131
        %2133 = vdwg.mxu0
        %2134 = vmatpush.msra.mxu0 0.0
        %2135 = vmatpush.msra.mxu0 0.0
        %2136 = vmatpush.msra.mxu0 0.0
        %2137 = vmatpush.msra.mxu0 0.0
        %2138 = vmatpush.msra.mxu0 0.0
        %2139 = vmatpush.msra.mxu0 0.0
        %2140 = vmatpush.msra.mxu0 0.0
        %2141 = vmatpush.msra.mxu0 0.0
        %2142 = vmatpush.msra.mxu0 0.0
        %2143 = vmatpush.msra.mxu0 0.0
        %2144 = vmatpush.msra.mxu0 0.0
        %2145 = vmatpush.msra.mxu0 %v1976
        %2146 = vmatpush.msra.mxu0 %v1913
        %2147 = vmatpush.msra.mxu0 %v1943
        %2148 = vmatpush.msra.mxu0 %v1927
        %2149 = vmatpush.msra.mxu0 %v1911
        %2150 = vmatmul.f32.gmra.mxu0 %v1960
        %v2151 = vpop.f32.mrf.mxu0
        %v2152 = vadd.f32 %v1957, %v2151
        %2153 = vdwg.mxu0
        %2154 = vmatpush.msra.mxu0 0.0
        %2155 = vmatpush.msra.mxu0 0.0
        %2156 = vmatpush.msra.mxu0 0.0
        %2157 = vmatpush.msra.mxu0 0.0
        %2158 = vmatpush.msra.mxu0 0.0
        %2159 = vmatpush.msra.mxu0 0.0
        %2160 = vmatpush.msra.mxu0 0.0
        %2161 = vmatpush.msra.mxu0 0.0
        %2162 = vmatpush.msra.mxu0 0.0
        %2163 = vmatpush.msra.mxu0 0.0
        %2164 = vmatpush.msra.mxu0 0.0
        %2165 = vmatpush.msra.mxu0 %v1978
        %2166 = vmatpush.msra.mxu0 %v1914
        %2167 = vmatpush.msra.mxu0 %v1944
        %2168 = vmatpush.msra.mxu0 %v1928
        %2169 = vmatpush.msra.mxu0 %v1912
        %2170 = vmatmul.f32.gmra.mxu0 %v1960
        %v2171 = vpop.f32.mrf.mxu0
        %v2172 = vadd.f32 %v1957, %v2171
        %2173 = vdwg.mxu0
        %2174 = vmatpush.msra.mxu0 0.0
        %2175 = vmatpush.msra.mxu0 0.0
        %2176 = vmatpush.msra.mxu0 0.0
        %2177 = vmatpush.msra.mxu0 0.0
        %2178 = vmatpush.msra.mxu0 0.0
        %2179 = vmatpush.msra.mxu0 0.0
        %2180 = vmatpush.msra.mxu0 0.0
        %2181 = vmatpush.msra.mxu0 0.0
        %2182 = vmatpush.msra.mxu0 0.0
        %2183 = vmatpush.msra.mxu0 0.0
        %2184 = vmatpush.msra.mxu0 0.0
        %2185 = vmatpush.msra.mxu0 %v1980
        %2186 = vmatpush.msra.mxu0 %v1915
        %2187 = vmatpush.msra.mxu0 %v1945
        %2188 = vmatpush.msra.mxu0 %v1929
        %2189 = vmatpush.msra.mxu0 %v1913
        %2190 = vmatmul.f32.gmra.mxu0 %v1960
        %v2191 = vpop.f32.mrf.mxu0
        %v2192 = vadd.f32 %v1957, %v2191
        %2193 = vdwg.mxu0
        %2194 = vmatpush.msra.mxu0 0.0
        %2195 = vmatpush.msra.mxu0 0.0
        %2196 = vmatpush.msra.mxu0 0.0
        %2197 = vmatpush.msra.mxu0 0.0
        %2198 = vmatpush.msra.mxu0 0.0
        %2199 = vmatpush.msra.mxu0 0.0
        %2200 = vmatpush.msra.mxu0 0.0
        %2201 = vmatpush.msra.mxu0 0.0
        %2202 = vmatpush.msra.mxu0 0.0
        %2203 = vmatpush.msra.mxu0 0.0
        %2204 = vmatpush.msra.mxu0 0.0
        %2205 = vmatpush.msra.mxu0 %v1982
        %2206 = vmatpush.msra.mxu0 %v1916
        %2207 = vmatpush.msra.mxu0 %v1946
        %2208 = vmatpush.msra.mxu0 %v1930
        %2209 = vmatpush.msra.mxu0 %v1914
        %2210 = vmatmul.f32.gmra.mxu0 %v1960
        %v2211 = vpop.f32.mrf.mxu0
        %v2212 = vadd.f32 %v1957, %v2211
        %2213 = vdwg.mxu0
        %2214 = vmatpush.msra.mxu0 0.0
        %2215 = vmatpush.msra.mxu0 0.0
        %2216 = vmatpush.msra.mxu0 0.0
        %2217 = vmatpush.msra.mxu0 0.0
        %2218 = vmatpush.msra.mxu0 0.0
        %2219 = vmatpush.msra.mxu0 0.0
        %2220 = vmatpush.msra.mxu0 0.0
        %2221 = vmatpush.msra.mxu0 0.0
        %2222 = vmatpush.msra.mxu0 0.0
        %2223 = vmatpush.msra.mxu0 0.0
        %2224 = vmatpush.msra.mxu0 0.0
        %2225 = vmatpush.msra.mxu0 %v1984
        %2226 = vmatpush.msra.mxu0 %v1917
        %2227 = vmatpush.msra.mxu0 %v1947
        %2228 = vmatpush.msra.mxu0 %v1931
        %2229 = vmatpush.msra.mxu0 %v1915
        %2230 = vmatmul.f32.gmra.mxu0 %v1960
        %v2231 = vpop.f32.mrf.mxu0
        %v2232 = vadd.f32 %v1957, %v2231
        %2233 = vdwg.mxu0
        %2234 = vmatpush.msra.mxu0 0.0
        %2235 = vmatpush.msra.mxu0 0.0
        %2236 = vmatpush.msra.mxu0 0.0
        %2237 = vmatpush.msra.mxu0 0.0
        %2238 = vmatpush.msra.mxu0 0.0
        %2239 = vmatpush.msra.mxu0 0.0
        %2240 = vmatpush.msra.mxu0 0.0
        %2241 = vmatpush.msra.mxu0 0.0
        %2242 = vmatpush.msra.mxu0 0.0
        %2243 = vmatpush.msra.mxu0 0.0
        %2244 = vmatpush.msra.mxu0 0.0
        %2245 = vmatpush.msra.mxu0 %v1986
        %2246 = vmatpush.msra.mxu0 %v1918
        %2247 = vmatpush.msra.mxu0 %v1948
        %2248 = vmatpush.msra.mxu0 %v1932
        %2249 = vmatpush.msra.mxu0 %v1916
        %2250 = vmatmul.f32.gmra.mxu0 %v1960
        %v2251 = vpop.f32.mrf.mxu0
        %v2252 = vadd.f32 %v1957, %v2251
        %2253 = vdwg.mxu0
        %2254 = vmatpush.msra.mxu0 0.0
        %2255 = vmatpush.msra.mxu0 0.0
        %2256 = vmatpush.msra.mxu0 0.0
        %2257 = vmatpush.msra.mxu0 0.0
        %2258 = vmatpush.msra.mxu0 0.0
        %2259 = vmatpush.msra.mxu0 0.0
        %2260 = vmatpush.msra.mxu0 0.0
        %2261 = vmatpush.msra.mxu0 0.0
        %2262 = vmatpush.msra.mxu0 0.0
        %2263 = vmatpush.msra.mxu0 0.0
        %2264 = vmatpush.msra.mxu0 0.0
        %2265 = vmatpush.msra.mxu0 %v1988
        %2266 = vmatpush.msra.mxu0 %v1919
        %2267 = vmatpush.msra.mxu0 %v1949
        %2268 = vmatpush.msra.mxu0 %v1933
        %2269 = vmatpush.msra.mxu0 %v1917
        %2270 = vmatmul.f32.gmra.mxu0 %v1960
        %v2271 = vpop.f32.mrf.mxu0
        %v2272 = vadd.f32 %v1957, %v2271
        %2273 = vdwg.mxu0
        %2274 = vmatpush.msra.mxu0 0.0
        %2275 = vmatpush.msra.mxu0 0.0
        %2276 = vmatpush.msra.mxu0 0.0
        %2277 = vmatpush.msra.mxu0 0.0
        %2278 = vmatpush.msra.mxu0 0.0
        %2279 = vmatpush.msra.mxu0 0.0
        %2280 = vmatpush.msra.mxu0 0.0
        %2281 = vmatpush.msra.mxu0 0.0
        %2282 = vmatpush.msra.mxu0 0.0
        %2283 = vmatpush.msra.mxu0 0.0
        %2284 = vmatpush.msra.mxu0 0.0
        %2285 = vmatpush.msra.mxu0 %v1990
        %2286 = vmatpush.msra.mxu0 %v1904
        %2287 = vmatpush.msra.mxu0 %v1950
        %2288 = vmatpush.msra.mxu0 %v1934
        %2289 = vmatpush.msra.mxu0 %v1918
        %2290 = vmatmul.f32.gmra.mxu0 %v1960
        %v2291 = vpop.f32.mrf.mxu0
        %v2292 = vadd.f32 %v1957, %v2291
        %2293 = vdwg.mxu0
        %2294 = vmatpush.msra.mxu0 0.0
        %2295 = vmatpush.msra.mxu0 0.0
        %2296 = vmatpush.msra.mxu0 0.0
        %2297 = vmatpush.msra.mxu0 0.0
        %2298 = vmatpush.msra.mxu0 0.0
        %2299 = vmatpush.msra.mxu0 0.0
        %2300 = vmatpush.msra.mxu0 0.0
        %2301 = vmatpush.msra.mxu0 0.0
        %2302 = vmatpush.msra.mxu0 0.0
        %2303 = vmatpush.msra.mxu0 0.0
        %2304 = vmatpush.msra.mxu0 0.0
        %2305 = vmatpush.msra.mxu0 %v1992
        %2306 = vmatpush.msra.mxu0 %v1905
        %2307 = vmatpush.msra.mxu0 %v1951
        %2308 = vmatpush.msra.mxu0 %v1935
        %2309 = vmatpush.msra.mxu0 %v1919
        %2310 = vmatmul.f32.gmra.mxu0 %v1960
        %v2311 = vpop.f32.mrf.mxu0
        %v2312 = vadd.f32 %v1957, %v2311
        %2313 = vdwg.mxu0
        %v2314 = vadd.f32 %v2012, %v960
        %v2315 = vadd.f32 %v2032, %v961
        %v2316 = vadd.f32 %v2052, %v962
        %v2317 = vadd.f32 %v2072, %v963
        %v2318 = vadd.f32 %v2092, %v964
        %v2319 = vadd.f32 %v2112, %v965
        %v2320 = vadd.f32 %v2132, %v966
        %v2321 = vadd.f32 %v2152, %v967
        %v2322 = vadd.f32 %v2172, %v968
        %v2323 = vadd.f32 %v2192, %v969
        %v2324 = vadd.f32 %v2212, %v970
        %v2325 = vadd.f32 %v2232, %v971
        %v2326 = vadd.f32 %v2252, %v972
        %v2327 = vadd.f32 %v2272, %v973
        %v2328 = vadd.f32 %v2292, %v974
        %v2329 = vadd.f32 %v2312, %v975
        %v2330 = vmax.f32 %v2314, 0.0
        %v2331 = vmax.f32 %v2315, 0.0
        %v2332 = vmax.f32 %v2316, 0.0
        %v2333 = vmax.f32 %v2317, 0.0
        %v2334 = vmax.f32 %v2318, 0.0
        %v2335 = vmax.f32 %v2319, 0.0
        %v2336 = vmax.f32 %v2320, 0.0
        %v2337 = vmax.f32 %v2321, 0.0
        %v2338 = vmax.f32 %v2322, 0.0
        %v2339 = vmax.f32 %v2323, 0.0
        %v2340 = vmax.f32 %v2324, 0.0
        %v2341 = vmax.f32 %v2325, 0.0
        %v2342 = vmax.f32 %v2326, 0.0
        %v2343 = vmax.f32 %v2327, 0.0
        %v2344 = vmax.f32 %v2328, 0.0
        %v2345 = vmax.f32 %v2329, 0.0
        %v2346 = vld [vmem:[%s9] sm:$0xf]
        %v2347 = vld [vmem:[%s10] sm:$0xf]
        %2349 = vset.pattern.permute.xlu0 0
        %2350 = vperm.xlu0 %2349, %v2347
        %v2351 = vpop.permute.xlu0 %2350
        %vm2353 = vcmask 31744
        %v2355 = vsel %vm2353, %v2346, 0
        %v2358 = vsel %vm1220, %v2330, 0
        %v2361 = vsel %vm1220, %v2331, 0
        %v2364 = vsel %vm1220, %v2332, 0
        %v2367 = vsel %vm1220, %v2333, 0
        %v2370 = vsel %vm1220, %v2334, 0
        %v2373 = vsel %vm1220, %v2335, 0
        %v2376 = vsel %vm1220, %v2336, 0
        %v2379 = vsel %vm1220, %v2337, 0
        %v2382 = vsel %vm1220, %v2338, 0
        %v2385 = vsel %vm1220, %v2339, 0
        %v2388 = vsel %vm1220, %v2340, 0
        %v2391 = vsel %vm1220, %v2341, 0
        %v2394 = vsel %vm1220, %v2342, 0
        %v2397 = vsel %vm1220, %v2343, 0
        %v2400 = vsel %vm1220, %v2344, 0
        %v2403 = vsel %vm1220, %v2345, 0
        %2405 = vmatpush.msra.mxu0 0.0
        %2406 = vmatpush.msra.mxu0 0.0
        %2407 = vmatpush.msra.mxu0 0.0
        %2408 = vmatpush.msra.mxu0 0.0
        %2409 = vmatpush.msra.mxu0 0.0
        %2410 = vmatpush.msra.mxu0 0.0
        %2411 = vmatpush.msra.mxu0 0.0
        %2412 = vmatpush.msra.mxu0 0.0
        %2413 = vmatpush.msra.mxu0 0.0
        %2414 = vmatpush.msra.mxu0 0.0
        %2415 = vmatpush.msra.mxu0 0.0
        %2416 = vmatpush.msra.mxu0 0.0
        %2417 = vmatpush.msra.mxu0 0.0
        %2418 = vmatpush.msra.mxu0 0.0
        %2419 = vmatpush.msra.mxu0 0.0
        %2420 = vmatpush.msra.mxu0 %v2358
        %2421 = vmatmul.f32.gmra.mxu0 %v2355
        %v2422 = vpop.f32.mrf.mxu0
        %v2423 = vadd.f32 %v2351, %v2422
        %2424 = vdwg.mxu0
        %2425 = vmatpush.msra.mxu0 0.0
        %2426 = vmatpush.msra.mxu0 0.0
        %2427 = vmatpush.msra.mxu0 0.0
        %2428 = vmatpush.msra.mxu0 0.0
        %2429 = vmatpush.msra.mxu0 0.0
        %2430 = vmatpush.msra.mxu0 0.0
        %2431 = vmatpush.msra.mxu0 0.0
        %2432 = vmatpush.msra.mxu0 0.0
        %2433 = vmatpush.msra.mxu0 0.0
        %2434 = vmatpush.msra.mxu0 0.0
        %2435 = vmatpush.msra.mxu0 0.0
        %2436 = vmatpush.msra.mxu0 0.0
        %2437 = vmatpush.msra.mxu0 0.0
        %2438 = vmatpush.msra.mxu0 0.0
        %2439 = vmatpush.msra.mxu0 0.0
        %2440 = vmatpush.msra.mxu0 %v2361
        %2441 = vmatmul.f32.gmra.mxu0 %v2355
        %v2442 = vpop.f32.mrf.mxu0
        %v2443 = vadd.f32 %v2351, %v2442
        %2444 = vdwg.mxu0
        %2445 = vmatpush.msra.mxu0 0.0
        %2446 = vmatpush.msra.mxu0 0.0
        %2447 = vmatpush.msra.mxu0 0.0
        %2448 = vmatpush.msra.mxu0 0.0
        %2449 = vmatpush.msra.mxu0 0.0
        %2450 = vmatpush.msra.mxu0 0.0
        %2451 = vmatpush.msra.mxu0 0.0
        %2452 = vmatpush.msra.mxu0 0.0
        %2453 = vmatpush.msra.mxu0 0.0
        %2454 = vmatpush.msra.mxu0 0.0
        %2455 = vmatpush.msra.mxu0 0.0
        %2456 = vmatpush.msra.mxu0 0.0
        %2457 = vmatpush.msra.mxu0 0.0
        %2458 = vmatpush.msra.mxu0 0.0
        %2459 = vmatpush.msra.mxu0 0.0
        %2460 = vmatpush.msra.mxu0 %v2364
        %2461 = vmatmul.f32.gmra.mxu0 %v2355
        %v2462 = vpop.f32.mrf.mxu0
        %v2463 = vadd.f32 %v2351, %v2462
        %2464 = vdwg.mxu0
        %2465 = vmatpush.msra.mxu0 0.0
        %2466 = vmatpush.msra.mxu0 0.0
        %2467 = vmatpush.msra.mxu0 0.0
        %2468 = vmatpush.msra.mxu0 0.0
        %2469 = vmatpush.msra.mxu0 0.0
        %2470 = vmatpush.msra.mxu0 0.0
        %2471 = vmatpush.msra.mxu0 0.0
        %2472 = vmatpush.msra.mxu0 0.0
        %2473 = vmatpush.msra.mxu0 0.0
        %2474 = vmatpush.msra.mxu0 0.0
        %2475 = vmatpush.msra.mxu0 0.0
        %2476 = vmatpush.msra.mxu0 0.0
        %2477 = vmatpush.msra.mxu0 0.0
        %2478 = vmatpush.msra.mxu0 0.0
        %2479 = vmatpush.msra.mxu0 0.0
        %2480 = vmatpush.msra.mxu0 %v2367
        %2481 = vmatmul.f32.gmra.mxu0 %v2355
        %v2482 = vpop.f32.mrf.mxu0
        %v2483 = vadd.f32 %v2351, %v2482
        %2484 = vdwg.mxu0
        %2485 = vmatpush.msra.mxu0 0.0
        %2486 = vmatpush.msra.mxu0 0.0
        %2487 = vmatpush.msra.mxu0 0.0
        %2488 = vmatpush.msra.mxu0 0.0
        %2489 = vmatpush.msra.mxu0 0.0
        %2490 = vmatpush.msra.mxu0 0.0
        %2491 = vmatpush.msra.mxu0 0.0
        %2492 = vmatpush.msra.mxu0 0.0
        %2493 = vmatpush.msra.mxu0 0.0
        %2494 = vmatpush.msra.mxu0 0.0
        %2495 = vmatpush.msra.mxu0 0.0
        %2496 = vmatpush.msra.mxu0 0.0
        %2497 = vmatpush.msra.mxu0 0.0
        %2498 = vmatpush.msra.mxu0 0.0
        %2499 = vmatpush.msra.mxu0 0.0
        %2500 = vmatpush.msra.mxu0 %v2370
        %2501 = vmatmul.f32.gmra.mxu0 %v2355
        %v2502 = vpop.f32.mrf.mxu0
        %v2503 = vadd.f32 %v2351, %v2502
        %2504 = vdwg.mxu0
        %2505 = vmatpush.msra.mxu0 0.0
        %2506 = vmatpush.msra.mxu0 0.0
        %2507 = vmatpush.msra.mxu0 0.0
        %2508 = vmatpush.msra.mxu0 0.0
        %2509 = vmatpush.msra.mxu0 0.0
        %2510 = vmatpush.msra.mxu0 0.0
        %2511 = vmatpush.msra.mxu0 0.0
        %2512 = vmatpush.msra.mxu0 0.0
        %2513 = vmatpush.msra.mxu0 0.0
        %2514 = vmatpush.msra.mxu0 0.0
        %2515 = vmatpush.msra.mxu0 0.0
        %2516 = vmatpush.msra.mxu0 0.0
        %2517 = vmatpush.msra.mxu0 0.0
        %2518 = vmatpush.msra.mxu0 0.0
        %2519 = vmatpush.msra.mxu0 0.0
        %2520 = vmatpush.msra.mxu0 %v2373
        %2521 = vmatmul.f32.gmra.mxu0 %v2355
        %v2522 = vpop.f32.mrf.mxu0
        %v2523 = vadd.f32 %v2351, %v2522
        %2524 = vdwg.mxu0
        %2525 = vmatpush.msra.mxu0 0.0
        %2526 = vmatpush.msra.mxu0 0.0
        %2527 = vmatpush.msra.mxu0 0.0
        %2528 = vmatpush.msra.mxu0 0.0
        %2529 = vmatpush.msra.mxu0 0.0
        %2530 = vmatpush.msra.mxu0 0.0
        %2531 = vmatpush.msra.mxu0 0.0
        %2532 = vmatpush.msra.mxu0 0.0
        %2533 = vmatpush.msra.mxu0 0.0
        %2534 = vmatpush.msra.mxu0 0.0
        %2535 = vmatpush.msra.mxu0 0.0
        %2536 = vmatpush.msra.mxu0 0.0
        %2537 = vmatpush.msra.mxu0 0.0
        %2538 = vmatpush.msra.mxu0 0.0
        %2539 = vmatpush.msra.mxu0 0.0
        %2540 = vmatpush.msra.mxu0 %v2376
        %2541 = vmatmul.f32.gmra.mxu0 %v2355
        %v2542 = vpop.f32.mrf.mxu0
        %v2543 = vadd.f32 %v2351, %v2542
        %2544 = vdwg.mxu0
        %2545 = vmatpush.msra.mxu0 0.0
        %2546 = vmatpush.msra.mxu0 0.0
        %2547 = vmatpush.msra.mxu0 0.0
        %2548 = vmatpush.msra.mxu0 0.0
        %2549 = vmatpush.msra.mxu0 0.0
        %2550 = vmatpush.msra.mxu0 0.0
        %2551 = vmatpush.msra.mxu0 0.0
        %2552 = vmatpush.msra.mxu0 0.0
        %2553 = vmatpush.msra.mxu0 0.0
        %2554 = vmatpush.msra.mxu0 0.0
        %2555 = vmatpush.msra.mxu0 0.0
        %2556 = vmatpush.msra.mxu0 0.0
        %2557 = vmatpush.msra.mxu0 0.0
        %2558 = vmatpush.msra.mxu0 0.0
        %2559 = vmatpush.msra.mxu0 0.0
        %2560 = vmatpush.msra.mxu0 %v2379
        %2561 = vmatmul.f32.gmra.mxu0 %v2355
        %v2562 = vpop.f32.mrf.mxu0
        %v2563 = vadd.f32 %v2351, %v2562
        %2564 = vdwg.mxu0
        %2565 = vmatpush.msra.mxu0 0.0
        %2566 = vmatpush.msra.mxu0 0.0
        %2567 = vmatpush.msra.mxu0 0.0
        %2568 = vmatpush.msra.mxu0 0.0
        %2569 = vmatpush.msra.mxu0 0.0
        %2570 = vmatpush.msra.mxu0 0.0
        %2571 = vmatpush.msra.mxu0 0.0
        %2572 = vmatpush.msra.mxu0 0.0
        %2573 = vmatpush.msra.mxu0 0.0
        %2574 = vmatpush.msra.mxu0 0.0
        %2575 = vmatpush.msra.mxu0 0.0
        %2576 = vmatpush.msra.mxu0 0.0
        %2577 = vmatpush.msra.mxu0 0.0
        %2578 = vmatpush.msra.mxu0 0.0
        %2579 = vmatpush.msra.mxu0 0.0
        %2580 = vmatpush.msra.mxu0 %v2382
        %2581 = vmatmul.f32.gmra.mxu0 %v2355
        %v2582 = vpop.f32.mrf.mxu0
        %v2583 = vadd.f32 %v2351, %v2582
        %2584 = vdwg.mxu0
        %2585 = vmatpush.msra.mxu0 0.0
        %2586 = vmatpush.msra.mxu0 0.0
        %2587 = vmatpush.msra.mxu0 0.0
        %2588 = vmatpush.msra.mxu0 0.0
        %2589 = vmatpush.msra.mxu0 0.0
        %2590 = vmatpush.msra.mxu0 0.0
        %2591 = vmatpush.msra.mxu0 0.0
        %2592 = vmatpush.msra.mxu0 0.0
        %2593 = vmatpush.msra.mxu0 0.0
        %2594 = vmatpush.msra.mxu0 0.0
        %2595 = vmatpush.msra.mxu0 0.0
        %2596 = vmatpush.msra.mxu0 0.0
        %2597 = vmatpush.msra.mxu0 0.0
        %2598 = vmatpush.msra.mxu0 0.0
        %2599 = vmatpush.msra.mxu0 0.0
        %2600 = vmatpush.msra.mxu0 %v2385
        %2601 = vmatmul.f32.gmra.mxu0 %v2355
        %v2602 = vpop.f32.mrf.mxu0
        %v2603 = vadd.f32 %v2351, %v2602
        %2604 = vdwg.mxu0
        %2605 = vmatpush.msra.mxu0 0.0
        %2606 = vmatpush.msra.mxu0 0.0
        %2607 = vmatpush.msra.mxu0 0.0
        %2608 = vmatpush.msra.mxu0 0.0
        %2609 = vmatpush.msra.mxu0 0.0
        %2610 = vmatpush.msra.mxu0 0.0
        %2611 = vmatpush.msra.mxu0 0.0
        %2612 = vmatpush.msra.mxu0 0.0
        %2613 = vmatpush.msra.mxu0 0.0
        %2614 = vmatpush.msra.mxu0 0.0
        %2615 = vmatpush.msra.mxu0 0.0
        %2616 = vmatpush.msra.mxu0 0.0
        %2617 = vmatpush.msra.mxu0 0.0
        %2618 = vmatpush.msra.mxu0 0.0
        %2619 = vmatpush.msra.mxu0 0.0
        %2620 = vmatpush.msra.mxu0 %v2388
        %2621 = vmatmul.f32.gmra.mxu0 %v2355
        %v2622 = vpop.f32.mrf.mxu0
        %v2623 = vadd.f32 %v2351, %v2622
        %2624 = vdwg.mxu0
        %2625 = vmatpush.msra.mxu0 0.0
        %2626 = vmatpush.msra.mxu0 0.0
        %2627 = vmatpush.msra.mxu0 0.0
        %2628 = vmatpush.msra.mxu0 0.0
        %2629 = vmatpush.msra.mxu0 0.0
        %2630 = vmatpush.msra.mxu0 0.0
        %2631 = vmatpush.msra.mxu0 0.0
        %2632 = vmatpush.msra.mxu0 0.0
        %2633 = vmatpush.msra.mxu0 0.0
        %2634 = vmatpush.msra.mxu0 0.0
        %2635 = vmatpush.msra.mxu0 0.0
        %2636 = vmatpush.msra.mxu0 0.0
        %2637 = vmatpush.msra.mxu0 0.0
        %2638 = vmatpush.msra.mxu0 0.0
        %2639 = vmatpush.msra.mxu0 0.0
        %2640 = vmatpush.msra.mxu0 %v2391
        %2641 = vmatmul.f32.gmra.mxu0 %v2355
        %v2642 = vpop.f32.mrf.mxu0
        %v2643 = vadd.f32 %v2351, %v2642
        %2644 = vdwg.mxu0
        %2645 = vmatpush.msra.mxu0 0.0
        %2646 = vmatpush.msra.mxu0 0.0
        %2647 = vmatpush.msra.mxu0 0.0
        %2648 = vmatpush.msra.mxu0 0.0
        %2649 = vmatpush.msra.mxu0 0.0
        %2650 = vmatpush.msra.mxu0 0.0
        %2651 = vmatpush.msra.mxu0 0.0
        %2652 = vmatpush.msra.mxu0 0.0
        %2653 = vmatpush.msra.mxu0 0.0
        %2654 = vmatpush.msra.mxu0 0.0
        %2655 = vmatpush.msra.mxu0 0.0
        %2656 = vmatpush.msra.mxu0 0.0
        %2657 = vmatpush.msra.mxu0 0.0
        %2658 = vmatpush.msra.mxu0 0.0
        %2659 = vmatpush.msra.mxu0 0.0
        %2660 = vmatpush.msra.mxu0 %v2394
        %2661 = vmatmul.f32.gmra.mxu0 %v2355
        %v2662 = vpop.f32.mrf.mxu0
        %v2663 = vadd.f32 %v2351, %v2662
        %2664 = vdwg.mxu0
        %2665 = vmatpush.msra.mxu0 0.0
        %2666 = vmatpush.msra.mxu0 0.0
        %2667 = vmatpush.msra.mxu0 0.0
        %2668 = vmatpush.msra.mxu0 0.0
        %2669 = vmatpush.msra.mxu0 0.0
        %2670 = vmatpush.msra.mxu0 0.0
        %2671 = vmatpush.msra.mxu0 0.0
        %2672 = vmatpush.msra.mxu0 0.0
        %2673 = vmatpush.msra.mxu0 0.0
        %2674 = vmatpush.msra.mxu0 0.0
        %2675 = vmatpush.msra.mxu0 0.0
        %2676 = vmatpush.msra.mxu0 0.0
        %2677 = vmatpush.msra.mxu0 0.0
        %2678 = vmatpush.msra.mxu0 0.0
        %2679 = vmatpush.msra.mxu0 0.0
        %2680 = vmatpush.msra.mxu0 %v2397
        %2681 = vmatmul.f32.gmra.mxu0 %v2355
        %v2682 = vpop.f32.mrf.mxu0
        %v2683 = vadd.f32 %v2351, %v2682
        %2684 = vdwg.mxu0
        %2685 = vmatpush.msra.mxu0 0.0
        %2686 = vmatpush.msra.mxu0 0.0
        %2687 = vmatpush.msra.mxu0 0.0
        %2688 = vmatpush.msra.mxu0 0.0
        %2689 = vmatpush.msra.mxu0 0.0
        %2690 = vmatpush.msra.mxu0 0.0
        %2691 = vmatpush.msra.mxu0 0.0
        %2692 = vmatpush.msra.mxu0 0.0
        %2693 = vmatpush.msra.mxu0 0.0
        %2694 = vmatpush.msra.mxu0 0.0
        %2695 = vmatpush.msra.mxu0 0.0
        %2696 = vmatpush.msra.mxu0 0.0
        %2697 = vmatpush.msra.mxu0 0.0
        %2698 = vmatpush.msra.mxu0 0.0
        %2699 = vmatpush.msra.mxu0 0.0
        %2700 = vmatpush.msra.mxu0 %v2400
        %2701 = vmatmul.f32.gmra.mxu0 %v2355
        %v2702 = vpop.f32.mrf.mxu0
        %v2703 = vadd.f32 %v2351, %v2702
        %2704 = vdwg.mxu0
        %2705 = vmatpush.msra.mxu0 0.0
        %2706 = vmatpush.msra.mxu0 0.0
        %2707 = vmatpush.msra.mxu0 0.0
        %2708 = vmatpush.msra.mxu0 0.0
        %2709 = vmatpush.msra.mxu0 0.0
        %2710 = vmatpush.msra.mxu0 0.0
        %2711 = vmatpush.msra.mxu0 0.0
        %2712 = vmatpush.msra.mxu0 0.0
        %2713 = vmatpush.msra.mxu0 0.0
        %2714 = vmatpush.msra.mxu0 0.0
        %2715 = vmatpush.msra.mxu0 0.0
        %2716 = vmatpush.msra.mxu0 0.0
        %2717 = vmatpush.msra.mxu0 0.0
        %2718 = vmatpush.msra.mxu0 0.0
        %2719 = vmatpush.msra.mxu0 0.0
        %2720 = vmatpush.msra.mxu0 %v2403
        %2721 = vmatmul.f32.gmra.mxu0 %v2355
        %v2722 = vpop.f32.mrf.mxu0
        %v2723 = vadd.f32 %v2351, %v2722
        %2724 = vdwg.mxu0
        %v2725 = vmax.f32 %v2423, 0.0
        %v2726 = vmax.f32 %v2443, 0.0
        %v2727 = vmax.f32 %v2463, 0.0
        %v2728 = vmax.f32 %v2483, 0.0
        %v2729 = vmax.f32 %v2503, 0.0
        %v2730 = vmax.f32 %v2523, 0.0
        %v2731 = vmax.f32 %v2543, 0.0
        %v2732 = vmax.f32 %v2563, 0.0
        %v2733 = vmax.f32 %v2583, 0.0
        %v2734 = vmax.f32 %v2603, 0.0
        %v2735 = vmax.f32 %v2623, 0.0
        %v2736 = vmax.f32 %v2643, 0.0
        %v2737 = vmax.f32 %v2663, 0.0
        %v2738 = vmax.f32 %v2683, 0.0
        %v2739 = vmax.f32 %v2703, 0.0
        %v2740 = vmax.f32 %v2723, 0.0
        %v2741 = vmul.f32 %v2725, %v928
        %v2742 = vmul.f32 %v2726, %v929
        %v2743 = vmul.f32 %v2727, %v930
        %v2744 = vmul.f32 %v2728, %v931
        %v2745 = vmul.f32 %v2729, %v932
        %v2746 = vmul.f32 %v2730, %v933
        %v2747 = vmul.f32 %v2731, %v934
        %v2748 = vmul.f32 %v2732, %v935
        %v2749 = vmul.f32 %v2733, %v936
        %v2750 = vmul.f32 %v2734, %v937
        %v2751 = vmul.f32 %v2735, %v938
        %v2752 = vmul.f32 %v2736, %v939
        %v2753 = vmul.f32 %v2737, %v940
        %v2754 = vmul.f32 %v2738, %v941
        %v2755 = vmul.f32 %v2739, %v942
        %v2756 = vmul.f32 %v2740, %v943
        %2757 = vrot.lane.b32.xlu0 %v2741, 1
        %v2758 = vpop.permute.xlu0 %2757
        %2759 = vrot.lane.b32.xlu0 %v2742, 1
        %v2760 = vpop.permute.xlu0 %2759
        %2761 = vrot.lane.b32.xlu0 %v2743, 1
        %v2762 = vpop.permute.xlu0 %2761
        %2763 = vrot.lane.b32.xlu0 %v2744, 1
        %v2764 = vpop.permute.xlu0 %2763
        %2765 = vrot.lane.b32.xlu0 %v2745, 1
        %v2766 = vpop.permute.xlu0 %2765
        %2767 = vrot.lane.b32.xlu0 %v2746, 1
        %v2768 = vpop.permute.xlu0 %2767
        %2769 = vrot.lane.b32.xlu0 %v2747, 1
        %v2770 = vpop.permute.xlu0 %2769
        %2771 = vrot.lane.b32.xlu0 %v2748, 1
        %v2772 = vpop.permute.xlu0 %2771
        %2773 = vrot.lane.b32.xlu0 %v2749, 1
        %v2774 = vpop.permute.xlu0 %2773
        %2775 = vrot.lane.b32.xlu0 %v2750, 1
        %v2776 = vpop.permute.xlu0 %2775
        %2777 = vrot.lane.b32.xlu0 %v2751, 1
        %v2778 = vpop.permute.xlu0 %2777
        %2779 = vrot.lane.b32.xlu0 %v2752, 1
        %v2780 = vpop.permute.xlu0 %2779
        %2781 = vrot.lane.b32.xlu0 %v2753, 1
        %v2782 = vpop.permute.xlu0 %2781
        %v2783 = vsel %vm1010, %v2780, %v2782
        %v2784 = vsel %vm1010, %v2778, %v2780
        %v2785 = vsel %vm1010, %v2776, %v2778
        %v2786 = vsel %vm1010, %v2774, %v2776
        %v2787 = vsel %vm1010, %v2772, %v2774
        %v2788 = vsel %vm1010, %v2770, %v2772
        %v2789 = vsel %vm1010, %v2768, %v2770
        %v2790 = vsel %vm1010, %v2766, %v2768
        %v2791 = vsel %vm1010, %v2764, %v2766
        %v2792 = vsel %vm1010, %v2762, %v2764
        %v2793 = vsel %vm1010, %v2760, %v2762
        %v2794 = vsel %vm1010, %v2758, %v2760
        %2795 = vrot.lane.b32.xlu0 %v2742, 127
        %v2796 = vpop.permute.xlu0 %2795
        %2797 = vrot.lane.b32.xlu0 %v2743, 127
        %v2798 = vpop.permute.xlu0 %2797
        %2799 = vrot.lane.b32.xlu0 %v2744, 127
        %v2800 = vpop.permute.xlu0 %2799
        %2801 = vrot.lane.b32.xlu0 %v2745, 127
        %v2802 = vpop.permute.xlu0 %2801
        %2803 = vrot.lane.b32.xlu0 %v2746, 127
        %v2804 = vpop.permute.xlu0 %2803
        %2805 = vrot.lane.b32.xlu0 %v2747, 127
        %v2806 = vpop.permute.xlu0 %2805
        %2807 = vrot.lane.b32.xlu0 %v2748, 127
        %v2808 = vpop.permute.xlu0 %2807
        %2809 = vrot.lane.b32.xlu0 %v2749, 127
        %v2810 = vpop.permute.xlu0 %2809
        %2811 = vrot.lane.b32.xlu0 %v2750, 127
        %v2812 = vpop.permute.xlu0 %2811
        %2813 = vrot.lane.b32.xlu0 %v2751, 127
        %v2814 = vpop.permute.xlu0 %2813
        %2815 = vrot.lane.b32.xlu0 %v2752, 127
        %v2816 = vpop.permute.xlu0 %2815
        %2817 = vrot.lane.b32.xlu0 %v2753, 127
        %v2818 = vpop.permute.xlu0 %2817
        %2819 = vrot.lane.b32.xlu0 %v2754, 127
        %v2820 = vpop.permute.xlu0 %2819
        %v2821 = vsel %vm1059, %v2818, %v2820
        %v2822 = vsel %vm1059, %v2816, %v2818
        %v2823 = vsel %vm1059, %v2814, %v2816
        %v2824 = vsel %vm1059, %v2812, %v2814
        %v2825 = vsel %vm1059, %v2810, %v2812
        %v2826 = vsel %vm1059, %v2808, %v2810
        %v2827 = vsel %vm1059, %v2806, %v2808
        %v2828 = vsel %vm1059, %v2804, %v2806
        %v2829 = vsel %vm1059, %v2802, %v2804
        %v2830 = vsel %vm1059, %v2800, %v2802
        %v2831 = vsel %vm1059, %v2798, %v2800
        %v2832 = vsel %vm1059, %v2796, %v2798
        %2833 = vrot.lane.b32.xlu0 %v2754, 1
        %v2834 = vpop.permute.xlu0 %2833
        %v2835 = vsel %vm1010, %v2782, %v2834
        %2836 = vrot.lane.b32.xlu0 %v2755, 127
        %v2837 = vpop.permute.xlu0 %2836
        %v2838 = vsel %vm1059, %v2820, %v2837
        %2839 = vrot.lane.b32.xlu0 %v2755, 1
        %v2840 = vpop.permute.xlu0 %2839
        %v2841 = vsel %vm1010, %v2834, %v2840
        %2842 = vrot.lane.b32.xlu0 %v2756, 127
        %v2843 = vpop.permute.xlu0 %2842
        %v2844 = vsel %vm1059, %v2837, %v2843
        %v2857 = vrot.slane %v2742, 4
        %v2858 = vrot.slane %v2743, 4
        %v2859 = vrot.slane %v2744, 4
        %v2860 = vrot.slane %v2745, 4
        %v2861 = vrot.slane %v2746, 4
        %v2862 = vrot.slane %v2747, 4
        %v2863 = vrot.slane %v2748, 4
        %v2864 = vrot.slane %v2749, 4
        %v2865 = vrot.slane %v2750, 4
        %v2866 = vrot.slane %v2751, 4
        %v2867 = vrot.slane %v2752, 4
        %v2868 = vrot.slane %v2753, 4
        %v2893 = vrot.slane %v2793, 4
        %v2894 = vrot.slane %v2792, 4
        %v2895 = vrot.slane %v2791, 4
        %v2896 = vrot.slane %v2790, 4
        %v2897 = vrot.slane %v2789, 4
        %v2898 = vrot.slane %v2788, 4
        %v2899 = vrot.slane %v2787, 4
        %v2900 = vrot.slane %v2786, 4
        %v2901 = vrot.slane %v2785, 4
        %v2902 = vrot.slane %v2784, 4
        %v2903 = vrot.slane %v2783, 4
        %v2904 = vrot.slane %v2835, 4
        %v2929 = vrot.slane %v2831, 4
        %v2930 = vrot.slane %v2830, 4
        %v2931 = vrot.slane %v2829, 4
        %v2932 = vrot.slane %v2828, 4
        %v2933 = vrot.slane %v2827, 4
        %v2934 = vrot.slane %v2826, 4
        %v2935 = vrot.slane %v2825, 4
        %v2936 = vrot.slane %v2824, 4
        %v2937 = vrot.slane %v2823, 4
        %v2938 = vrot.slane %v2822, 4
        %v2939 = vrot.slane %v2821, 4
        %v2940 = vrot.slane %v2838, 4
        %v2955 = vrot.slane %v2754, 4
        %v2956 = vrot.slane %v2755, 4
        %v2959 = vsel %vm1220, %v2794, %v2857
        %v2960 = vsel %vm1220, %v2793, %v2858
        %v2961 = vsel %vm1220, %v2792, %v2859
        %v2962 = vsel %vm1220, %v2791, %v2860
        %v2963 = vsel %vm1220, %v2790, %v2861
        %v2964 = vsel %vm1220, %v2789, %v2862
        %v2965 = vsel %vm1220, %v2788, %v2863
        %v2966 = vsel %vm1220, %v2787, %v2864
        %v2967 = vsel %vm1220, %v2786, %v2865
        %v2968 = vsel %vm1220, %v2785, %v2866
        %v2969 = vsel %vm1220, %v2784, %v2867
        %v2970 = vsel %vm1220, %v2783, %v2868
        %v2971 = vsel %vm1220, %v2832, %v2893
        %v2972 = vsel %vm1220, %v2831, %v2894
        %v2973 = vsel %vm1220, %v2830, %v2895
        %v2974 = vsel %vm1220, %v2829, %v2896
        %v2975 = vsel %vm1220, %v2828, %v2897
        %v2976 = vsel %vm1220, %v2827, %v2898
        %v2977 = vsel %vm1220, %v2826, %v2899
        %v2978 = vsel %vm1220, %v2825, %v2900
        %v2979 = vsel %vm1220, %v2824, %v2901
        %v2980 = vsel %vm1220, %v2823, %v2902
        %v2981 = vsel %vm1220, %v2822, %v2903
        %v2982 = vsel %vm1220, %v2821, %v2904
        %v2983 = vsel %vm1220, %v2743, %v2929
        %v2984 = vsel %vm1220, %v2744, %v2930
        %v2985 = vsel %vm1220, %v2745, %v2931
        %v2986 = vsel %vm1220, %v2746, %v2932
        %v2987 = vsel %vm1220, %v2747, %v2933
        %v2988 = vsel %vm1220, %v2748, %v2934
        %v2989 = vsel %vm1220, %v2749, %v2935
        %v2990 = vsel %vm1220, %v2750, %v2936
        %v2991 = vsel %vm1220, %v2751, %v2937
        %v2992 = vsel %vm1220, %v2752, %v2938
        %v2993 = vsel %vm1220, %v2753, %v2939
        %v2994 = vsel %vm1220, %v2754, %v2940
        %v2995 = vsel %vm1220, %v2835, %v2955
        %v2996 = vsel %vm1220, %v2841, %v2956
        %v2997 = vld [vmem:[%s11] sm:$0xf]
        %v2998 = vld [vmem:[%s12] sm:$0xf]
        %3000 = vset.pattern.permute.xlu0 0
        %3001 = vperm.xlu0 %3000, %v2998
        %v3002 = vpop.permute.xlu0 %3001
        %v3005 = vsel %vm1276, %v2997, 0
        %v3007 = vsel %vm1220, %v2830, 0
        %v3009 = vsel %vm1220, %v2829, 0
        %v3011 = vsel %vm1220, %v2828, 0
        %v3013 = vsel %vm1220, %v2827, 0
        %v3015 = vsel %vm1220, %v2826, 0
        %v3017 = vsel %vm1220, %v2825, 0
        %v3019 = vsel %vm1220, %v2824, 0
        %v3021 = vsel %vm1220, %v2823, 0
        %v3023 = vsel %vm1220, %v2822, 0
        %v3025 = vsel %vm1220, %v2821, 0
        %v3027 = vsel %vm1220, %v2838, 0
        %v3030 = vsel %vm1220, %v2844, 0
        %3032 = vmatpush.msra.mxu0 0.0
        %3033 = vmatpush.msra.mxu0 0.0
        %3034 = vmatpush.msra.mxu0 0.0
        %3035 = vmatpush.msra.mxu0 0.0
        %3036 = vmatpush.msra.mxu0 0.0
        %3037 = vmatpush.msra.mxu0 0.0
        %3038 = vmatpush.msra.mxu0 0.0
        %3039 = vmatpush.msra.mxu0 0.0
        %3040 = vmatpush.msra.mxu0 0.0
        %3041 = vmatpush.msra.mxu0 0.0
        %3042 = vmatpush.msra.mxu0 0.0
        %3043 = vmatpush.msra.mxu0 %v3007
        %3044 = vmatpush.msra.mxu0 %v2961
        %3045 = vmatpush.msra.mxu0 %v2983
        %3046 = vmatpush.msra.mxu0 %v2971
        %3047 = vmatpush.msra.mxu0 %v2959
        %3048 = vmatmul.f32.gmra.mxu0 %v3005
        %v3049 = vpop.f32.mrf.mxu0
        %v3050 = vadd.f32 %v3002, %v3049
        %3051 = vdwg.mxu0
        %3052 = vmatpush.msra.mxu0 0.0
        %3053 = vmatpush.msra.mxu0 0.0
        %3054 = vmatpush.msra.mxu0 0.0
        %3055 = vmatpush.msra.mxu0 0.0
        %3056 = vmatpush.msra.mxu0 0.0
        %3057 = vmatpush.msra.mxu0 0.0
        %3058 = vmatpush.msra.mxu0 0.0
        %3059 = vmatpush.msra.mxu0 0.0
        %3060 = vmatpush.msra.mxu0 0.0
        %3061 = vmatpush.msra.mxu0 0.0
        %3062 = vmatpush.msra.mxu0 0.0
        %3063 = vmatpush.msra.mxu0 %v3009
        %3064 = vmatpush.msra.mxu0 %v2962
        %3065 = vmatpush.msra.mxu0 %v2984
        %3066 = vmatpush.msra.mxu0 %v2972
        %3067 = vmatpush.msra.mxu0 %v2960
        %3068 = vmatmul.f32.gmra.mxu0 %v3005
        %v3069 = vpop.f32.mrf.mxu0
        %v3070 = vadd.f32 %v3002, %v3069
        %3071 = vdwg.mxu0
        %3072 = vmatpush.msra.mxu0 0.0
        %3073 = vmatpush.msra.mxu0 0.0
        %3074 = vmatpush.msra.mxu0 0.0
        %3075 = vmatpush.msra.mxu0 0.0
        %3076 = vmatpush.msra.mxu0 0.0
        %3077 = vmatpush.msra.mxu0 0.0
        %3078 = vmatpush.msra.mxu0 0.0
        %3079 = vmatpush.msra.mxu0 0.0
        %3080 = vmatpush.msra.mxu0 0.0
        %3081 = vmatpush.msra.mxu0 0.0
        %3082 = vmatpush.msra.mxu0 0.0
        %3083 = vmatpush.msra.mxu0 %v3011
        %3084 = vmatpush.msra.mxu0 %v2963
        %3085 = vmatpush.msra.mxu0 %v2985
        %3086 = vmatpush.msra.mxu0 %v2973
        %3087 = vmatpush.msra.mxu0 %v2961
        %3088 = vmatmul.f32.gmra.mxu0 %v3005
        %v3089 = vpop.f32.mrf.mxu0
        %v3090 = vadd.f32 %v3002, %v3089
        %3091 = vdwg.mxu0
        %3092 = vmatpush.msra.mxu0 0.0
        %3093 = vmatpush.msra.mxu0 0.0
        %3094 = vmatpush.msra.mxu0 0.0
        %3095 = vmatpush.msra.mxu0 0.0
        %3096 = vmatpush.msra.mxu0 0.0
        %3097 = vmatpush.msra.mxu0 0.0
        %3098 = vmatpush.msra.mxu0 0.0
        %3099 = vmatpush.msra.mxu0 0.0
        %3100 = vmatpush.msra.mxu0 0.0
        %3101 = vmatpush.msra.mxu0 0.0
        %3102 = vmatpush.msra.mxu0 0.0
        %3103 = vmatpush.msra.mxu0 %v3013
        %3104 = vmatpush.msra.mxu0 %v2964
        %3105 = vmatpush.msra.mxu0 %v2986
        %3106 = vmatpush.msra.mxu0 %v2974
        %3107 = vmatpush.msra.mxu0 %v2962
        %3108 = vmatmul.f32.gmra.mxu0 %v3005
        %v3109 = vpop.f32.mrf.mxu0
        %v3110 = vadd.f32 %v3002, %v3109
        %3111 = vdwg.mxu0
        %3112 = vmatpush.msra.mxu0 0.0
        %3113 = vmatpush.msra.mxu0 0.0
        %3114 = vmatpush.msra.mxu0 0.0
        %3115 = vmatpush.msra.mxu0 0.0
        %3116 = vmatpush.msra.mxu0 0.0
        %3117 = vmatpush.msra.mxu0 0.0
        %3118 = vmatpush.msra.mxu0 0.0
        %3119 = vmatpush.msra.mxu0 0.0
        %3120 = vmatpush.msra.mxu0 0.0
        %3121 = vmatpush.msra.mxu0 0.0
        %3122 = vmatpush.msra.mxu0 0.0
        %3123 = vmatpush.msra.mxu0 %v3015
        %3124 = vmatpush.msra.mxu0 %v2965
        %3125 = vmatpush.msra.mxu0 %v2987
        %3126 = vmatpush.msra.mxu0 %v2975
        %3127 = vmatpush.msra.mxu0 %v2963
        %3128 = vmatmul.f32.gmra.mxu0 %v3005
        %v3129 = vpop.f32.mrf.mxu0
        %v3130 = vadd.f32 %v3002, %v3129
        %3131 = vdwg.mxu0
        %3132 = vmatpush.msra.mxu0 0.0
        %3133 = vmatpush.msra.mxu0 0.0
        %3134 = vmatpush.msra.mxu0 0.0
        %3135 = vmatpush.msra.mxu0 0.0
        %3136 = vmatpush.msra.mxu0 0.0
        %3137 = vmatpush.msra.mxu0 0.0
        %3138 = vmatpush.msra.mxu0 0.0
        %3139 = vmatpush.msra.mxu0 0.0
        %3140 = vmatpush.msra.mxu0 0.0
        %3141 = vmatpush.msra.mxu0 0.0
        %3142 = vmatpush.msra.mxu0 0.0
        %3143 = vmatpush.msra.mxu0 %v3017
        %3144 = vmatpush.msra.mxu0 %v2966
        %3145 = vmatpush.msra.mxu0 %v2988
        %3146 = vmatpush.msra.mxu0 %v2976
        %3147 = vmatpush.msra.mxu0 %v2964
        %3148 = vmatmul.f32.gmra.mxu0 %v3005
        %v3149 = vpop.f32.mrf.mxu0
        %v3150 = vadd.f32 %v3002, %v3149
        %3151 = vdwg.mxu0
        %3152 = vmatpush.msra.mxu0 0.0
        %3153 = vmatpush.msra.mxu0 0.0
        %3154 = vmatpush.msra.mxu0 0.0
        %3155 = vmatpush.msra.mxu0 0.0
        %3156 = vmatpush.msra.mxu0 0.0
        %3157 = vmatpush.msra.mxu0 0.0
        %3158 = vmatpush.msra.mxu0 0.0
        %3159 = vmatpush.msra.mxu0 0.0
        %3160 = vmatpush.msra.mxu0 0.0
        %3161 = vmatpush.msra.mxu0 0.0
        %3162 = vmatpush.msra.mxu0 0.0
        %3163 = vmatpush.msra.mxu0 %v3019
        %3164 = vmatpush.msra.mxu0 %v2967
        %3165 = vmatpush.msra.mxu0 %v2989
        %3166 = vmatpush.msra.mxu0 %v2977
        %3167 = vmatpush.msra.mxu0 %v2965
        %3168 = vmatmul.f32.gmra.mxu0 %v3005
        %v3169 = vpop.f32.mrf.mxu0
        %v3170 = vadd.f32 %v3002, %v3169
        %3171 = vdwg.mxu0
        %3172 = vmatpush.msra.mxu0 0.0
        %3173 = vmatpush.msra.mxu0 0.0
        %3174 = vmatpush.msra.mxu0 0.0
        %3175 = vmatpush.msra.mxu0 0.0
        %3176 = vmatpush.msra.mxu0 0.0
        %3177 = vmatpush.msra.mxu0 0.0
        %3178 = vmatpush.msra.mxu0 0.0
        %3179 = vmatpush.msra.mxu0 0.0
        %3180 = vmatpush.msra.mxu0 0.0
        %3181 = vmatpush.msra.mxu0 0.0
        %3182 = vmatpush.msra.mxu0 0.0
        %3183 = vmatpush.msra.mxu0 %v3021
        %3184 = vmatpush.msra.mxu0 %v2968
        %3185 = vmatpush.msra.mxu0 %v2990
        %3186 = vmatpush.msra.mxu0 %v2978
        %3187 = vmatpush.msra.mxu0 %v2966
        %3188 = vmatmul.f32.gmra.mxu0 %v3005
        %v3189 = vpop.f32.mrf.mxu0
        %v3190 = vadd.f32 %v3002, %v3189
        %3191 = vdwg.mxu0
        %3192 = vmatpush.msra.mxu0 0.0
        %3193 = vmatpush.msra.mxu0 0.0
        %3194 = vmatpush.msra.mxu0 0.0
        %3195 = vmatpush.msra.mxu0 0.0
        %3196 = vmatpush.msra.mxu0 0.0
        %3197 = vmatpush.msra.mxu0 0.0
        %3198 = vmatpush.msra.mxu0 0.0
        %3199 = vmatpush.msra.mxu0 0.0
        %3200 = vmatpush.msra.mxu0 0.0
        %3201 = vmatpush.msra.mxu0 0.0
        %3202 = vmatpush.msra.mxu0 0.0
        %3203 = vmatpush.msra.mxu0 %v3023
        %3204 = vmatpush.msra.mxu0 %v2969
        %3205 = vmatpush.msra.mxu0 %v2991
        %3206 = vmatpush.msra.mxu0 %v2979
        %3207 = vmatpush.msra.mxu0 %v2967
        %3208 = vmatmul.f32.gmra.mxu0 %v3005
        %v3209 = vpop.f32.mrf.mxu0
        %v3210 = vadd.f32 %v3002, %v3209
        %3211 = vdwg.mxu0
        %3212 = vmatpush.msra.mxu0 0.0
        %3213 = vmatpush.msra.mxu0 0.0
        %3214 = vmatpush.msra.mxu0 0.0
        %3215 = vmatpush.msra.mxu0 0.0
        %3216 = vmatpush.msra.mxu0 0.0
        %3217 = vmatpush.msra.mxu0 0.0
        %3218 = vmatpush.msra.mxu0 0.0
        %3219 = vmatpush.msra.mxu0 0.0
        %3220 = vmatpush.msra.mxu0 0.0
        %3221 = vmatpush.msra.mxu0 0.0
        %3222 = vmatpush.msra.mxu0 0.0
        %3223 = vmatpush.msra.mxu0 %v3025
        %3224 = vmatpush.msra.mxu0 %v2970
        %3225 = vmatpush.msra.mxu0 %v2992
        %3226 = vmatpush.msra.mxu0 %v2980
        %3227 = vmatpush.msra.mxu0 %v2968
        %3228 = vmatmul.f32.gmra.mxu0 %v3005
        %v3229 = vpop.f32.mrf.mxu0
        %v3230 = vadd.f32 %v3002, %v3229
        %3231 = vdwg.mxu0
        %3232 = vmatpush.msra.mxu0 0.0
        %3233 = vmatpush.msra.mxu0 0.0
        %3234 = vmatpush.msra.mxu0 0.0
        %3235 = vmatpush.msra.mxu0 0.0
        %3236 = vmatpush.msra.mxu0 0.0
        %3237 = vmatpush.msra.mxu0 0.0
        %3238 = vmatpush.msra.mxu0 0.0
        %3239 = vmatpush.msra.mxu0 0.0
        %3240 = vmatpush.msra.mxu0 0.0
        %3241 = vmatpush.msra.mxu0 0.0
        %3242 = vmatpush.msra.mxu0 0.0
        %3243 = vmatpush.msra.mxu0 %v3027
        %3244 = vmatpush.msra.mxu0 %v2995
        %3245 = vmatpush.msra.mxu0 %v2993
        %3246 = vmatpush.msra.mxu0 %v2981
        %3247 = vmatpush.msra.mxu0 %v2969
        %3248 = vmatmul.f32.gmra.mxu0 %v3005
        %v3249 = vpop.f32.mrf.mxu0
        %v3250 = vadd.f32 %v3002, %v3249
        %3251 = vdwg.mxu0
        %3252 = vmatpush.msra.mxu0 0.0
        %3253 = vmatpush.msra.mxu0 0.0
        %3254 = vmatpush.msra.mxu0 0.0
        %3255 = vmatpush.msra.mxu0 0.0
        %3256 = vmatpush.msra.mxu0 0.0
        %3257 = vmatpush.msra.mxu0 0.0
        %3258 = vmatpush.msra.mxu0 0.0
        %3259 = vmatpush.msra.mxu0 0.0
        %3260 = vmatpush.msra.mxu0 0.0
        %3261 = vmatpush.msra.mxu0 0.0
        %3262 = vmatpush.msra.mxu0 0.0
        %3263 = vmatpush.msra.mxu0 %v3030
        %3264 = vmatpush.msra.mxu0 %v2996
        %3265 = vmatpush.msra.mxu0 %v2994
        %3266 = vmatpush.msra.mxu0 %v2982
        %3267 = vmatpush.msra.mxu0 %v2970
        %3268 = vmatmul.f32.gmra.mxu0 %v3005
        %v3269 = vpop.f32.mrf.mxu0
        %v3270 = vadd.f32 %v3002, %v3269
        %3271 = vdwg.mxu0
        %v3272 = vmax.f32 %v3050, 0.0
        %v3273 = vmax.f32 %v3070, 0.0
        %v3274 = vmax.f32 %v3090, 0.0
        %v3275 = vmax.f32 %v3110, 0.0
        %v3276 = vmax.f32 %v3130, 0.0
        %v3277 = vmax.f32 %v3150, 0.0
        %v3278 = vmax.f32 %v3170, 0.0
        %v3279 = vmax.f32 %v3190, 0.0
        %v3280 = vmax.f32 %v3210, 0.0
        %v3281 = vmax.f32 %v3230, 0.0
        %v3282 = vmax.f32 %v3250, 0.0
        %v3283 = vmax.f32 %v3270, 0.0
        %v3284 = vmul.f32 %v3272, %v930
        %v3285 = vmul.f32 %v3273, %v931
        %v3286 = vmul.f32 %v3274, %v932
        %v3287 = vmul.f32 %v3275, %v933
        %v3288 = vmul.f32 %v3276, %v934
        %v3289 = vmul.f32 %v3277, %v935
        %v3290 = vmul.f32 %v3278, %v936
        %v3291 = vmul.f32 %v3279, %v937
        %v3292 = vmul.f32 %v3280, %v938
        %v3293 = vmul.f32 %v3281, %v939
        %v3294 = vmul.f32 %v3282, %v940
        %v3295 = vmul.f32 %v3283, %v941
        %3296 = vrot.lane.b32.xlu0 %v3284, 1
        %v3297 = vpop.permute.xlu0 %3296
        %3298 = vrot.lane.b32.xlu0 %v3285, 1
        %v3299 = vpop.permute.xlu0 %3298
        %3300 = vrot.lane.b32.xlu0 %v3286, 1
        %v3301 = vpop.permute.xlu0 %3300
        %3302 = vrot.lane.b32.xlu0 %v3287, 1
        %v3303 = vpop.permute.xlu0 %3302
        %3304 = vrot.lane.b32.xlu0 %v3288, 1
        %v3305 = vpop.permute.xlu0 %3304
        %3306 = vrot.lane.b32.xlu0 %v3289, 1
        %v3307 = vpop.permute.xlu0 %3306
        %3308 = vrot.lane.b32.xlu0 %v3290, 1
        %v3309 = vpop.permute.xlu0 %3308
        %3310 = vrot.lane.b32.xlu0 %v3291, 1
        %v3311 = vpop.permute.xlu0 %3310
        %3312 = vrot.lane.b32.xlu0 %v3292, 1
        %v3313 = vpop.permute.xlu0 %3312
        %v3314 = vsel %vm1010, %v3311, %v3313
        %v3315 = vsel %vm1010, %v3309, %v3311
        %v3316 = vsel %vm1010, %v3307, %v3309
        %v3317 = vsel %vm1010, %v3305, %v3307
        %v3318 = vsel %vm1010, %v3303, %v3305
        %v3319 = vsel %vm1010, %v3301, %v3303
        %v3320 = vsel %vm1010, %v3299, %v3301
        %v3321 = vsel %vm1010, %v3297, %v3299
        %3322 = vrot.lane.b32.xlu0 %v3285, 127
        %v3323 = vpop.permute.xlu0 %3322
        %3324 = vrot.lane.b32.xlu0 %v3286, 127
        %v3325 = vpop.permute.xlu0 %3324
        %3326 = vrot.lane.b32.xlu0 %v3287, 127
        %v3327 = vpop.permute.xlu0 %3326
        %3328 = vrot.lane.b32.xlu0 %v3288, 127
        %v3329 = vpop.permute.xlu0 %3328
        %3330 = vrot.lane.b32.xlu0 %v3289, 127
        %v3331 = vpop.permute.xlu0 %3330
        %3332 = vrot.lane.b32.xlu0 %v3290, 127
        %v3333 = vpop.permute.xlu0 %3332
        %3334 = vrot.lane.b32.xlu0 %v3291, 127
        %v3335 = vpop.permute.xlu0 %3334
        %3336 = vrot.lane.b32.xlu0 %v3292, 127
        %v3337 = vpop.permute.xlu0 %3336
        %3338 = vrot.lane.b32.xlu0 %v3293, 127
        %v3339 = vpop.permute.xlu0 %3338
        %v3340 = vsel %vm1059, %v3337, %v3339
        %v3341 = vsel %vm1059, %v3335, %v3337
        %v3342 = vsel %vm1059, %v3333, %v3335
        %v3343 = vsel %vm1059, %v3331, %v3333
        %v3344 = vsel %vm1059, %v3329, %v3331
        %v3345 = vsel %vm1059, %v3327, %v3329
        %v3346 = vsel %vm1059, %v3325, %v3327
        %v3347 = vsel %vm1059, %v3323, %v3325
        %3348 = vrot.lane.b32.xlu0 %v3293, 1
        %v3349 = vpop.permute.xlu0 %3348
        %v3350 = vsel %vm1010, %v3313, %v3349
        %3351 = vrot.lane.b32.xlu0 %v3294, 127
        %v3352 = vpop.permute.xlu0 %3351
        %v3353 = vsel %vm1059, %v3339, %v3352
        %3354 = vrot.lane.b32.xlu0 %v3294, 1
        %v3355 = vpop.permute.xlu0 %3354
        %v3356 = vsel %vm1010, %v3349, %v3355
        %3357 = vrot.lane.b32.xlu0 %v3295, 127
        %v3358 = vpop.permute.xlu0 %3357
        %v3359 = vsel %vm1059, %v3352, %v3358
        %v3368 = vrot.slane %v3285, 4
        %v3369 = vrot.slane %v3286, 4
        %v3370 = vrot.slane %v3287, 4
        %v3371 = vrot.slane %v3288, 4
        %v3372 = vrot.slane %v3289, 4
        %v3373 = vrot.slane %v3290, 4
        %v3374 = vrot.slane %v3291, 4
        %v3375 = vrot.slane %v3292, 4
        %v3392 = vrot.slane %v3320, 4
        %v3393 = vrot.slane %v3319, 4
        %v3394 = vrot.slane %v3318, 4
        %v3395 = vrot.slane %v3317, 4
        %v3396 = vrot.slane %v3316, 4
        %v3397 = vrot.slane %v3315, 4
        %v3398 = vrot.slane %v3314, 4
        %v3399 = vrot.slane %v3350, 4
        %v3416 = vrot.slane %v3346, 4
        %v3417 = vrot.slane %v3345, 4
        %v3418 = vrot.slane %v3344, 4
        %v3419 = vrot.slane %v3343, 4
        %v3420 = vrot.slane %v3342, 4
        %v3421 = vrot.slane %v3341, 4
        %v3422 = vrot.slane %v3340, 4
        %v3423 = vrot.slane %v3353, 4
        %v3434 = vrot.slane %v3293, 4
        %v3435 = vrot.slane %v3294, 4
        %v3438 = vsel %vm1220, %v3321, %v3368
        %v3439 = vsel %vm1220, %v3320, %v3369
        %v3440 = vsel %vm1220, %v3319, %v3370
        %v3441 = vsel %vm1220, %v3318, %v3371
        %v3442 = vsel %vm1220, %v3317, %v3372
        %v3443 = vsel %vm1220, %v3316, %v3373
        %v3444 = vsel %vm1220, %v3315, %v3374
        %v3445 = vsel %vm1220, %v3314, %v3375
        %v3446 = vsel %vm1220, %v3347, %v3392
        %v3447 = vsel %vm1220, %v3346, %v3393
        %v3448 = vsel %vm1220, %v3345, %v3394
        %v3449 = vsel %vm1220, %v3344, %v3395
        %v3450 = vsel %vm1220, %v3343, %v3396
        %v3451 = vsel %vm1220, %v3342, %v3397
        %v3452 = vsel %vm1220, %v3341, %v3398
        %v3453 = vsel %vm1220, %v3340, %v3399
        %v3454 = vsel %vm1220, %v3286, %v3416
        %v3455 = vsel %vm1220, %v3287, %v3417
        %v3456 = vsel %vm1220, %v3288, %v3418
        %v3457 = vsel %vm1220, %v3289, %v3419
        %v3458 = vsel %vm1220, %v3290, %v3420
        %v3459 = vsel %vm1220, %v3291, %v3421
        %v3460 = vsel %vm1220, %v3292, %v3422
        %v3461 = vsel %vm1220, %v3293, %v3423
        %v3462 = vsel %vm1220, %v3350, %v3434
        %v3463 = vsel %vm1220, %v3356, %v3435
        %v3464 = vld [vmem:[%s13] sm:$0xf]
        %v3465 = vld [vmem:[%s14] sm:$0xf]
        %3467 = vset.pattern.permute.xlu0 0
        %3468 = vperm.xlu0 %3467, %v3465
        %v3469 = vpop.permute.xlu0 %3468
        %v3472 = vsel %vm1276, %v3464, 0
        %v3474 = vsel %vm1220, %v3345, 0
        %v3476 = vsel %vm1220, %v3344, 0
        %v3478 = vsel %vm1220, %v3343, 0
        %v3480 = vsel %vm1220, %v3342, 0
        %v3482 = vsel %vm1220, %v3341, 0
        %v3484 = vsel %vm1220, %v3340, 0
        %v3486 = vsel %vm1220, %v3353, 0
        %v3489 = vsel %vm1220, %v3359, 0
        %3491 = vmatpush.msra.mxu0 0.0
        %3492 = vmatpush.msra.mxu0 0.0
        %3493 = vmatpush.msra.mxu0 0.0
        %3494 = vmatpush.msra.mxu0 0.0
        %3495 = vmatpush.msra.mxu0 0.0
        %3496 = vmatpush.msra.mxu0 0.0
        %3497 = vmatpush.msra.mxu0 0.0
        %3498 = vmatpush.msra.mxu0 0.0
        %3499 = vmatpush.msra.mxu0 0.0
        %3500 = vmatpush.msra.mxu0 0.0
        %3501 = vmatpush.msra.mxu0 0.0
        %3502 = vmatpush.msra.mxu0 %v3474
        %3503 = vmatpush.msra.mxu0 %v3440
        %3504 = vmatpush.msra.mxu0 %v3454
        %3505 = vmatpush.msra.mxu0 %v3446
        %3506 = vmatpush.msra.mxu0 %v3438
        %3507 = vmatmul.f32.gmra.mxu0 %v3472
        %v3508 = vpop.f32.mrf.mxu0
        %v3509 = vadd.f32 %v3469, %v3508
        %3510 = vdwg.mxu0
        %3511 = vmatpush.msra.mxu0 0.0
        %3512 = vmatpush.msra.mxu0 0.0
        %3513 = vmatpush.msra.mxu0 0.0
        %3514 = vmatpush.msra.mxu0 0.0
        %3515 = vmatpush.msra.mxu0 0.0
        %3516 = vmatpush.msra.mxu0 0.0
        %3517 = vmatpush.msra.mxu0 0.0
        %3518 = vmatpush.msra.mxu0 0.0
        %3519 = vmatpush.msra.mxu0 0.0
        %3520 = vmatpush.msra.mxu0 0.0
        %3521 = vmatpush.msra.mxu0 0.0
        %3522 = vmatpush.msra.mxu0 %v3476
        %3523 = vmatpush.msra.mxu0 %v3441
        %3524 = vmatpush.msra.mxu0 %v3455
        %3525 = vmatpush.msra.mxu0 %v3447
        %3526 = vmatpush.msra.mxu0 %v3439
        %3527 = vmatmul.f32.gmra.mxu0 %v3472
        %v3528 = vpop.f32.mrf.mxu0
        %v3529 = vadd.f32 %v3469, %v3528
        %3530 = vdwg.mxu0
        %3531 = vmatpush.msra.mxu0 0.0
        %3532 = vmatpush.msra.mxu0 0.0
        %3533 = vmatpush.msra.mxu0 0.0
        %3534 = vmatpush.msra.mxu0 0.0
        %3535 = vmatpush.msra.mxu0 0.0
        %3536 = vmatpush.msra.mxu0 0.0
        %3537 = vmatpush.msra.mxu0 0.0
        %3538 = vmatpush.msra.mxu0 0.0
        %3539 = vmatpush.msra.mxu0 0.0
        %3540 = vmatpush.msra.mxu0 0.0
        %3541 = vmatpush.msra.mxu0 0.0
        %3542 = vmatpush.msra.mxu0 %v3478
        %3543 = vmatpush.msra.mxu0 %v3442
        %3544 = vmatpush.msra.mxu0 %v3456
        %3545 = vmatpush.msra.mxu0 %v3448
        %3546 = vmatpush.msra.mxu0 %v3440
        %3547 = vmatmul.f32.gmra.mxu0 %v3472
        %v3548 = vpop.f32.mrf.mxu0
        %v3549 = vadd.f32 %v3469, %v3548
        %3550 = vdwg.mxu0
        %3551 = vmatpush.msra.mxu0 0.0
        %3552 = vmatpush.msra.mxu0 0.0
        %3553 = vmatpush.msra.mxu0 0.0
        %3554 = vmatpush.msra.mxu0 0.0
        %3555 = vmatpush.msra.mxu0 0.0
        %3556 = vmatpush.msra.mxu0 0.0
        %3557 = vmatpush.msra.mxu0 0.0
        %3558 = vmatpush.msra.mxu0 0.0
        %3559 = vmatpush.msra.mxu0 0.0
        %3560 = vmatpush.msra.mxu0 0.0
        %3561 = vmatpush.msra.mxu0 0.0
        %3562 = vmatpush.msra.mxu0 %v3480
        %3563 = vmatpush.msra.mxu0 %v3443
        %3564 = vmatpush.msra.mxu0 %v3457
        %3565 = vmatpush.msra.mxu0 %v3449
        %3566 = vmatpush.msra.mxu0 %v3441
        %3567 = vmatmul.f32.gmra.mxu0 %v3472
        %v3568 = vpop.f32.mrf.mxu0
        %v3569 = vadd.f32 %v3469, %v3568
        %3570 = vdwg.mxu0
        %3571 = vmatpush.msra.mxu0 0.0
        %3572 = vmatpush.msra.mxu0 0.0
        %3573 = vmatpush.msra.mxu0 0.0
        %3574 = vmatpush.msra.mxu0 0.0
        %3575 = vmatpush.msra.mxu0 0.0
        %3576 = vmatpush.msra.mxu0 0.0
        %3577 = vmatpush.msra.mxu0 0.0
        %3578 = vmatpush.msra.mxu0 0.0
        %3579 = vmatpush.msra.mxu0 0.0
        %3580 = vmatpush.msra.mxu0 0.0
        %3581 = vmatpush.msra.mxu0 0.0
        %3582 = vmatpush.msra.mxu0 %v3482
        %3583 = vmatpush.msra.mxu0 %v3444
        %3584 = vmatpush.msra.mxu0 %v3458
        %3585 = vmatpush.msra.mxu0 %v3450
        %3586 = vmatpush.msra.mxu0 %v3442
        %3587 = vmatmul.f32.gmra.mxu0 %v3472
        %v3588 = vpop.f32.mrf.mxu0
        %v3589 = vadd.f32 %v3469, %v3588
        %3590 = vdwg.mxu0
        %3591 = vmatpush.msra.mxu0 0.0
        %3592 = vmatpush.msra.mxu0 0.0
        %3593 = vmatpush.msra.mxu0 0.0
        %3594 = vmatpush.msra.mxu0 0.0
        %3595 = vmatpush.msra.mxu0 0.0
        %3596 = vmatpush.msra.mxu0 0.0
        %3597 = vmatpush.msra.mxu0 0.0
        %3598 = vmatpush.msra.mxu0 0.0
        %3599 = vmatpush.msra.mxu0 0.0
        %3600 = vmatpush.msra.mxu0 0.0
        %3601 = vmatpush.msra.mxu0 0.0
        %3602 = vmatpush.msra.mxu0 %v3484
        %3603 = vmatpush.msra.mxu0 %v3445
        %3604 = vmatpush.msra.mxu0 %v3459
        %3605 = vmatpush.msra.mxu0 %v3451
        %3606 = vmatpush.msra.mxu0 %v3443
        %3607 = vmatmul.f32.gmra.mxu0 %v3472
        %v3608 = vpop.f32.mrf.mxu0
        %v3609 = vadd.f32 %v3469, %v3608
        %3610 = vdwg.mxu0
        %3611 = vmatpush.msra.mxu0 0.0
        %3612 = vmatpush.msra.mxu0 0.0
        %3613 = vmatpush.msra.mxu0 0.0
        %3614 = vmatpush.msra.mxu0 0.0
        %3615 = vmatpush.msra.mxu0 0.0
        %3616 = vmatpush.msra.mxu0 0.0
        %3617 = vmatpush.msra.mxu0 0.0
        %3618 = vmatpush.msra.mxu0 0.0
        %3619 = vmatpush.msra.mxu0 0.0
        %3620 = vmatpush.msra.mxu0 0.0
        %3621 = vmatpush.msra.mxu0 0.0
        %3622 = vmatpush.msra.mxu0 %v3486
        %3623 = vmatpush.msra.mxu0 %v3462
        %3624 = vmatpush.msra.mxu0 %v3460
        %3625 = vmatpush.msra.mxu0 %v3452
        %3626 = vmatpush.msra.mxu0 %v3444
        %3627 = vmatmul.f32.gmra.mxu0 %v3472
        %v3628 = vpop.f32.mrf.mxu0
        %v3629 = vadd.f32 %v3469, %v3628
        %3630 = vdwg.mxu0
        %3631 = vmatpush.msra.mxu0 0.0
        %3632 = vmatpush.msra.mxu0 0.0
        %3633 = vmatpush.msra.mxu0 0.0
        %3634 = vmatpush.msra.mxu0 0.0
        %3635 = vmatpush.msra.mxu0 0.0
        %3636 = vmatpush.msra.mxu0 0.0
        %3637 = vmatpush.msra.mxu0 0.0
        %3638 = vmatpush.msra.mxu0 0.0
        %3639 = vmatpush.msra.mxu0 0.0
        %3640 = vmatpush.msra.mxu0 0.0
        %3641 = vmatpush.msra.mxu0 0.0
        %3642 = vmatpush.msra.mxu0 %v3489
        %3643 = vmatpush.msra.mxu0 %v3463
        %3644 = vmatpush.msra.mxu0 %v3461
        %3645 = vmatpush.msra.mxu0 %v3453
        %3646 = vmatpush.msra.mxu0 %v3445
        %3647 = vmatmul.f32.gmra.mxu0 %v3472
        %v3648 = vpop.f32.mrf.mxu0
        %v3649 = vadd.f32 %v3469, %v3648
        %3650 = vdwg.mxu0
        %v3651 = vadd.f32 %v3509, %v2745
        %v3652 = vadd.f32 %v3529, %v2746
        %v3653 = vadd.f32 %v3549, %v2747
        %v3654 = vadd.f32 %v3569, %v2748
        %v3655 = vadd.f32 %v3589, %v2749
        %v3656 = vadd.f32 %v3609, %v2750
        %v3657 = vadd.f32 %v3629, %v2751
        %v3658 = vadd.f32 %v3649, %v2752
        %v3659 = vmax.f32 %v3651, 0.0
        %v3660 = vmax.f32 %v3652, 0.0
        %v3661 = vmax.f32 %v3653, 0.0
        %v3662 = vmax.f32 %v3654, 0.0
        %v3663 = vmax.f32 %v3655, 0.0
        %v3664 = vmax.f32 %v3656, 0.0
        %v3665 = vmax.f32 %v3657, 0.0
        %v3666 = vmax.f32 %v3658, 0.0
        %v3675 = vrot.slane %v3660, 4
        %v3676 = vrot.slane %v3662, 4
        %v3677 = vrot.slane %v3664, 4
        %v3678 = vrot.slane %v3666, 4
        %v3679 = vsel %vm1220, %v3659, %v3675
        %v3680 = vsel %vm1220, %v3661, %v3676
        %v3681 = vsel %vm1220, %v3663, %v3677
        %v3682 = vsel %vm1220, %v3665, %v3678
        %3687 = vst [vmem:[%s545] sm:$0xff] %v3679
        %3688 = vst [vmem:[%s545 + $0x8] sm:$0xff] %v3680
        %3689 = vst [vmem:[%s545 + $0x10] sm:$0xff] %v3681
        %3690 = vst [vmem:[%s545 + $0x18] sm:$0xff] %v3682
        %s3691 = sand.u32 %s377, 1
        %s3692 = scalar_lea.sflag [#allocation4], %s3691
        %s3693 = sand.u32 %s377, 1
        %s3694 = smul.addr %s3693, 32
        %s3695 = scalar_lea.vmem [#allocation7], %s3694
        // Predicated region
        $region89: #{tpu_custom_call.1} parent=79 // pred_check
          %p3696 = pneg %p387
        $region90: #{tpu_custom_call.1} parent=79 // pred_check_branch
          %3698 = sbr.rel (%p3696) target = $region92
        $region91: #{tpu_custom_call.1} parent=79 // pred_region
          %3700 = vsyncadd %s3692, 0
          %s3701 = smul.addr %s38, 8
          %s3702 = smul.addr %s37, 16
          %s3703 = sadd.s32 %s3701, %s3702
          %s3704 = smul.addr %s3703, 4
          %s3705 = scalar_lea.hbm %s15, %s3704
          %s3707 = sshll.u32 %s3695, 4
          %s3708 = int_to_ptr.vmem [resolvable:$true] %s3707
          %s3709 = sshll.u32 %s3705, 4
          %s3710 = int_to_ptr.hbm [resolvable:$true] %s3709
          %3712 = dma.vmem_to_hbm [thread:$0]  %s3708, 512, %s3710, %s3692
        $region92: #{tpu_custom_call.1} parent=79 // pred_fallthru
          _
      $region80: #{tpu_custom_call.1} parent=5 // pred_fallthru
        _
      %p3713 = scmp.le.s32.totalorder 2, %s28
      // Predicated region
      $region93: #{tpu_custom_call.1} parent=5 // pred_check
        %p3714 = pneg %p3713
      $region94: #{tpu_custom_call.1} parent=5 // pred_check_branch
        %3716 = sbr.rel (%p3714) target = $region96
      $region95: #{tpu_custom_call.1} parent=5 // pred_region
        %s3717 = ssub.s32 %s28, 2
        // Predicated region
        $region97: #{tpu_custom_call.1} parent=95 // pred_check
          %p3718 = pneg %p393
        $region98: #{tpu_custom_call.1} parent=95 // pred_check_branch
          %3720 = sbr.rel (%p3718) target = $region100
        $region99: #{tpu_custom_call.1} parent=95 // pred_region
          %s3721 = sand.u32 %s378, 1
          %s3722 = scalar_lea.sflag [#allocation4], %s3721
          %s3723 = sand.u32 %s378, 1
          %s3724 = smul.addr %s3723, 32
          %s3725 = scalar_lea.vmem [#allocation7], %s3724
          %3727 = dma.done %s3722, 512
        $region100: #{tpu_custom_call.1} parent=95 // pred_fallthru
          _
      $region96: #{tpu_custom_call.1} parent=5 // pred_fallthru
        _
    $region6: #{tpu_custom_call.1} parent=1 // loop_footer
      %s32 = sadd.s32 1, %s28
    $region7: #{tpu_custom_call.1} parent=1 // loop_footer_branch
      %27 = sbr.rel target = $region3
    $region8: #{tpu_custom_call.1} parent=1 // loop_exit
      _
    %3728 = vsyncpa [#allocation3], 1
    %s3729 = scalar_lea.sflag [#allocation3], 1
    %3730 = vsyncpa %s3729, 1
    %3731 = vsyncpa [#allocation6], 1
    %3732 = vsyncpa [#allocation4], 1
    %s3733 = scalar_lea.sflag [#allocation4], 1
    %3734 = vsyncpa %s3733, 1

</llo_original>
